<compile_context>
chip_gen: v7x
topology: tpu7x:2x2x1
jax: 0.10.0
libtpu: 0.0.40
codegen_flags: <defaults>
</compile_context>

<pallas_src>
import jax
import jax.numpy as jnp
from jax.experimental import pallas as pl
from jax.experimental.pallas import tpu as pltpu


# --------------------------------------------------------------------------- #
# Kernel
# --------------------------------------------------------------------------- #
def pointgen_kernel(x_ref,
                    w1_ref, b1_ref,
                    w2_ref, b2_ref,
                    w3_ref, b3_ref,
                    w4_ref, b4_ref,
                    out_ref,
                    h_ref):
    # fc1..fc3 depend only on the batch tile -> compute once per batch tile
    # (first N step) and memoise the bf16 activations in VMEM scratch.
    @pl.when(pl.program_id(1) == 0)
    def _():
        h = x_ref[...].astype(jnp.bfloat16)
        h = jnp.dot(h, w1_ref[...], preferred_element_type=jnp.float32)
        h = jnp.maximum(h + b1_ref[...], 0.0).astype(jnp.bfloat16)
        h = jnp.dot(h, w2_ref[...], preferred_element_type=jnp.float32)
        h = jnp.maximum(h + b2_ref[...], 0.0).astype(jnp.bfloat16)
        h = jnp.dot(h, w3_ref[...], preferred_element_type=jnp.float32)
        h = jnp.maximum(h + b3_ref[...], 0.0).astype(jnp.bfloat16)
        h_ref[...] = h

    # fc4 (current output-N tile) + Tanh.
    y = jnp.dot(h_ref[...], w4_ref[...], preferred_element_type=jnp.float32)
    out_ref[...] = jnp.tanh(y + b4_ref[...]).astype(out_ref.dtype)


# --------------------------------------------------------------------------- #
# Helpers
# --------------------------------------------------------------------------- #
def _round_up(n, m):
    return ((n + m - 1) // m) * m


def _choose_tile_b(batch):
    """Batch tile: multiple of 8, aiming for >= ~4 grid steps along batch
    (>= 2 per TensorCore on v7x); larger tiles for very large batches to
    amortise the ~0.35 us/step Pallas overhead."""
    b8 = _round_up(batch, 8)
    cap = 512 if batch >= 2048 else 256
    target = _round_up(pl.cdiv(b8, 4), 8)
    return int(min(cap, max(8, target)))


def _choose_tile_n(out_dim, tile_n=None):
    """fc4 output tile (lane-dense, multiple of 128, <= 1024) and the padded
    fc4 output dimension."""
    if tile_n is not None:
        assert tile_n % 128 == 0, "tile_n must be a multiple of 128"
        return int(tile_n), _round_up(out_dim, tile_n)
    pad128 = _round_up(out_dim, 128)
    m = pad128 // 128
    # Largest divisor of m that keeps the tile <= 1024 lanes (no extra waste
    # beyond the 128-lane alignment).
    d = max(k for k in range(1, min(m, 8) + 1) if m % k == 0)
    return 128 * d, pad128


def _vmem_capacity_bytes():
    try:
        return int(pltpu.get_tpu_info().vmem_capacity_bytes)
    except Exception:
        return 64 << 20  # conservative (v7x per-TC VMEM)


def _vmem_limit_bytes(tb, tn, feat_dim):
    # Resident small weights (assume 2x in case the single-buffer path is
    # unavailable) + streamed w4/b4 tiles (double-buffered) + x/out tiles
    # (double-buffered) + scratch & in-kernel temporaries + headroom.
    small_w = 2 * (feat_dim * 256 + 256 * 512 + 512 * 1024)          # bf16
    small_b = 4 * 8 * (256 + 512 + 1024)                             # f32, 8-sublane pad
    resident = 2 * (small_w + small_b)
    w4_tiles = 2 * (2 * 1024 * tn + 4 * 8 * tn)
    io = 2 * 4 * tb * feat_dim + 2 * 4 * tb * tn
    scratch = 2 * tb * 1024 + 2 * 4 * tb * (1024 + tn)
    need = resident + w4_tiles + io + scratch + (16 << 20)
    cap = int(_vmem_capacity_bytes() * 0.875)                        # leave headroom
    return int(min(cap, max(need, 32 << 20)))


# --------------------------------------------------------------------------- #
# Wrapper
# --------------------------------------------------------------------------- #
def pointgen_forward(x, params, num_points, tile_b=None, tile_n=None,
                     out_dtype=jnp.float32):
    """x: (B, feat_dim) float32. Returns (B, 3, num_points) in `out_dtype`.

    Precision note: weights / inter-layer activations run in bfloat16 with f32
    MXU accumulation (HBM-bandwidth-bound workload); expect ~1e-2 deviation
    from the f32 PyTorch model.
    """
    B, feat_dim = x.shape
    out_dim = num_points * 3

    w1, b1, w2, b2, w3, b3, w4, b4 = params
    w1, w2, w3, w4 = (w.astype(jnp.bfloat16) for w in (w1, w2, w3, w4))

    # --- fc4 output-N tiling (lane-dense, bounded VMEM) ---------------------
    tn, out_dim_pad = _choose_tile_n(out_dim, tile_n)
    if out_dim_pad != out_dim:
        w4 = jnp.pad(w4, ((0, 0), (0, out_dim_pad - out_dim)))
        b4 = jnp.pad(b4, ((0, 0), (0, out_dim_pad - out_dim)))

    # --- batch tiling --------------------------------------------------------
    tb = tile_b if tile_b is not None else _choose_tile_b(B)
    assert tb % 8 == 0, "batch tile must be a multiple of 8 (f32 sublane)"
    b_pad = _round_up(max(B, tb), tb)
    if b_pad != B:
        x = jnp.pad(x, ((0, b_pad - B), (0, 0)))

    grid = (pl.cdiv(b_pad, tb), pl.cdiv(out_dim_pad, tn))

    compiler_params = pltpu.CompilerParams(
        # batch axis parallel (v7x megacore); N axis sequential (scratch memo).
        dimension_semantics=("parallel", "arbitrary"),
        vmem_limit_bytes=_vmem_limit_bytes(tb, tn, feat_dim),
    )

    flops = 2 * b_pad * (feat_dim * 256 + 256 * 512 + 512 * 1024
                         + 1024 * out_dim_pad)
    bytes_accessed = (2 * (feat_dim * 256 + 256 * 512 + 512 * 1024
                           + 1024 * out_dim_pad)                    # bf16 weights
                      + 4 * (256 + 512 + 1024 + out_dim_pad)        # f32 biases
                      + 4 * b_pad * feat_dim                        # x
                      + jnp.dtype(out_dtype).itemsize * b_pad * out_dim_pad)
    cost = pl.CostEstimate(flops=flops,
                           transcendentals=b_pad * out_dim_pad,     # tanh
                           bytes_accessed=int(bytes_accessed))

    def build(single_buffer_weights):
        if single_buffer_weights:
            # Grid-invariant operands: resident, single-buffered.
            resident = lambda s: pl.BlockSpec(
                s, lambda i, j: (0, 0), pipeline_mode=pl.Buffered(1))
        else:
            resident = lambda s: pl.BlockSpec(s, lambda i, j: (0, 0))
        in_specs = [
            pl.BlockSpec((tb, feat_dim), lambda i, j: (i, 0)),   # x per batch tile
            resident(w1.shape), resident(b1.shape),
            resident(w2.shape), resident(b2.shape),
            resident(w3.shape), resident(b3.shape),
            pl.BlockSpec((1024, tn), lambda i, j: (0, j)),       # w4 streamed per N tile
            pl.BlockSpec((1, tn), lambda i, j: (0, j)),          # b4 streamed per N tile
        ]
        out_specs = pl.BlockSpec((tb, tn), lambda i, j: (i, j))  # lane-dense output tile
        return pl.pallas_call(
            pointgen_kernel,
            out_shape=jax.ShapeDtypeStruct((b_pad, out_dim_pad), out_dtype),
            grid=grid,
            in_specs=in_specs,
            out_specs=out_specs,
            scratch_shapes=[pltpu.VMEM((tb, 1024), jnp.bfloat16)],  # memoised fc3 acts
            compiler_params=compiler_params,
            cost_estimate=cost,
        )

    args = (x, w1, b1, w2, b2, w3, b3, w4, b4)
    try:
        flat = build(True)(*args)
    except (TypeError, ValueError):
        # Older JAX without BlockSpec(pipeline_mode=...): default buffering
        # (small weights only -> ~1.3 MB extra; vmem budget already covers 2x).
        flat = build(False)(*args)

    flat = flat[:B, :out_dim]
    # view(batchsize, 3, num_points) -- row-major reshape, done as glue in JAX.
    return flat.reshape(B, 3, num_points)


# --------------------------------------------------------------------------- #
# Params + pure-JAX reference
# --------------------------------------------------------------------------- #
def init_params(key, feat_dim, num_points):
    """Deterministic synthetic parameters (PyTorch-like uniform fan-in init)."""
    dims = [feat_dim, 256, 512, 1024, num_points * 3]
    params = []
    for i in range(4):
        key, kw, kb = jax.random.split(key, 3)
        fan_in, fan_out = dims[i], dims[i + 1]
        bound = 1.0 / jnp.sqrt(fan_in)
        w = jax.random.uniform(kw, (fan_in, fan_out), jnp.float32, -bound, bound)
        b = jax.random.uniform(kb, (1, fan_out), jnp.float32, -bound, bound)
        params += [w, b]
    return params


def reference_forward(x, params, num_points):
    """Same math (bf16 weights / activations, f32 accumulation) in plain JAX."""
    w1, b1, w2, b2, w3, b3, w4, b4 = params
    w1, w2, w3, w4 = (w.astype(jnp.bfloat16) for w in (w1, w2, w3, w4))
    h = x.astype(jnp.bfloat16)
    h = jax.nn.relu(jnp.dot(h, w1, preferred_element_type=jnp.float32) + b1)
    h = h.astype(jnp.bfloat16)
    h = jax.nn.relu(jnp.dot(h, w2, preferred_element_type=jnp.float32) + b2)
    h = h.astype(jnp.bfloat16)
    h = jax.nn.relu(jnp.dot(h, w3, preferred_element_type=jnp.float32) + b3)
    h = h.astype(jnp.bfloat16)
    y = jnp.tanh(jnp.dot(h, w4, preferred_element_type=jnp.float32) + b4)
    return y.reshape(x.shape[0], 3, num_points)


# --------------------------------------------------------------------------- #
# Demo / correctness checks
# --------------------------------------------------------------------------- #
if __name__ == "__main__":
    key = jax.random.PRNGKey(0)
    feat_dim = 32

    # Test 1: tiny batch, lane-aligned num_points (single batch tile, 1 N tile).
    num_points = 128                                   # 3*128 = 384 lanes
    key, kp, kx = jax.random.split(key, 3)
    params = init_params(kp, feat_dim, num_points)
    x1 = jax.random.normal(kx, (2, feat_dim), jnp.float32)
    out1 = jax.block_until_ready(pointgen_forward(x1, params, num_points))
    ref1 = reference_forward(x1, params, num_points)
    assert out1.shape == (2, 3, num_points)
    assert jnp.allclose(out1, ref1, atol=2e-2, rtol=2e-2)

    # Test 2: multi-step batch grid (tb=8 -> 4 pipelined batch tiles).
    key, kx = jax.random.split(key)
    x2 = jax.random.normal(kx, (32, feat_dim), jnp.float32)
    out2 = jax.block_until_ready(
        pointgen_forward(x2, params, num_points, tile_b=8))
    ref2 = reference_forward(x2, params, num_points)
    assert out2.shape == (32, 3, num_points)
    assert jnp.allclose(out2, ref2, atol=2e-2, rtol=2e-2)

    # Test 3: non-128-multiple num_points (lane padding + crop) AND explicit
    # fc4 N-tiling (tile_n=128 -> 3 N steps) exercising the scratch memoisation.
    num_points3 = 100                                  # 3*100 = 300 -> padded to 384
    key, kp3, kx3 = jax.random.split(key, 3)
    params3 = init_params(kp3, feat_dim, num_points3)
    x3 = jax.random.normal(kx3, (16, feat_dim), jnp.float32)
    out3 = jax.block_until_ready(
        pointgen_forward(x3, params3, num_points3, tile_b=8, tile_n=128))
    ref3 = reference_forward(x3, params3, num_points3)
    assert out3.shape == (16, 3, num_points3)
    assert jnp.allclose(out3, ref3, atol=2e-2, rtol=2e-2)

    print("KERNEL_OK")
</pallas_src>

<mosaic_0001>
module attributes {stable_mosaic.version = 11 : i64} {
  func.func @pointgen_kernel(%arg0: i32, %arg1: i32, %arg2: memref<8x32xf32, #tpu.memory_space<vmem>>, %arg3: memref<32x256xbf16, #tpu.memory_space<vmem>>, %arg4: memref<1x256xf32, #tpu.memory_space<vmem>>, %arg5: memref<256x512xbf16, #tpu.memory_space<vmem>>, %arg6: memref<1x512xf32, #tpu.memory_space<vmem>>, %arg7: memref<512x1024xbf16, #tpu.memory_space<vmem>>, %arg8: memref<1x1024xf32, #tpu.memory_space<vmem>>, %arg9: memref<1024x384xbf16, #tpu.memory_space<vmem>>, %arg10: memref<1x384xf32, #tpu.memory_space<vmem>>, %arg11: memref<8x384xf32, #tpu.memory_space<vmem>>, %arg12: memref<8x1024xbf16, #tpu.memory_space<vmem>>) attributes {dimension_semantics = [#tpu.dimension_semantics<parallel>, #tpu.dimension_semantics<arbitrary>], iteration_bounds = array<i64: 1, 1>, scalar_prefetch = 0 : i64, scratch_operands = 1 : i64, tpu.core_type = #tpu.core_type<tc>, window_params = [{transform_indices = @transform_0, window_bounds = array<i64: 8, 32>}, {pipeline_mode = #tpu.pipeline_mode<synchronous>, transform_indices = @transform_1, window_bounds = array<i64: 32, 256>}, {pipeline_mode = #tpu.pipeline_mode<synchronous>, transform_indices = @transform_2, window_bounds = array<i64: 1, 256>}, {pipeline_mode = #tpu.pipeline_mode<synchronous>, transform_indices = @transform_3, window_bounds = array<i64: 256, 512>}, {pipeline_mode = #tpu.pipeline_mode<synchronous>, transform_indices = @transform_4, window_bounds = array<i64: 1, 512>}, {pipeline_mode = #tpu.pipeline_mode<synchronous>, transform_indices = @transform_5, window_bounds = array<i64: 512, 1024>}, {pipeline_mode = #tpu.pipeline_mode<synchronous>, transform_indices = @transform_6, window_bounds = array<i64: 1, 1024>}, {transform_indices = @transform_7, window_bounds = array<i64: 1024, 384>}, {transform_indices = @transform_8, window_bounds = array<i64: 1, 384>}, {transform_indices = @transform_9, window_bounds = array<i64: 8, 384>}]} {
    %c0_i32 = arith.constant 0 : i32
    %0 = arith.cmpi eq, %arg1, %c0_i32 : i32
    %1 = arith.extui %0 : i1 to i32
    %c0_i32_0 = arith.constant 0 : i32
    %2 = arith.cmpi ne, %1, %c0_i32_0 : i32
    scf.if %2 {
      %c0_8 = arith.constant 0 : index
      %c0_9 = arith.constant 0 : index
      %11 = vector.load %arg2[%c0_8, %c0_9] : memref<8x32xf32, #tpu.memory_space<vmem>>, vector<8x32xf32>
      %12 = arith.truncf %11 : vector<8x32xf32> to vector<8x32xbf16>
      %c0_10 = arith.constant 0 : index
      %c0_11 = arith.constant 0 : index
      %13 = vector.load %arg3[%c0_10, %c0_11] : memref<32x256xbf16, #tpu.memory_space<vmem>>, vector<32x256xbf16>
      %cst_12 = arith.constant dense<0.000000e+00> : vector<8x256xf32>
      %14 = tpu.matmul %12, %13, %cst_12 {dimension_numbers = #tpu.dot_dimension_numbers<[1], [0], [0], [1], [0, 0, 1, 1], [], []>} : vector<8x32xbf16>, vector<32x256xbf16>, vector<8x256xf32> -> vector<8x256xf32>
      %c0_13 = arith.constant 0 : index
      %c0_14 = arith.constant 0 : index
      %15 = vector.load %arg4[%c0_13, %c0_14] : memref<1x256xf32, #tpu.memory_space<vmem>>, vector<1x256xf32>
      %16 = vector.broadcast %15 : vector<1x256xf32> to vector<8x256xf32>
      %17 = arith.addf %14, %16 : vector<8x256xf32>
      %cst_15 = arith.constant 0.000000e+00 : f32
      %18 = vector.broadcast %cst_15 : f32 to vector<8x256xf32>
      %19 = arith.maximumf %17, %18 : vector<8x256xf32>
      %20 = arith.truncf %19 : vector<8x256xf32> to vector<8x256xbf16>
      %c0_16 = arith.constant 0 : index
      %c0_17 = arith.constant 0 : index
      %21 = vector.load %arg5[%c0_16, %c0_17] : memref<256x512xbf16, #tpu.memory_space<vmem>>, vector<256x512xbf16>
      %cst_18 = arith.constant dense<0.000000e+00> : vector<8x512xf32>
      %22 = tpu.matmul %20, %21, %cst_18 {dimension_numbers = #tpu.dot_dimension_numbers<[1], [0], [0], [1], [0, 0, 1, 1], [], []>} : vector<8x256xbf16>, vector<256x512xbf16>, vector<8x512xf32> -> vector<8x512xf32>
      %c0_19 = arith.constant 0 : index
      %c0_20 = arith.constant 0 : index
      %23 = vector.load %arg6[%c0_19, %c0_20] : memref<1x512xf32, #tpu.memory_space<vmem>>, vector<1x512xf32>
      %24 = vector.broadcast %23 : vector<1x512xf32> to vector<8x512xf32>
      %25 = arith.addf %22, %24 : vector<8x512xf32>
      %cst_21 = arith.constant 0.000000e+00 : f32
      %26 = vector.broadcast %cst_21 : f32 to vector<8x512xf32>
      %27 = arith.maximumf %25, %26 : vector<8x512xf32>
      %28 = arith.truncf %27 : vector<8x512xf32> to vector<8x512xbf16>
      %c0_22 = arith.constant 0 : index
      %c0_23 = arith.constant 0 : index
      %29 = vector.load %arg7[%c0_22, %c0_23] : memref<512x1024xbf16, #tpu.memory_space<vmem>>, vector<512x1024xbf16>
      %cst_24 = arith.constant dense<0.000000e+00> : vector<8x1024xf32>
      %30 = tpu.matmul %28, %29, %cst_24 {dimension_numbers = #tpu.dot_dimension_numbers<[1], [0], [0], [1], [0, 0, 1, 1], [], []>} : vector<8x512xbf16>, vector<512x1024xbf16>, vector<8x1024xf32> -> vector<8x1024xf32>
      %c0_25 = arith.constant 0 : index
      %c0_26 = arith.constant 0 : index
      %31 = vector.load %arg8[%c0_25, %c0_26] : memref<1x1024xf32, #tpu.memory_space<vmem>>, vector<1x1024xf32>
      %32 = vector.broadcast %31 : vector<1x1024xf32> to vector<8x1024xf32>
      %33 = arith.addf %30, %32 : vector<8x1024xf32>
      %cst_27 = arith.constant 0.000000e+00 : f32
      %34 = vector.broadcast %cst_27 : f32 to vector<8x1024xf32>
      %35 = arith.maximumf %33, %34 : vector<8x1024xf32>
      %36 = arith.truncf %35 : vector<8x1024xf32> to vector<8x1024xbf16>
      %c0_28 = arith.constant 0 : index
      %c0_29 = arith.constant 0 : index
      %37 = vector.load %arg12[%c0_28, %c0_29] : memref<8x1024xbf16, #tpu.memory_space<vmem>>, vector<8x1024xbf16>
      tpu.vector_store %arg12[%c0_28, %c0_29], %36 {strides = array<i32>} : memref<8x1024xbf16, #tpu.memory_space<vmem>>, vector<8x1024xbf16>,
    } else {
    }
    %c0 = arith.constant 0 : index
    %c0_1 = arith.constant 0 : index
    %3 = vector.load %arg12[%c0, %c0_1] : memref<8x1024xbf16, #tpu.memory_space<vmem>>, vector<8x1024xbf16>
    %c0_2 = arith.constant 0 : index
    %c0_3 = arith.constant 0 : index
    %4 = vector.load %arg9[%c0_2, %c0_3] : memref<1024x384xbf16, #tpu.memory_space<vmem>>, vector<1024x384xbf16>
    %cst = arith.constant dense<0.000000e+00> : vector<8x384xf32>
    %5 = tpu.matmul %3, %4, %cst {dimension_numbers = #tpu.dot_dimension_numbers<[1], [0], [0], [1], [0, 0, 1, 1], [], []>} : vector<8x1024xbf16>, vector<1024x384xbf16>, vector<8x384xf32> -> vector<8x384xf32>
    %c0_4 = arith.constant 0 : index
    %c0_5 = arith.constant 0 : index
    %6 = vector.load %arg10[%c0_4, %c0_5] : memref<1x384xf32, #tpu.memory_space<vmem>>, vector<1x384xf32>
    %7 = vector.broadcast %6 : vector<1x384xf32> to vector<8x384xf32>
    %8 = arith.addf %5, %7 : vector<8x384xf32>
    %9 = math.tanh %8 : vector<8x384xf32>
    %c0_6 = arith.constant 0 : index
    %c0_7 = arith.constant 0 : index
    %10 = vector.load %arg11[%c0_6, %c0_7] : memref<8x384xf32, #tpu.memory_space<vmem>>, vector<8x384xf32>
    tpu.vector_store %arg11[%c0_6, %c0_7], %9 {strides = array<i32>} : memref<8x384xf32, #tpu.memory_space<vmem>>, vector<8x384xf32>,
    return
  }
  func.func @transform_0(%arg0: i32, %arg1: i32) -> (i32, i32) {
    %c0_i32 = arith.constant 0 : i32
    %c0_i32_0 = arith.constant 0 : i32
    return %arg0, %c0_i32 : i32, i32
  }
  func.func @transform_1(%arg0: i32, %arg1: i32) -> (i32, i32) {
    %c0_i32 = arith.constant 0 : i32
    %c0_i32_0 = arith.constant 0 : i32
    %c0_i32_1 = arith.constant 0 : i32
    return %c0_i32, %c0_i32_0 : i32, i32
  }
  func.func @transform_2(%arg0: i32, %arg1: i32) -> (i32, i32) {
    %c0_i32 = arith.constant 0 : i32
    %c0_i32_0 = arith.constant 0 : i32
    %c0_i32_1 = arith.constant 0 : i32
    return %c0_i32, %c0_i32_0 : i32, i32
  }
  func.func @transform_3(%arg0: i32, %arg1: i32) -> (i32, i32) {
    %c0_i32 = arith.constant 0 : i32
    %c0_i32_0 = arith.constant 0 : i32
    %c0_i32_1 = arith.constant 0 : i32
    return %c0_i32, %c0_i32_0 : i32, i32
  }
  func.func @transform_4(%arg0: i32, %arg1: i32) -> (i32, i32) {
    %c0_i32 = arith.constant 0 : i32
    %c0_i32_0 = arith.constant 0 : i32
    %c0_i32_1 = arith.constant 0 : i32
    return %c0_i32, %c0_i32_0 : i32, i32
  }
  func.func @transform_5(%arg0: i32, %arg1: i32) -> (i32, i32) {
    %c0_i32 = arith.constant 0 : i32
    %c0_i32_0 = arith.constant 0 : i32
    %c0_i32_1 = arith.constant 0 : i32
    return %c0_i32, %c0_i32_0 : i32, i32
  }
  func.func @transform_6(%arg0: i32, %arg1: i32) -> (i32, i32) {
    %c0_i32 = arith.constant 0 : i32
    %c0_i32_0 = arith.constant 0 : i32
    %c0_i32_1 = arith.constant 0 : i32
    return %c0_i32, %c0_i32_0 : i32, i32
  }
  func.func @transform_7(%arg0: i32, %arg1: i32) -> (i32, i32) {
    %c0_i32 = arith.constant 0 : i32
    %c0_i32_0 = arith.constant 0 : i32
    return %c0_i32, %arg1 : i32, i32
  }
  func.func @transform_8(%arg0: i32, %arg1: i32) -> (i32, i32) {
    %c0_i32 = arith.constant 0 : i32
    %c0_i32_0 = arith.constant 0 : i32
    return %c0_i32, %arg1 : i32, i32
  }
  func.func @transform_9(%arg0: i32, %arg1: i32) -> (i32, i32) {
    %c0_i32 = arith.constant 0 : i32
    return %arg0, %arg1 : i32, i32
  }
}

</mosaic_0001>

<llo_original>
// kernel: tpu_custom_call.1
$region0: #{tpu_custom_call.1}
  #allocation0 [shape = 'u32[]', space=smem, size = 0x4, offset = 0x4, fixed_abs, tag = 'smem constant byte address 0x4 - core index']
  #allocation1 [shape = 'u32[144,128]{1,0:T(1,128)}', space=vmem, size = 0x12000, scoped, tag = 'internal scratch']
  #allocation2 [shape = 'bf16[8,1024]{1,0:T(8,128)(2,1)}', space=vmem, size = 0x4000, scoped, tag = 'scratch operand']
  %s0 = inlined_call_operand.hbm [shape: f32[8,32], index: 0, kind: input, shape index: {}]
  %s1 = inlined_call_operand.hbm [shape: bf16[32,256], index: 1, kind: input, shape index: {}]
  %s2 = inlined_call_operand.hbm [shape: f32[1,256], index: 2, kind: input, shape index: {}]
  %s3 = inlined_call_operand.hbm [shape: bf16[256,512], index: 3, kind: input, shape index: {}]
  %s4 = inlined_call_operand.vmem [shape: f32[1,512], index: 4, kind: input, shape index: {}]
  %s5 = inlined_call_operand.hbm [shape: bf16[512,1024], index: 5, kind: input, shape index: {}]
  %s6 = inlined_call_operand.vmem [shape: f32[1,1024], index: 6, kind: input, shape index: {}]
  %s7 = inlined_call_operand.hbm [shape: bf16[1024,384], index: 7, kind: input, shape index: {}]
  %s8 = inlined_call_operand.vmem [shape: f32[1,384], index: 8, kind: input, shape index: {}]
  %s9 = inlined_call_operand.hbm [shape: f32[8,384], index: 9, kind: output, shape index: {}]
  %s10 = sld [smem:[#allocation0]]
  $region74: #{tpu_custom_call.1} parent=0
    _
  %s12 = ssub.s32 1, %s10
  %s13 = scalar_select 0, %s12, %s10
  $region1: #{tpu_custom_call.1} parent=0
    #allocation3 [shape = 'u8[4096]{0}', space=vmem, size = 0x1000, scoped, tag = 'input window, operand 0, single buffered']
    #allocation4 [shape = 's32[1]{0}', space=sflag, size = 0x4, scoped, tag = 'scoped memory for tpu_custom_call.1']
    #allocation5 [shape = 's32[1]{0}', space=sflag, size = 0x4, scoped, tag = 'scoped memory for tpu_custom_call.1']
    #allocation6 [shape = 'u8[16384]{0}', space=vmem, size = 0x4000, scoped, tag = 'input window, operand 1, single buffered']
    #allocation7 [shape = 's32[1]{0}', space=sflag, size = 0x4, scoped, tag = 'scoped memory for tpu_custom_call.1']
    #allocation8 [shape = 'u8[1024]{0}', space=vmem, size = 0x400, scoped, tag = 'input window, operand 2, single buffered']
    #allocation9 [shape = 'u8[262144]{0}', space=vmem, size = 0x40000, scoped, tag = 'input window, operand 3, single buffered']
    #allocation10 [shape = 's32[1]{0}', space=sflag, size = 0x4, scoped, tag = 'scoped memory for tpu_custom_call.1']
    #allocation11 [shape = 'u8[1048576]{0}', space=vmem, size = 0x100000, scoped, tag = 'input window, operand 5, single buffered']
    #allocation12 [shape = 'u8[786432]{0}', space=vmem, size = 0xc0000, scoped, tag = 'input window, operand 7, single buffered']
    #allocation13 [shape = 's32[1]{0}', space=sflag, size = 0x4, scoped, tag = 'scoped memory for tpu_custom_call.1']
    #allocation14 [shape = 'u8[12288]{0}', space=vmem, size = 0x3000, scoped, tag = 'output window, operand 0, single buffered']
    %14 = vsyncpa [#allocation4], 0
    %15 = vsyncpa [#allocation7], 0
    %16 = vsyncpa [#allocation10], 0
    %17 = vsyncpa [#allocation13], 0
    %18 = vsyncpa [#allocation5], 0
    // Predicated region
    $region2: #{tpu_custom_call.1} parent=1 // pred_check
      _
    $region3: #{tpu_custom_call.1} parent=1 // pred_check_branch
      %20 = sbr.rel (0) target = $region5
    $region4: #{tpu_custom_call.1} parent=1 // pred_region
      %s22 = ssub.s32 128, 128
      %23 = vsyncadd [#allocation4], %s22
      %s25 = sshll.u32 [#allocation3], 4
      %s26 = int_to_ptr.vmem [resolvable:$true] %s25
      %28 = dma.hbm_to_vmem [thread:$0]  %s0, 128, %s26, [#allocation4]
    $region5: #{tpu_custom_call.1} parent=1 // pred_fallthru
      _
    // Predicated region
    $region6: #{tpu_custom_call.1} parent=1 // pred_check
      _
    $region7: #{tpu_custom_call.1} parent=1 // pred_check_branch
      %30 = sbr.rel (0) target = $region9
    $region8: #{tpu_custom_call.1} parent=1 // pred_region
      %s32 = ssub.s32 512, 512
      %33 = vsyncadd [#allocation7], %s32
      %s34 = sshll.u32 [#allocation6], 4
      %s35 = int_to_ptr.vmem [resolvable:$true] %s34
      %40 = dma.hbm_to_vmem [thread:$0]  %s1, 512, %s35, [#allocation7], 128, 128, 8
    $region9: #{tpu_custom_call.1} parent=1 // pred_fallthru
      _
    // Predicated region
    $region10: #{tpu_custom_call.1} parent=1 // pred_check
      _
    $region11: #{tpu_custom_call.1} parent=1 // pred_check_branch
      %42 = sbr.rel (0) target = $region13
    $region12: #{tpu_custom_call.1} parent=1 // pred_region
      %s44 = ssub.s32 32, 32
      %45 = vsyncadd [#allocation7], %s44
      %s47 = sshll.u32 [#allocation8], 4
      %s48 = int_to_ptr.vmem [resolvable:$true] %s47
      %50 = dma.hbm_to_vmem [thread:$0]  %s2, 32, %s48, [#allocation7]
    $region13: #{tpu_custom_call.1} parent=1 // pred_fallthru
      _
    // Predicated region
    $region14: #{tpu_custom_call.1} parent=1 // pred_check
      _
    $region15: #{tpu_custom_call.1} parent=1 // pred_check_branch
      %52 = sbr.rel (0) target = $region17
    $region16: #{tpu_custom_call.1} parent=1 // pred_region
      %s54 = ssub.s32 8192, 8192
      %55 = vsyncadd [#allocation10], %s54
      %s56 = sshll.u32 [#allocation9], 4
      %s57 = int_to_ptr.vmem [resolvable:$true] %s56
      %62 = dma.hbm_to_vmem [thread:$0]  %s3, 8192, %s57, [#allocation10], 256, 256, 16
    $region17: #{tpu_custom_call.1} parent=1 // pred_fallthru
      _
    // Predicated region
    $region18: #{tpu_custom_call.1} parent=1 // pred_check
      _
    $region19: #{tpu_custom_call.1} parent=1 // pred_check_branch
      %64 = sbr.rel (0) target = $region21
    $region20: #{tpu_custom_call.1} parent=1 // pred_region
      _
    $region21: #{tpu_custom_call.1} parent=1 // pred_fallthru
      _
    // Predicated region
    $region22: #{tpu_custom_call.1} parent=1 // pred_check
      _
    $region23: #{tpu_custom_call.1} parent=1 // pred_check_branch
      %66 = sbr.rel (0) target = $region25
    $region24: #{tpu_custom_call.1} parent=1 // pred_region
      %s68 = ssub.s32 32768, 32768
      %69 = vsyncadd [#allocation10], %s68
      %s70 = sshll.u32 [#allocation11], 4
      %s71 = int_to_ptr.vmem [resolvable:$true] %s70
      %76 = dma.hbm_to_vmem [thread:$0]  %s5, 32768, %s71, [#allocation10], 512, 512, 32
    $region25: #{tpu_custom_call.1} parent=1 // pred_fallthru
      _
    // Predicated region
    $region26: #{tpu_custom_call.1} parent=1 // pred_check
      _
    $region27: #{tpu_custom_call.1} parent=1 // pred_check_branch
      %78 = sbr.rel (0) target = $region29
    $region28: #{tpu_custom_call.1} parent=1 // pred_region
      _
    $region29: #{tpu_custom_call.1} parent=1 // pred_fallthru
      _
    // Predicated region
    $region30: #{tpu_custom_call.1} parent=1 // pred_check
      _
    $region31: #{tpu_custom_call.1} parent=1 // pred_check_branch
      %80 = sbr.rel (0) target = $region33
    $region32: #{tpu_custom_call.1} parent=1 // pred_region
      %s82 = ssub.s32 24576, 24576
      %83 = vsyncadd [#allocation13], %s82
      %s84 = sshll.u32 [#allocation12], 4
      %s85 = int_to_ptr.vmem [resolvable:$true] %s84
      %90 = dma.hbm_to_vmem [thread:$0]  %s7, 24576, %s85, [#allocation13], 192, 192, 12
    $region33: #{tpu_custom_call.1} parent=1 // pred_fallthru
      _
    // Predicated region
    $region34: #{tpu_custom_call.1} parent=1 // pred_check
      _
    $region35: #{tpu_custom_call.1} parent=1 // pred_check_branch
      %92 = sbr.rel (0) target = $region37
    $region36: #{tpu_custom_call.1} parent=1 // pred_region
      _
    $region37: #{tpu_custom_call.1} parent=1 // pred_fallthru
      _
    // Predicated region
    $region38: #{tpu_custom_call.1} parent=1 // pred_check
      _
    $region39: #{tpu_custom_call.1} parent=1 // pred_check_branch
      %94 = sbr.rel (0) target = $region41
    $region40: #{tpu_custom_call.1} parent=1 // pred_region
      %95 = dma.done [#allocation4], 128
    $region41: #{tpu_custom_call.1} parent=1 // pred_fallthru
      _
    // Predicated region
    $region42: #{tpu_custom_call.1} parent=1 // pred_check
      _
    $region43: #{tpu_custom_call.1} parent=1 // pred_check_branch
      %97 = sbr.rel (0) target = $region45
    $region44: #{tpu_custom_call.1} parent=1 // pred_region
      %98 = dma.done [#allocation7], 512
    $region45: #{tpu_custom_call.1} parent=1 // pred_fallthru
      _
    // Predicated region
    $region46: #{tpu_custom_call.1} parent=1 // pred_check
      _
    $region47: #{tpu_custom_call.1} parent=1 // pred_check_branch
      %100 = sbr.rel (0) target = $region49
    $region48: #{tpu_custom_call.1} parent=1 // pred_region
      %101 = dma.done [#allocation7], 32
    $region49: #{tpu_custom_call.1} parent=1 // pred_fallthru
      _
    // Predicated region
    $region50: #{tpu_custom_call.1} parent=1 // pred_check
      _
    $region51: #{tpu_custom_call.1} parent=1 // pred_check_branch
      %103 = sbr.rel (0) target = $region53
    $region52: #{tpu_custom_call.1} parent=1 // pred_region
      %104 = dma.done [#allocation10], 8192
    $region53: #{tpu_custom_call.1} parent=1 // pred_fallthru
      _
    // Predicated region
    $region54: #{tpu_custom_call.1} parent=1 // pred_check
      _
    $region55: #{tpu_custom_call.1} parent=1 // pred_check_branch
      %106 = sbr.rel (0) target = $region57
    $region56: #{tpu_custom_call.1} parent=1 // pred_region
      %107 = dma.done [#allocation10], 32768
    $region57: #{tpu_custom_call.1} parent=1 // pred_fallthru
      _
    // Predicated region
    $region58: #{tpu_custom_call.1} parent=1 // pred_check
      _
    $region59: #{tpu_custom_call.1} parent=1 // pred_check_branch
      %109 = sbr.rel (0) target = $region61
    $region60: #{tpu_custom_call.1} parent=1 // pred_region
      %110 = dma.done [#allocation13], 24576
    $region61: #{tpu_custom_call.1} parent=1 // pred_fallthru
      _
    %p112 = scmp.eq.s32.totalorder 0, 0
    // Predicated region
    $region62: #{tpu_custom_call.1} parent=1 // pred_check
      %p113 = pneg %p112
    $region63: #{tpu_custom_call.1} parent=1 // pred_check_branch
      %115 = sbr.rel (%p113) target = $region65
    $region64: #{tpu_custom_call.1} parent=1 // pred_region
      %v116 = vld [vmem:[#allocation3] sm:$0xff]
      %v117 = vpack.c.bf16 %v116, %v116
      %v118 = vld [vmem:[#allocation6] sm:$0xff]
      %v119 = vld [vmem:[#allocation6 + $0x8] sm:$0xff]
      %v120 = vld [vmem:[#allocation6 + $0x10] sm:$0xff]
      %v121 = vld [vmem:[#allocation6 + $0x18] sm:$0xff]
      %v122 = vld [vmem:[#allocation8] sm:$0x3]
      %v124 = vlaneseq
      %v125 = vshrl.u32 %v124, 7
      %v126 = vsub.s32 0, %v125
      %v127 = vrot.slane %v122, %v126
      %v128 = vlaneseq
      %v129 = vshrl.u32 %v128, 7
      %v130 = vsub.s32 1, %v129
      %v131 = vrot.slane %v122, %v130
      %v138 = vunpack.c.l.b16 %v118
      %v139 = vunpack.c.h.b16 %v118
      %v140 = vunpack.c.l.b16 %v119
      %v141 = vunpack.c.h.b16 %v119
      %v142 = vunpack.c.l.b16 %v120
      %v143 = vunpack.c.h.b16 %v120
      %v144 = vunpack.c.l.b16 %v121
      %v145 = vunpack.c.h.b16 %v121
      %v146 = vpack.c.b16 %v140, %v138
      %v147 = vpack.c.b16 %v141, %v139
      %v148 = vpack.c.b16 %v144, %v142
      %v149 = vpack.c.b16 %v145, %v143
      %vm154 = vcmask 261120
      %v156 = vsel %vm154, %v117, 0
      %158 = vmatprep.subr.bf16.mxu0 %v147
      %159 = vmatpush1.bf16.msra.mxu0 %v146
      %160 = vmatprep.subr.bf16.mxu0 %v149
      %161 = vmatpush1.bf16.msra.mxu0 %v148
      %162 = vmatprep.subr.bf16.mxu0 0
      %163 = vmatpush1.bf16.msra.mxu0 0
      %164 = vmatprep.subr.bf16.mxu0 0
      %165 = vmatpush1.bf16.msra.mxu0 0
      %166 = vmatprep.subr.bf16.mxu0 0
      %167 = vmatpush1.bf16.msra.mxu0 0
      %168 = vmatprep.subr.bf16.mxu0 0
      %169 = vmatpush1.bf16.msra.mxu0 0
      %170 = vmatprep.subr.bf16.mxu0 0
      %171 = vmatpush1.bf16.msra.mxu0 0
      %172 = vmatprep.subr.bf16.mxu0 0
      %173 = vmatpush1.bf16.msra.mxu0 0
      %174 = vmatprep.subr.bf16.mxu0 0
      %175 = vmatpush1.bf16.msra.mxu0 0
      %176 = vmatprep.subr.bf16.mxu0 0
      %177 = vmatpush1.bf16.msra.mxu0 0
      %178 = vmatprep.subr.bf16.mxu0 0
      %179 = vmatpush1.bf16.msra.mxu0 0
      %180 = vmatprep.subr.bf16.mxu0 0
      %181 = vmatpush1.bf16.msra.mxu0 0
      %182 = vmatprep.subr.bf16.mxu0 0
      %183 = vmatpush1.bf16.msra.mxu0 0
      %184 = vmatprep.subr.bf16.mxu0 0
      %185 = vmatpush1.bf16.msra.mxu0 0
      %186 = vmatprep.subr.bf16.mxu0 0
      %187 = vmatpush1.bf16.msra.mxu0 0
      %188 = vmatprep.subr.bf16.mxu0 0
      %189 = vmatpush1.bf16.msra.mxu0 0
      %190 = vmatprep.mubr.bf16.mxu0 0
      %191 = vmatmul.mubr.bf16.gmra.mrb[0].mxu0 %v156
      %v192 = vpop.f32.mrb[0].mxu0
      %v193 = vadd.f32 %v127, %v192
      %v194 = vpop.f32.mrb[0].mxu0
      %v195 = vadd.f32 %v131, %v194
      %v196 = vpop.f32.mrb[0].mxu0
      %v197 = vpop.f32.mrb[0].mxu0
      %198 = vdwg.mxu0
      %v199 = vmax.f32 %v193, 0.0
      %v200 = vmax.f32 %v195, 0.0
      %v201 = vpack.c.bf16 %v199, %v199
      %v202 = vpack.c.bf16 %v200, %v200
      %v203 = vld [vmem:[#allocation9] sm:$0xff]
      %v204 = vld [vmem:[#allocation9 + $0x8] sm:$0xff]
      %v205 = vld [vmem:[#allocation9 + $0x10] sm:$0xff]
      %v206 = vld [vmem:[#allocation9 + $0x18] sm:$0xff]
      %v207 = vld [vmem:[#allocation9 + $0x20] sm:$0xff]
      %v208 = vld [vmem:[#allocation9 + $0x28] sm:$0xff]
      %v209 = vld [vmem:[#allocation9 + $0x30] sm:$0xff]
      %v210 = vld [vmem:[#allocation9 + $0x38] sm:$0xff]
      %v211 = vld [vmem:[#allocation9 + $0x40] sm:$0xff]
      %v212 = vld [vmem:[#allocation9 + $0x48] sm:$0xff]
      %v213 = vld [vmem:[#allocation9 + $0x50] sm:$0xff]
      %v214 = vld [vmem:[#allocation9 + $0x58] sm:$0xff]
      %v215 = vld [vmem:[#allocation9 + $0x60] sm:$0xff]
      %v216 = vld [vmem:[#allocation9 + $0x68] sm:$0xff]
      %v217 = vld [vmem:[#allocation9 + $0x70] sm:$0xff]
      %v218 = vld [vmem:[#allocation9 + $0x78] sm:$0xff]
      %v219 = vld [vmem:[#allocation9 + $0x80] sm:$0xff]
      %v220 = vld [vmem:[#allocation9 + $0x88] sm:$0xff]
      %v221 = vld [vmem:[#allocation9 + $0x90] sm:$0xff]
      %v222 = vld [vmem:[#allocation9 + $0x98] sm:$0xff]
      %v223 = vld [vmem:[#allocation9 + $0xa0] sm:$0xff]
      %v224 = vld [vmem:[#allocation9 + $0xa8] sm:$0xff]
      %v225 = vld [vmem:[#allocation9 + $0xb0] sm:$0xff]
      %v226 = vld [vmem:[#allocation9 + $0xb8] sm:$0xff]
      %v227 = vld [vmem:[#allocation9 + $0xc0] sm:$0xff]
      %v228 = vld [vmem:[#allocation9 + $0xc8] sm:$0xff]
      %v229 = vld [vmem:[#allocation9 + $0xd0] sm:$0xff]
      %v230 = vld [vmem:[#allocation9 + $0xd8] sm:$0xff]
      %v231 = vld [vmem:[#allocation9 + $0xe0] sm:$0xff]
      %v232 = vld [vmem:[#allocation9 + $0xe8] sm:$0xff]
      %v233 = vld [vmem:[#allocation9 + $0xf0] sm:$0xff]
      %v234 = vld [vmem:[#allocation9 + $0xf8] sm:$0xff]
      %v235 = vld [vmem:[#allocation9 + $0x100] sm:$0xff]
      %v236 = vld [vmem:[#allocation9 + $0x108] sm:$0xff]
      %v237 = vld [vmem:[#allocation9 + $0x110] sm:$0xff]
      %v238 = vld [vmem:[#allocation9 + $0x118] sm:$0xff]
      %v239 = vld [vmem:[#allocation9 + $0x120] sm:$0xff]
      %v240 = vld [vmem:[#allocation9 + $0x128] sm:$0xff]
      %v241 = vld [vmem:[#allocation9 + $0x130] sm:$0xff]
      %v242 = vld [vmem:[#allocation9 + $0x138] sm:$0xff]
      %v243 = vld [vmem:[#allocation9 + $0x140] sm:$0xff]
      %v244 = vld [vmem:[#allocation9 + $0x148] sm:$0xff]
      %v245 = vld [vmem:[#allocation9 + $0x150] sm:$0xff]
      %v246 = vld [vmem:[#allocation9 + $0x158] sm:$0xff]
      %v247 = vld [vmem:[#allocation9 + $0x160] sm:$0xff]
      %v248 = vld [vmem:[#allocation9 + $0x168] sm:$0xff]
      %v249 = vld [vmem:[#allocation9 + $0x170] sm:$0xff]
      %v250 = vld [vmem:[#allocation9 + $0x178] sm:$0xff]
      %v251 = vld [vmem:[#allocation9 + $0x180] sm:$0xff]
      %v252 = vld [vmem:[#allocation9 + $0x188] sm:$0xff]
      %v253 = vld [vmem:[#allocation9 + $0x190] sm:$0xff]
      %v254 = vld [vmem:[#allocation9 + $0x198] sm:$0xff]
      %v255 = vld [vmem:[#allocation9 + $0x1a0] sm:$0xff]
      %v256 = vld [vmem:[#allocation9 + $0x1a8] sm:$0xff]
      %v257 = vld [vmem:[#allocation9 + $0x1b0] sm:$0xff]
      %v258 = vld [vmem:[#allocation9 + $0x1b8] sm:$0xff]
      %v259 = vld [vmem:[#allocation9 + $0x1c0] sm:$0xff]
      %v260 = vld [vmem:[#allocation9 + $0x1c8] sm:$0xff]
      %v261 = vld [vmem:[#allocation9 + $0x1d0] sm:$0xff]
      %v262 = vld [vmem:[#allocation9 + $0x1d8] sm:$0xff]
      %v263 = vld [vmem:[#allocation9 + $0x1e0] sm:$0xff]
      %v264 = vld [vmem:[#allocation9 + $0x1e8] sm:$0xff]
      %v265 = vld [vmem:[#allocation9 + $0x1f0] sm:$0xff]
      %v266 = vld [vmem:[#allocation9 + $0x1f8] sm:$0xff]
      %v267 = vld [vmem:[%s4] sm:$0xf]
      %v269 = vlaneseq
      %v270 = vshrl.u32 %v269, 7
      %v271 = vsub.s32 0, %v270
      %v272 = vrot.slane %v267, %v271
      %v273 = vlaneseq
      %v274 = vshrl.u32 %v273, 7
      %v275 = vsub.s32 1, %v274
      %v276 = vrot.slane %v267, %v275
      %v277 = vlaneseq
      %v278 = vshrl.u32 %v277, 7
      %v279 = vsub.s32 2, %v278
      %v280 = vrot.slane %v267, %v279
      %v281 = vlaneseq
      %v282 = vshrl.u32 %v281, 7
      %v283 = vsub.s32 3, %v282
      %v284 = vrot.slane %v267, %v283
      %v353 = vunpack.c.l.b16 %v203
      %v354 = vunpack.c.h.b16 %v203
      %v355 = vunpack.c.l.b16 %v204
      %v356 = vunpack.c.h.b16 %v204
      %v357 = vunpack.c.l.b16 %v205
      %v358 = vunpack.c.h.b16 %v205
      %v359 = vunpack.c.l.b16 %v206
      %v360 = vunpack.c.h.b16 %v206
      %v361 = vunpack.c.l.b16 %v207
      %v362 = vunpack.c.h.b16 %v207
      %v363 = vunpack.c.l.b16 %v208
      %v364 = vunpack.c.h.b16 %v208
      %v365 = vunpack.c.l.b16 %v209
      %v366 = vunpack.c.h.b16 %v209
      %v367 = vunpack.c.l.b16 %v210
      %v368 = vunpack.c.h.b16 %v210
      %v369 = vunpack.c.l.b16 %v211
      %v370 = vunpack.c.h.b16 %v211
      %v371 = vunpack.c.l.b16 %v212
      %v372 = vunpack.c.h.b16 %v212
      %v373 = vunpack.c.l.b16 %v213
      %v374 = vunpack.c.h.b16 %v213
      %v375 = vunpack.c.l.b16 %v214
      %v376 = vunpack.c.h.b16 %v214
      %v377 = vunpack.c.l.b16 %v215
      %v378 = vunpack.c.h.b16 %v215
      %v379 = vunpack.c.l.b16 %v216
      %v380 = vunpack.c.h.b16 %v216
      %v381 = vunpack.c.l.b16 %v217
      %v382 = vunpack.c.h.b16 %v217
      %v383 = vunpack.c.l.b16 %v218
      %v384 = vunpack.c.h.b16 %v218
      %v385 = vunpack.c.l.b16 %v219
      %v386 = vunpack.c.h.b16 %v219
      %v387 = vunpack.c.l.b16 %v220
      %v388 = vunpack.c.h.b16 %v220
      %v389 = vunpack.c.l.b16 %v221
      %v390 = vunpack.c.h.b16 %v221
      %v391 = vunpack.c.l.b16 %v222
      %v392 = vunpack.c.h.b16 %v222
      %v393 = vunpack.c.l.b16 %v223
      %v394 = vunpack.c.h.b16 %v223
      %v395 = vunpack.c.l.b16 %v224
      %v396 = vunpack.c.h.b16 %v224
      %v397 = vunpack.c.l.b16 %v225
      %v398 = vunpack.c.h.b16 %v225
      %v399 = vunpack.c.l.b16 %v226
      %v400 = vunpack.c.h.b16 %v226
      %v401 = vunpack.c.l.b16 %v227
      %v402 = vunpack.c.h.b16 %v227
      %v403 = vunpack.c.l.b16 %v228
      %v404 = vunpack.c.h.b16 %v228
      %v405 = vunpack.c.l.b16 %v229
      %v406 = vunpack.c.h.b16 %v229
      %v407 = vunpack.c.l.b16 %v230
      %v408 = vunpack.c.h.b16 %v230
      %v409 = vunpack.c.l.b16 %v231
      %v410 = vunpack.c.h.b16 %v231
      %v411 = vunpack.c.l.b16 %v232
      %v412 = vunpack.c.h.b16 %v232
      %v413 = vunpack.c.l.b16 %v233
      %v414 = vunpack.c.h.b16 %v233
      %v415 = vunpack.c.l.b16 %v234
      %v416 = vunpack.c.h.b16 %v234
      %v417 = vunpack.c.l.b16 %v235
      %v418 = vunpack.c.h.b16 %v235
      %v419 = vunpack.c.l.b16 %v236
      %v420 = vunpack.c.h.b16 %v236
      %v421 = vunpack.c.l.b16 %v237
      %v422 = vunpack.c.h.b16 %v237
      %v423 = vunpack.c.l.b16 %v238
      %v424 = vunpack.c.h.b16 %v238
      %v425 = vunpack.c.l.b16 %v239
      %v426 = vunpack.c.h.b16 %v239
      %v427 = vunpack.c.l.b16 %v240
      %v428 = vunpack.c.h.b16 %v240
      %v429 = vunpack.c.l.b16 %v241
      %v430 = vunpack.c.h.b16 %v241
      %v431 = vunpack.c.l.b16 %v242
      %v432 = vunpack.c.h.b16 %v242
      %v433 = vunpack.c.l.b16 %v243
      %v434 = vunpack.c.h.b16 %v243
      %v435 = vunpack.c.l.b16 %v244
      %v436 = vunpack.c.h.b16 %v244
      %v437 = vunpack.c.l.b16 %v245
      %v438 = vunpack.c.h.b16 %v245
      %v439 = vunpack.c.l.b16 %v246
      %v440 = vunpack.c.h.b16 %v246
      %v441 = vunpack.c.l.b16 %v247
      %v442 = vunpack.c.h.b16 %v247
      %v443 = vunpack.c.l.b16 %v248
      %v444 = vunpack.c.h.b16 %v248
      %v445 = vunpack.c.l.b16 %v249
      %v446 = vunpack.c.h.b16 %v249
      %v447 = vunpack.c.l.b16 %v250
      %v448 = vunpack.c.h.b16 %v250
      %v449 = vunpack.c.l.b16 %v251
      %v450 = vunpack.c.h.b16 %v251
      %v451 = vunpack.c.l.b16 %v252
      %v452 = vunpack.c.h.b16 %v252
      %v453 = vunpack.c.l.b16 %v253
      %v454 = vunpack.c.h.b16 %v253
      %v455 = vunpack.c.l.b16 %v254
      %v456 = vunpack.c.h.b16 %v254
      %v457 = vunpack.c.l.b16 %v255
      %v458 = vunpack.c.h.b16 %v255
      %v459 = vunpack.c.l.b16 %v256
      %v460 = vunpack.c.h.b16 %v256
      %v461 = vunpack.c.l.b16 %v257
      %v462 = vunpack.c.h.b16 %v257
      %v463 = vunpack.c.l.b16 %v258
      %v464 = vunpack.c.h.b16 %v258
      %v465 = vunpack.c.l.b16 %v259
      %v466 = vunpack.c.h.b16 %v259
      %v467 = vunpack.c.l.b16 %v260
      %v468 = vunpack.c.h.b16 %v260
      %v469 = vunpack.c.l.b16 %v261
      %v470 = vunpack.c.h.b16 %v261
      %v471 = vunpack.c.l.b16 %v262
      %v472 = vunpack.c.h.b16 %v262
      %v473 = vunpack.c.l.b16 %v263
      %v474 = vunpack.c.h.b16 %v263
      %v475 = vunpack.c.l.b16 %v264
      %v476 = vunpack.c.h.b16 %v264
      %v477 = vunpack.c.l.b16 %v265
      %v478 = vunpack.c.h.b16 %v265
      %v479 = vunpack.c.l.b16 %v266
      %v480 = vunpack.c.h.b16 %v266
      %v481 = vpack.c.b16 %v357, %v353
      %v482 = vpack.c.b16 %v358, %v354
      %v483 = vpack.c.b16 %v359, %v355
      %v484 = vpack.c.b16 %v360, %v356
      %v485 = vpack.c.b16 %v365, %v361
      %v486 = vpack.c.b16 %v366, %v362
      %v487 = vpack.c.b16 %v367, %v363
      %v488 = vpack.c.b16 %v368, %v364
      %v489 = vpack.c.b16 %v373, %v369
      %v490 = vpack.c.b16 %v374, %v370
      %v491 = vpack.c.b16 %v375, %v371
      %v492 = vpack.c.b16 %v376, %v372
      %v493 = vpack.c.b16 %v381, %v377
      %v494 = vpack.c.b16 %v382, %v378
      %v495 = vpack.c.b16 %v383, %v379
      %v496 = vpack.c.b16 %v384, %v380
      %v497 = vpack.c.b16 %v389, %v385
      %v498 = vpack.c.b16 %v390, %v386
      %v499 = vpack.c.b16 %v391, %v387
      %v500 = vpack.c.b16 %v392, %v388
      %v501 = vpack.c.b16 %v397, %v393
      %v502 = vpack.c.b16 %v398, %v394
      %v503 = vpack.c.b16 %v399, %v395
      %v504 = vpack.c.b16 %v400, %v396
      %v505 = vpack.c.b16 %v405, %v401
      %v506 = vpack.c.b16 %v406, %v402
      %v507 = vpack.c.b16 %v407, %v403
      %v508 = vpack.c.b16 %v408, %v404
      %v509 = vpack.c.b16 %v413, %v409
      %v510 = vpack.c.b16 %v414, %v410
      %v511 = vpack.c.b16 %v415, %v411
      %v512 = vpack.c.b16 %v416, %v412
      %v513 = vpack.c.b16 %v421, %v417
      %v514 = vpack.c.b16 %v422, %v418
      %v515 = vpack.c.b16 %v423, %v419
      %v516 = vpack.c.b16 %v424, %v420
      %v517 = vpack.c.b16 %v429, %v425
      %v518 = vpack.c.b16 %v430, %v426
      %v519 = vpack.c.b16 %v431, %v427
      %v520 = vpack.c.b16 %v432, %v428
      %v521 = vpack.c.b16 %v437, %v433
      %v522 = vpack.c.b16 %v438, %v434
      %v523 = vpack.c.b16 %v439, %v435
      %v524 = vpack.c.b16 %v440, %v436
      %v525 = vpack.c.b16 %v445, %v441
      %v526 = vpack.c.b16 %v446, %v442
      %v527 = vpack.c.b16 %v447, %v443
      %v528 = vpack.c.b16 %v448, %v444
      %v529 = vpack.c.b16 %v453, %v449
      %v530 = vpack.c.b16 %v454, %v450
      %v531 = vpack.c.b16 %v455, %v451
      %v532 = vpack.c.b16 %v456, %v452
      %v533 = vpack.c.b16 %v461, %v457
      %v534 = vpack.c.b16 %v462, %v458
      %v535 = vpack.c.b16 %v463, %v459
      %v536 = vpack.c.b16 %v464, %v460
      %v537 = vpack.c.b16 %v469, %v465
      %v538 = vpack.c.b16 %v470, %v466
      %v539 = vpack.c.b16 %v471, %v467
      %v540 = vpack.c.b16 %v472, %v468
      %v541 = vpack.c.b16 %v477, %v473
      %v542 = vpack.c.b16 %v478, %v474
      %v543 = vpack.c.b16 %v479, %v475
      %v544 = vpack.c.b16 %v480, %v476
      %609 = vmatprep.subr.bf16.mxu0 %v482
      %610 = vmatpush1.bf16.msra.mxu0 %v481
      %611 = vmatprep.subr.bf16.mxu0 %v486
      %612 = vmatpush1.bf16.msra.mxu0 %v485
      %613 = vmatprep.subr.bf16.mxu0 %v490
      %614 = vmatpush1.bf16.msra.mxu0 %v489
      %615 = vmatprep.subr.bf16.mxu0 %v494
      %616 = vmatpush1.bf16.msra.mxu0 %v493
      %617 = vmatprep.subr.bf16.mxu0 %v498
      %618 = vmatpush1.bf16.msra.mxu0 %v497
      %619 = vmatprep.subr.bf16.mxu0 %v502
      %620 = vmatpush1.bf16.msra.mxu0 %v501
      %621 = vmatprep.subr.bf16.mxu0 %v506
      %622 = vmatpush1.bf16.msra.mxu0 %v505
      %623 = vmatprep.subr.bf16.mxu0 %v510
      %624 = vmatpush1.bf16.msra.mxu0 %v509
      %625 = vmatprep.subr.bf16.mxu0 %v514
      %626 = vmatpush1.bf16.msra.mxu0 %v513
      %627 = vmatprep.subr.bf16.mxu0 %v518
      %628 = vmatpush1.bf16.msra.mxu0 %v517
      %629 = vmatprep.subr.bf16.mxu0 %v522
      %630 = vmatpush1.bf16.msra.mxu0 %v521
      %631 = vmatprep.subr.bf16.mxu0 %v526
      %632 = vmatpush1.bf16.msra.mxu0 %v525
      %633 = vmatprep.subr.bf16.mxu0 %v530
      %634 = vmatpush1.bf16.msra.mxu0 %v529
      %635 = vmatprep.subr.bf16.mxu0 %v534
      %636 = vmatpush1.bf16.msra.mxu0 %v533
      %637 = vmatprep.subr.bf16.mxu0 %v538
      %638 = vmatpush1.bf16.msra.mxu0 %v537
      %639 = vmatprep.subr.bf16.mxu0 %v542
      %640 = vmatpush1.bf16.msra.mxu0 %v541
      %641 = vmatprep.mubr.bf16.mxu0 %v202
      %642 = vmatmul.mubr.bf16.gmra.mrb[0].mxu0 %v201
      %v643 = vpop.f32.mrb[0].mxu0
      %v644 = vadd.f32 %v272, %v643
      %v645 = vpop.f32.mrb[0].mxu0
      %v646 = vadd.f32 %v276, %v645
      %v647 = vpop.f32.mrb[0].mxu0
      %v648 = vpop.f32.mrb[0].mxu0
      %649 = vdwg.mxu0
      %650 = vmatprep.subr.bf16.mxu0 %v484
      %651 = vmatpush1.bf16.msra.mxu0 %v483
      %652 = vmatprep.subr.bf16.mxu0 %v488
      %653 = vmatpush1.bf16.msra.mxu0 %v487
      %654 = vmatprep.subr.bf16.mxu0 %v492
      %655 = vmatpush1.bf16.msra.mxu0 %v491
      %656 = vmatprep.subr.bf16.mxu0 %v496
      %657 = vmatpush1.bf16.msra.mxu0 %v495
      %658 = vmatprep.subr.bf16.mxu0 %v500
      %659 = vmatpush1.bf16.msra.mxu0 %v499
      %660 = vmatprep.subr.bf16.mxu0 %v504
      %661 = vmatpush1.bf16.msra.mxu0 %v503
      %662 = vmatprep.subr.bf16.mxu0 %v508
      %663 = vmatpush1.bf16.msra.mxu0 %v507
      %664 = vmatprep.subr.bf16.mxu0 %v512
      %665 = vmatpush1.bf16.msra.mxu0 %v511
      %666 = vmatprep.subr.bf16.mxu0 %v516
      %667 = vmatpush1.bf16.msra.mxu0 %v515
      %668 = vmatprep.subr.bf16.mxu0 %v520
      %669 = vmatpush1.bf16.msra.mxu0 %v519
      %670 = vmatprep.subr.bf16.mxu0 %v524
      %671 = vmatpush1.bf16.msra.mxu0 %v523
      %672 = vmatprep.subr.bf16.mxu0 %v528
      %673 = vmatpush1.bf16.msra.mxu0 %v527
      %674 = vmatprep.subr.bf16.mxu0 %v532
      %675 = vmatpush1.bf16.msra.mxu0 %v531
      %676 = vmatprep.subr.bf16.mxu0 %v536
      %677 = vmatpush1.bf16.msra.mxu0 %v535
      %678 = vmatprep.subr.bf16.mxu0 %v540
      %679 = vmatpush1.bf16.msra.mxu0 %v539
      %680 = vmatprep.subr.bf16.mxu0 %v544
      %681 = vmatpush1.bf16.msra.mxu0 %v543
      %682 = vmatprep.mubr.bf16.mxu0 %v202
      %683 = vmatmul.mubr.bf16.gmra.mrb[0].mxu0 %v201
      %v684 = vpop.f32.mrb[0].mxu0
      %v685 = vadd.f32 %v280, %v684
      %v686 = vpop.f32.mrb[0].mxu0
      %v687 = vadd.f32 %v284, %v686
      %v688 = vpop.f32.mrb[0].mxu0
      %v689 = vpop.f32.mrb[0].mxu0
      %690 = vdwg.mxu0
      %v691 = vmax.f32 %v644, 0.0
      %v692 = vmax.f32 %v646, 0.0
      %v693 = vmax.f32 %v685, 0.0
      %v694 = vmax.f32 %v687, 0.0
      %v695 = vpack.c.bf16 %v691, %v691
      %v696 = vpack.c.bf16 %v692, %v692
      %v697 = vpack.c.bf16 %v693, %v693
      %v698 = vpack.c.bf16 %v694, %v694
      %v699 = vld [vmem:[#allocation11] sm:$0xff]
      %v700 = vld [vmem:[#allocation11 + $0x8] sm:$0xff]
      %v701 = vld [vmem:[#allocation11 + $0x10] sm:$0xff]
      %v702 = vld [vmem:[#allocation11 + $0x18] sm:$0xff]
      %v703 = vld [vmem:[#allocation11 + $0x20] sm:$0xff]
      %v704 = vld [vmem:[#allocation11 + $0x28] sm:$0xff]
      %v705 = vld [vmem:[#allocation11 + $0x30] sm:$0xff]
      %v706 = vld [vmem:[#allocation11 + $0x38] sm:$0xff]
      %v707 = vld [vmem:[#allocation11 + $0x40] sm:$0xff]
      %v708 = vld [vmem:[#allocation11 + $0x48] sm:$0xff]
      %v709 = vld [vmem:[#allocation11 + $0x50] sm:$0xff]
      %v710 = vld [vmem:[#allocation11 + $0x58] sm:$0xff]
      %v711 = vld [vmem:[#allocation11 + $0x60] sm:$0xff]
      %v712 = vld [vmem:[#allocation11 + $0x68] sm:$0xff]
      %v713 = vld [vmem:[#allocation11 + $0x70] sm:$0xff]
      %v714 = vld [vmem:[#allocation11 + $0x78] sm:$0xff]
      %v715 = vld [vmem:[#allocation11 + $0x80] sm:$0xff]
      %v716 = vld [vmem:[#allocation11 + $0x88] sm:$0xff]
      %v717 = vld [vmem:[#allocation11 + $0x90] sm:$0xff]
      %v718 = vld [vmem:[#allocation11 + $0x98] sm:$0xff]
      %v719 = vld [vmem:[#allocation11 + $0xa0] sm:$0xff]
      %v720 = vld [vmem:[#allocation11 + $0xa8] sm:$0xff]
      %v721 = vld [vmem:[#allocation11 + $0xb0] sm:$0xff]
      %v722 = vld [vmem:[#allocation11 + $0xb8] sm:$0xff]
      %v723 = vld [vmem:[#allocation11 + $0xc0] sm:$0xff]
      %v724 = vld [vmem:[#allocation11 + $0xc8] sm:$0xff]
      %v725 = vld [vmem:[#allocation11 + $0xd0] sm:$0xff]
      %v726 = vld [vmem:[#allocation11 + $0xd8] sm:$0xff]
      %v727 = vld [vmem:[#allocation11 + $0xe0] sm:$0xff]
      %v728 = vld [vmem:[#allocation11 + $0xe8] sm:$0xff]
      %v729 = vld [vmem:[#allocation11 + $0xf0] sm:$0xff]
      %v730 = vld [vmem:[#allocation11 + $0xf8] sm:$0xff]
      %v731 = vld [vmem:[#allocation11 + $0x100] sm:$0xff]
      %v732 = vld [vmem:[#allocation11 + $0x108] sm:$0xff]
      %v733 = vld [vmem:[#allocation11 + $0x110] sm:$0xff]
      %v734 = vld [vmem:[#allocation11 + $0x118] sm:$0xff]
      %v735 = vld [vmem:[#allocation11 + $0x120] sm:$0xff]
      %v736 = vld [vmem:[#allocation11 + $0x128] sm:$0xff]
      %v737 = vld [vmem:[#allocation11 + $0x130] sm:$0xff]
      %v738 = vld [vmem:[#allocation11 + $0x138] sm:$0xff]
      %v739 = vld [vmem:[#allocation11 + $0x140] sm:$0xff]
      %v740 = vld [vmem:[#allocation11 + $0x148] sm:$0xff]
      %v741 = vld [vmem:[#allocation11 + $0x150] sm:$0xff]
      %v742 = vld [vmem:[#allocation11 + $0x158] sm:$0xff]
      %v743 = vld [vmem:[#allocation11 + $0x160] sm:$0xff]
      %v744 = vld [vmem:[#allocation11 + $0x168] sm:$0xff]
      %v745 = vld [vmem:[#allocation11 + $0x170] sm:$0xff]
      %v746 = vld [vmem:[#allocation11 + $0x178] sm:$0xff]
      %v747 = vld [vmem:[#allocation11 + $0x180] sm:$0xff]
      %v748 = vld [vmem:[#allocation11 + $0x188] sm:$0xff]
      %v749 = vld [vmem:[#allocation11 + $0x190] sm:$0xff]
      %v750 = vld [vmem:[#allocation11 + $0x198] sm:$0xff]
      %v751 = vld [vmem:[#allocation11 + $0x1a0] sm:$0xff]
      %v752 = vld [vmem:[#allocation11 + $0x1a8] sm:$0xff]
      %v753 = vld [vmem:[#allocation11 + $0x1b0] sm:$0xff]
      %v754 = vld [vmem:[#allocation11 + $0x1b8] sm:$0xff]
      %v755 = vld [vmem:[#allocation11 + $0x1c0] sm:$0xff]
      %v756 = vld [vmem:[#allocation11 + $0x1c8] sm:$0xff]
      %v757 = vld [vmem:[#allocation11 + $0x1d0] sm:$0xff]
      %v758 = vld [vmem:[#allocation11 + $0x1d8] sm:$0xff]
      %v759 = vld [vmem:[#allocation11 + $0x1e0] sm:$0xff]
      %v760 = vld [vmem:[#allocation11 + $0x1e8] sm:$0xff]
      %v761 = vld [vmem:[#allocation11 + $0x1f0] sm:$0xff]
      %v762 = vld [vmem:[#allocation11 + $0x1f8] sm:$0xff]
      %v763 = vld [vmem:[#allocation11 + $0x200] sm:$0xff]
      %v764 = vld [vmem:[#allocation11 + $0x208] sm:$0xff]
      %v765 = vld [vmem:[#allocation11 + $0x210] sm:$0xff]
      %v766 = vld [vmem:[#allocation11 + $0x218] sm:$0xff]
      %v767 = vld [vmem:[#allocation11 + $0x220] sm:$0xff]
      %v768 = vld [vmem:[#allocation11 + $0x228] sm:$0xff]
      %v769 = vld [vmem:[#allocation11 + $0x230] sm:$0xff]
      %v770 = vld [vmem:[#allocation11 + $0x238] sm:$0xff]
      %v771 = vld [vmem:[#allocation11 + $0x240] sm:$0xff]
      %v772 = vld [vmem:[#allocation11 + $0x248] sm:$0xff]
      %v773 = vld [vmem:[#allocation11 + $0x250] sm:$0xff]
      %v774 = vld [vmem:[#allocation11 + $0x258] sm:$0xff]
      %v775 = vld [vmem:[#allocation11 + $0x260] sm:$0xff]
      %v776 = vld [vmem:[#allocation11 + $0x268] sm:$0xff]
      %v777 = vld [vmem:[#allocation11 + $0x270] sm:$0xff]
      %v778 = vld [vmem:[#allocation11 + $0x278] sm:$0xff]
      %v779 = vld [vmem:[#allocation11 + $0x280] sm:$0xff]
      %v780 = vld [vmem:[#allocation11 + $0x288] sm:$0xff]
      %v781 = vld [vmem:[#allocation11 + $0x290] sm:$0xff]
      %v782 = vld [vmem:[#allocation11 + $0x298] sm:$0xff]
      %v783 = vld [vmem:[#allocation11 + $0x2a0] sm:$0xff]
      %v784 = vld [vmem:[#allocation11 + $0x2a8] sm:$0xff]
      %v785 = vld [vmem:[#allocation11 + $0x2b0] sm:$0xff]
      %v786 = vld [vmem:[#allocation11 + $0x2b8] sm:$0xff]
      %v787 = vld [vmem:[#allocation11 + $0x2c0] sm:$0xff]
      %v788 = vld [vmem:[#allocation11 + $0x2c8] sm:$0xff]
      %v789 = vld [vmem:[#allocation11 + $0x2d0] sm:$0xff]
      %v790 = vld [vmem:[#allocation11 + $0x2d8] sm:$0xff]
      %v791 = vld [vmem:[#allocation11 + $0x2e0] sm:$0xff]
      %v792 = vld [vmem:[#allocation11 + $0x2e8] sm:$0xff]
      %v793 = vld [vmem:[#allocation11 + $0x2f0] sm:$0xff]
      %v794 = vld [vmem:[#allocation11 + $0x2f8] sm:$0xff]
      %v795 = vld [vmem:[#allocation11 + $0x300] sm:$0xff]
      %v796 = vld [vmem:[#allocation11 + $0x308] sm:$0xff]
      %v797 = vld [vmem:[#allocation11 + $0x310] sm:$0xff]
      %v798 = vld [vmem:[#allocation11 + $0x318] sm:$0xff]
      %v799 = vld [vmem:[#allocation11 + $0x320] sm:$0xff]
      %v800 = vld [vmem:[#allocation11 + $0x328] sm:$0xff]
      %v801 = vld [vmem:[#allocation11 + $0x330] sm:$0xff]
      %v802 = vld [vmem:[#allocation11 + $0x338] sm:$0xff]
      %v803 = vld [vmem:[#allocation11 + $0x340] sm:$0xff]
      %v804 = vld [vmem:[#allocation11 + $0x348] sm:$0xff]
      %v805 = vld [vmem:[#allocation11 + $0x350] sm:$0xff]
      %v806 = vld [vmem:[#allocation11 + $0x358] sm:$0xff]
      %v807 = vld [vmem:[#allocation11 + $0x360] sm:$0xff]
      %v808 = vld [vmem:[#allocation11 + $0x368] sm:$0xff]
      %v809 = vld [vmem:[#allocation11 + $0x370] sm:$0xff]
      %v810 = vld [vmem:[#allocation11 + $0x378] sm:$0xff]
      %v811 = vld [vmem:[#allocation11 + $0x380] sm:$0xff]
      %v812 = vld [vmem:[#allocation11 + $0x388] sm:$0xff]
      %v813 = vld [vmem:[#allocation11 + $0x390] sm:$0xff]
      %v814 = vld [vmem:[#allocation11 + $0x398] sm:$0xff]
      %v815 = vld [vmem:[#allocation11 + $0x3a0] sm:$0xff]
      %v816 = vld [vmem:[#allocation11 + $0x3a8] sm:$0xff]
      %v817 = vld [vmem:[#allocation11 + $0x3b0] sm:$0xff]
      %v818 = vld [vmem:[#allocation11 + $0x3b8] sm:$0xff]
      %v819 = vld [vmem:[#allocation11 + $0x3c0] sm:$0xff]
      %v820 = vld [vmem:[#allocation11 + $0x3c8] sm:$0xff]
      %v821 = vld [vmem:[#allocation11 + $0x3d0] sm:$0xff]
      %v822 = vld [vmem:[#allocation11 + $0x3d8] sm:$0xff]
      %v823 = vld [vmem:[#allocation11 + $0x3e0] sm:$0xff]
      %v824 = vld [vmem:[#allocation11 + $0x3e8] sm:$0xff]
      %v825 = vld [vmem:[#allocation11 + $0x3f0] sm:$0xff]
      %v826 = vld [vmem:[#allocation11 + $0x3f8] sm:$0xff]
      %v827 = vld [vmem:[#allocation11 + $0x400] sm:$0xff]
      %v828 = vld [vmem:[#allocation11 + $0x408] sm:$0xff]
      %v829 = vld [vmem:[#allocation11 + $0x410] sm:$0xff]
      %v830 = vld [vmem:[#allocation11 + $0x418] sm:$0xff]
      %v831 = vld [vmem:[#allocation11 + $0x420] sm:$0xff]
      %v832 = vld [vmem:[#allocation11 + $0x428] sm:$0xff]
      %v833 = vld [vmem:[#allocation11 + $0x430] sm:$0xff]
      %v834 = vld [vmem:[#allocation11 + $0x438] sm:$0xff]
      %v835 = vld [vmem:[#allocation11 + $0x440] sm:$0xff]
      %v836 = vld [vmem:[#allocation11 + $0x448] sm:$0xff]
      %v837 = vld [vmem:[#allocation11 + $0x450] sm:$0xff]
      %v838 = vld [vmem:[#allocation11 + $0x458] sm:$0xff]
      %v839 = vld [vmem:[#allocation11 + $0x460] sm:$0xff]
      %v840 = vld [vmem:[#allocation11 + $0x468] sm:$0xff]
      %v841 = vld [vmem:[#allocation11 + $0x470] sm:$0xff]
      %v842 = vld [vmem:[#allocation11 + $0x478] sm:$0xff]
      %v843 = vld [vmem:[#allocation11 + $0x480] sm:$0xff]
      %v844 = vld [vmem:[#allocation11 + $0x488] sm:$0xff]
      %v845 = vld [vmem:[#allocation11 + $0x490] sm:$0xff]
      %v846 = vld [vmem:[#allocation11 + $0x498] sm:$0xff]
      %v847 = vld [vmem:[#allocation11 + $0x4a0] sm:$0xff]
      %v848 = vld [vmem:[#allocation11 + $0x4a8] sm:$0xff]
      %v849 = vld [vmem:[#allocation11 + $0x4b0] sm:$0xff]
      %v850 = vld [vmem:[#allocation11 + $0x4b8] sm:$0xff]
      %v851 = vld [vmem:[#allocation11 + $0x4c0] sm:$0xff]
      %v852 = vld [vmem:[#allocation11 + $0x4c8] sm:$0xff]
      %v853 = vld [vmem:[#allocation11 + $0x4d0] sm:$0xff]
      %v854 = vld [vmem:[#allocation11 + $0x4d8] sm:$0xff]
      %v855 = vld [vmem:[#allocation11 + $0x4e0] sm:$0xff]
      %v856 = vld [vmem:[#allocation11 + $0x4e8] sm:$0xff]
      %v857 = vld [vmem:[#allocation11 + $0x4f0] sm:$0xff]
      %v858 = vld [vmem:[#allocation11 + $0x4f8] sm:$0xff]
      %v859 = vld [vmem:[#allocation11 + $0x500] sm:$0xff]
      %v860 = vld [vmem:[#allocation11 + $0x508] sm:$0xff]
      %v861 = vld [vmem:[#allocation11 + $0x510] sm:$0xff]
      %v862 = vld [vmem:[#allocation11 + $0x518] sm:$0xff]
      %v863 = vld [vmem:[#allocation11 + $0x520] sm:$0xff]
      %v864 = vld [vmem:[#allocation11 + $0x528] sm:$0xff]
      %v865 = vld [vmem:[#allocation11 + $0x530] sm:$0xff]
      %v866 = vld [vmem:[#allocation11 + $0x538] sm:$0xff]
      %v867 = vld [vmem:[#allocation11 + $0x540] sm:$0xff]
      %v868 = vld [vmem:[#allocation11 + $0x548] sm:$0xff]
      %v869 = vld [vmem:[#allocation11 + $0x550] sm:$0xff]
      %v870 = vld [vmem:[#allocation11 + $0x558] sm:$0xff]
      %v871 = vld [vmem:[#allocation11 + $0x560] sm:$0xff]
      %v872 = vld [vmem:[#allocation11 + $0x568] sm:$0xff]
      %v873 = vld [vmem:[#allocation11 + $0x570] sm:$0xff]
      %v874 = vld [vmem:[#allocation11 + $0x578] sm:$0xff]
      %v875 = vld [vmem:[#allocation11 + $0x580] sm:$0xff]
      %v876 = vld [vmem:[#allocation11 + $0x588] sm:$0xff]
      %v877 = vld [vmem:[#allocation11 + $0x590] sm:$0xff]
      %v878 = vld [vmem:[#allocation11 + $0x598] sm:$0xff]
      %v879 = vld [vmem:[#allocation11 + $0x5a0] sm:$0xff]
      %v880 = vld [vmem:[#allocation11 + $0x5a8] sm:$0xff]
      %v881 = vld [vmem:[#allocation11 + $0x5b0] sm:$0xff]
      %v882 = vld [vmem:[#allocation11 + $0x5b8] sm:$0xff]
      %v883 = vld [vmem:[#allocation11 + $0x5c0] sm:$0xff]
      %v884 = vld [vmem:[#allocation11 + $0x5c8] sm:$0xff]
      %v885 = vld [vmem:[#allocation11 + $0x5d0] sm:$0xff]
      %v886 = vld [vmem:[#allocation11 + $0x5d8] sm:$0xff]
      %v887 = vld [vmem:[#allocation11 + $0x5e0] sm:$0xff]
      %v888 = vld [vmem:[#allocation11 + $0x5e8] sm:$0xff]
      %v889 = vld [vmem:[#allocation11 + $0x5f0] sm:$0xff]
      %v890 = vld [vmem:[#allocation11 + $0x5f8] sm:$0xff]
      %v891 = vld [vmem:[#allocation11 + $0x600] sm:$0xff]
      %v892 = vld [vmem:[#allocation11 + $0x608] sm:$0xff]
      %v893 = vld [vmem:[#allocation11 + $0x610] sm:$0xff]
      %v894 = vld [vmem:[#allocation11 + $0x618] sm:$0xff]
      %v895 = vld [vmem:[#allocation11 + $0x620] sm:$0xff]
      %v896 = vld [vmem:[#allocation11 + $0x628] sm:$0xff]
      %v897 = vld [vmem:[#allocation11 + $0x630] sm:$0xff]
      %v898 = vld [vmem:[#allocation11 + $0x638] sm:$0xff]
      %v899 = vld [vmem:[#allocation11 + $0x640] sm:$0xff]
      %v900 = vld [vmem:[#allocation11 + $0x648] sm:$0xff]
      %v901 = vld [vmem:[#allocation11 + $0x650] sm:$0xff]
      %v902 = vld [vmem:[#allocation11 + $0x658] sm:$0xff]
      %v903 = vld [vmem:[#allocation11 + $0x660] sm:$0xff]
      %v904 = vld [vmem:[#allocation11 + $0x668] sm:$0xff]
      %v905 = vld [vmem:[#allocation11 + $0x670] sm:$0xff]
      %v906 = vld [vmem:[#allocation11 + $0x678] sm:$0xff]
      %v907 = vld [vmem:[#allocation11 + $0x680] sm:$0xff]
      %v908 = vld [vmem:[#allocation11 + $0x688] sm:$0xff]
      %v909 = vld [vmem:[#allocation11 + $0x690] sm:$0xff]
      %v910 = vld [vmem:[#allocation11 + $0x698] sm:$0xff]
      %v911 = vld [vmem:[#allocation11 + $0x6a0] sm:$0xff]
      %v912 = vld [vmem:[#allocation11 + $0x6a8] sm:$0xff]
      %v913 = vld [vmem:[#allocation11 + $0x6b0] sm:$0xff]
      %v914 = vld [vmem:[#allocation11 + $0x6b8] sm:$0xff]
      %v915 = vld [vmem:[#allocation11 + $0x6c0] sm:$0xff]
      %v916 = vld [vmem:[#allocation11 + $0x6c8] sm:$0xff]
      %v917 = vld [vmem:[#allocation11 + $0x6d0] sm:$0xff]
      %v918 = vld [vmem:[#allocation11 + $0x6d8] sm:$0xff]
      %v919 = vld [vmem:[#allocation11 + $0x6e0] sm:$0xff]
      %v920 = vld [vmem:[#allocation11 + $0x6e8] sm:$0xff]
      %v921 = vld [vmem:[#allocation11 + $0x6f0] sm:$0xff]
      %v922 = vld [vmem:[#allocation11 + $0x6f8] sm:$0xff]
      %v923 = vld [vmem:[#allocation11 + $0x700] sm:$0xff]
      %v924 = vld [vmem:[#allocation11 + $0x708] sm:$0xff]
      %v925 = vld [vmem:[#allocation11 + $0x710] sm:$0xff]
      %v926 = vld [vmem:[#allocation11 + $0x718] sm:$0xff]
      %v927 = vld [vmem:[#allocation11 + $0x720] sm:$0xff]
      %v928 = vld [vmem:[#allocation11 + $0x728] sm:$0xff]
      %v929 = vld [vmem:[#allocation11 + $0x730] sm:$0xff]
      %v930 = vld [vmem:[#allocation11 + $0x738] sm:$0xff]
      %v931 = vld [vmem:[#allocation11 + $0x740] sm:$0xff]
      %v932 = vld [vmem:[#allocation11 + $0x748] sm:$0xff]
      %v933 = vld [vmem:[#allocation11 + $0x750] sm:$0xff]
      %v934 = vld [vmem:[#allocation11 + $0x758] sm:$0xff]
      %v935 = vld [vmem:[#allocation11 + $0x760] sm:$0xff]
      %v936 = vld [vmem:[#allocation11 + $0x768] sm:$0xff]
      %v937 = vld [vmem:[#allocation11 + $0x770] sm:$0xff]
      %v938 = vld [vmem:[#allocation11 + $0x778] sm:$0xff]
      %v939 = vld [vmem:[#allocation11 + $0x780] sm:$0xff]
      %v940 = vld [vmem:[#allocation11 + $0x788] sm:$0xff]
      %v941 = vld [vmem:[#allocation11 + $0x790] sm:$0xff]
      %v942 = vld [vmem:[#allocation11 + $0x798] sm:$0xff]
      %v943 = vld [vmem:[#allocation11 + $0x7a0] sm:$0xff]
      %v944 = vld [vmem:[#allocation11 + $0x7a8] sm:$0xff]
      %v945 = vld [vmem:[#allocation11 + $0x7b0] sm:$0xff]
      %v946 = vld [vmem:[#allocation11 + $0x7b8] sm:$0xff]
      %v947 = vld [vmem:[#allocation11 + $0x7c0] sm:$0xff]
      %v948 = vld [vmem:[#allocation11 + $0x7c8] sm:$0xff]
      %v949 = vld [vmem:[#allocation11 + $0x7d0] sm:$0xff]
      %v950 = vld [vmem:[#allocation11 + $0x7d8] sm:$0xff]
      %v951 = vld [vmem:[#allocation11 + $0x7e0] sm:$0xff]
      %v952 = vld [vmem:[#allocation11 + $0x7e8] sm:$0xff]
      %v953 = vld [vmem:[#allocation11 + $0x7f0] sm:$0xff]
      %v954 = vld [vmem:[#allocation11 + $0x7f8] sm:$0xff]
      %v955 = vld [vmem:[%s6] sm:$0xff]
      %v957 = vlaneseq
      %v958 = vshrl.u32 %v957, 7
      %v959 = vsub.s32 0, %v958
      %v960 = vrot.slane %v955, %v959
      %v961 = vlaneseq
      %v962 = vshrl.u32 %v961, 7
      %v963 = vsub.s32 1, %v962
      %v964 = vrot.slane %v955, %v963
      %v965 = vlaneseq
      %v966 = vshrl.u32 %v965, 7
      %v967 = vsub.s32 2, %v966
      %v968 = vrot.slane %v955, %v967
      %v969 = vlaneseq
      %v970 = vshrl.u32 %v969, 7
      %v971 = vsub.s32 3, %v970
      %v972 = vrot.slane %v955, %v971
      %v973 = vlaneseq
      %v974 = vshrl.u32 %v973, 7
      %v975 = vsub.s32 4, %v974
      %v976 = vrot.slane %v955, %v975
      %v977 = vlaneseq
      %v978 = vshrl.u32 %v977, 7
      %v979 = vsub.s32 5, %v978
      %v980 = vrot.slane %v955, %v979
      %v981 = vlaneseq
      %v982 = vshrl.u32 %v981, 7
      %v983 = vsub.s32 6, %v982
      %v984 = vrot.slane %v955, %v983
      %v985 = vlaneseq
      %v986 = vshrl.u32 %v985, 7
      %v987 = vsub.s32 7, %v986
      %v988 = vrot.slane %v955, %v987
      %v1253 = vunpack.c.l.b16 %v699
      %v1254 = vunpack.c.h.b16 %v699
      %v1255 = vunpack.c.l.b16 %v700
      %v1256 = vunpack.c.h.b16 %v700
      %v1257 = vunpack.c.l.b16 %v701
      %v1258 = vunpack.c.h.b16 %v701
      %v1259 = vunpack.c.l.b16 %v702
      %v1260 = vunpack.c.h.b16 %v702
      %v1261 = vunpack.c.l.b16 %v703
      %v1262 = vunpack.c.h.b16 %v703
      %v1263 = vunpack.c.l.b16 %v704
      %v1264 = vunpack.c.h.b16 %v704
      %v1265 = vunpack.c.l.b16 %v705
      %v1266 = vunpack.c.h.b16 %v705
      %v1267 = vunpack.c.l.b16 %v706
      %v1268 = vunpack.c.h.b16 %v706
      %v1269 = vunpack.c.l.b16 %v707
      %v1270 = vunpack.c.h.b16 %v707
      %v1271 = vunpack.c.l.b16 %v708
      %v1272 = vunpack.c.h.b16 %v708
      %v1273 = vunpack.c.l.b16 %v709
      %v1274 = vunpack.c.h.b16 %v709
      %v1275 = vunpack.c.l.b16 %v710
      %v1276 = vunpack.c.h.b16 %v710
      %v1277 = vunpack.c.l.b16 %v711
      %v1278 = vunpack.c.h.b16 %v711
      %v1279 = vunpack.c.l.b16 %v712
      %v1280 = vunpack.c.h.b16 %v712
      %v1281 = vunpack.c.l.b16 %v713
      %v1282 = vunpack.c.h.b16 %v713
      %v1283 = vunpack.c.l.b16 %v714
      %v1284 = vunpack.c.h.b16 %v714
      %v1285 = vunpack.c.l.b16 %v715
      %v1286 = vunpack.c.h.b16 %v715
      %v1287 = vunpack.c.l.b16 %v716
      %v1288 = vunpack.c.h.b16 %v716
      %v1289 = vunpack.c.l.b16 %v717
      %v1290 = vunpack.c.h.b16 %v717
      %v1291 = vunpack.c.l.b16 %v718
      %v1292 = vunpack.c.h.b16 %v718
      %v1293 = vunpack.c.l.b16 %v719
      %v1294 = vunpack.c.h.b16 %v719
      %v1295 = vunpack.c.l.b16 %v720
      %v1296 = vunpack.c.h.b16 %v720
      %v1297 = vunpack.c.l.b16 %v721
      %v1298 = vunpack.c.h.b16 %v721
      %v1299 = vunpack.c.l.b16 %v722
      %v1300 = vunpack.c.h.b16 %v722
      %v1301 = vunpack.c.l.b16 %v723
      %v1302 = vunpack.c.h.b16 %v723
      %v1303 = vunpack.c.l.b16 %v724
      %v1304 = vunpack.c.h.b16 %v724
      %v1305 = vunpack.c.l.b16 %v725
      %v1306 = vunpack.c.h.b16 %v725
      %v1307 = vunpack.c.l.b16 %v726
      %v1308 = vunpack.c.h.b16 %v726
      %v1309 = vunpack.c.l.b16 %v727
      %v1310 = vunpack.c.h.b16 %v727
      %v1311 = vunpack.c.l.b16 %v728
      %v1312 = vunpack.c.h.b16 %v728
      %v1313 = vunpack.c.l.b16 %v729
      %v1314 = vunpack.c.h.b16 %v729
      %v1315 = vunpack.c.l.b16 %v730
      %v1316 = vunpack.c.h.b16 %v730
      %v1317 = vunpack.c.l.b16 %v731
      %v1318 = vunpack.c.h.b16 %v731
      %v1319 = vunpack.c.l.b16 %v732
      %v1320 = vunpack.c.h.b16 %v732
      %v1321 = vunpack.c.l.b16 %v733
      %v1322 = vunpack.c.h.b16 %v733
      %v1323 = vunpack.c.l.b16 %v734
      %v1324 = vunpack.c.h.b16 %v734
      %v1325 = vunpack.c.l.b16 %v735
      %v1326 = vunpack.c.h.b16 %v735
      %v1327 = vunpack.c.l.b16 %v736
      %v1328 = vunpack.c.h.b16 %v736
      %v1329 = vunpack.c.l.b16 %v737
      %v1330 = vunpack.c.h.b16 %v737
      %v1331 = vunpack.c.l.b16 %v738
      %v1332 = vunpack.c.h.b16 %v738
      %v1333 = vunpack.c.l.b16 %v739
      %v1334 = vunpack.c.h.b16 %v739
      %v1335 = vunpack.c.l.b16 %v740
      %v1336 = vunpack.c.h.b16 %v740
      %v1337 = vunpack.c.l.b16 %v741
      %v1338 = vunpack.c.h.b16 %v741
      %v1339 = vunpack.c.l.b16 %v742
      %v1340 = vunpack.c.h.b16 %v742
      %v1341 = vunpack.c.l.b16 %v743
      %v1342 = vunpack.c.h.b16 %v743
      %v1343 = vunpack.c.l.b16 %v744
      %v1344 = vunpack.c.h.b16 %v744
      %v1345 = vunpack.c.l.b16 %v745
      %v1346 = vunpack.c.h.b16 %v745
      %v1347 = vunpack.c.l.b16 %v746
      %v1348 = vunpack.c.h.b16 %v746
      %v1349 = vunpack.c.l.b16 %v747
      %v1350 = vunpack.c.h.b16 %v747
      %v1351 = vunpack.c.l.b16 %v748
      %v1352 = vunpack.c.h.b16 %v748
      %v1353 = vunpack.c.l.b16 %v749
      %v1354 = vunpack.c.h.b16 %v749
      %v1355 = vunpack.c.l.b16 %v750
      %v1356 = vunpack.c.h.b16 %v750
      %v1357 = vunpack.c.l.b16 %v751
      %v1358 = vunpack.c.h.b16 %v751
      %v1359 = vunpack.c.l.b16 %v752
      %v1360 = vunpack.c.h.b16 %v752
      %v1361 = vunpack.c.l.b16 %v753
      %v1362 = vunpack.c.h.b16 %v753
      %v1363 = vunpack.c.l.b16 %v754
      %v1364 = vunpack.c.h.b16 %v754
      %v1365 = vunpack.c.l.b16 %v755
      %v1366 = vunpack.c.h.b16 %v755
      %v1367 = vunpack.c.l.b16 %v756
      %v1368 = vunpack.c.h.b16 %v756
      %v1369 = vunpack.c.l.b16 %v757
      %v1370 = vunpack.c.h.b16 %v757
      %v1371 = vunpack.c.l.b16 %v758
      %v1372 = vunpack.c.h.b16 %v758
      %v1373 = vunpack.c.l.b16 %v759
      %v1374 = vunpack.c.h.b16 %v759
      %v1375 = vunpack.c.l.b16 %v760
      %v1376 = vunpack.c.h.b16 %v760
      %v1377 = vunpack.c.l.b16 %v761
      %v1378 = vunpack.c.h.b16 %v761
      %v1379 = vunpack.c.l.b16 %v762
      %v1380 = vunpack.c.h.b16 %v762
      %v1381 = vunpack.c.l.b16 %v763
      %v1382 = vunpack.c.h.b16 %v763
      %v1383 = vunpack.c.l.b16 %v764
      %v1384 = vunpack.c.h.b16 %v764
      %v1385 = vunpack.c.l.b16 %v765
      %v1386 = vunpack.c.h.b16 %v765
      %v1387 = vunpack.c.l.b16 %v766
      %v1388 = vunpack.c.h.b16 %v766
      %v1389 = vunpack.c.l.b16 %v767
      %v1390 = vunpack.c.h.b16 %v767
      %v1391 = vunpack.c.l.b16 %v768
      %v1392 = vunpack.c.h.b16 %v768
      %v1393 = vunpack.c.l.b16 %v769
      %v1394 = vunpack.c.h.b16 %v769
      %v1395 = vunpack.c.l.b16 %v770
      %v1396 = vunpack.c.h.b16 %v770
      %v1397 = vunpack.c.l.b16 %v771
      %v1398 = vunpack.c.h.b16 %v771
      %v1399 = vunpack.c.l.b16 %v772
      %v1400 = vunpack.c.h.b16 %v772
      %v1401 = vunpack.c.l.b16 %v773
      %v1402 = vunpack.c.h.b16 %v773
      %v1403 = vunpack.c.l.b16 %v774
      %v1404 = vunpack.c.h.b16 %v774
      %v1405 = vunpack.c.l.b16 %v775
      %v1406 = vunpack.c.h.b16 %v775
      %v1407 = vunpack.c.l.b16 %v776
      %v1408 = vunpack.c.h.b16 %v776
      %v1409 = vunpack.c.l.b16 %v777
      %v1410 = vunpack.c.h.b16 %v777
      %v1411 = vunpack.c.l.b16 %v778
      %v1412 = vunpack.c.h.b16 %v778
      %v1413 = vunpack.c.l.b16 %v779
      %v1414 = vunpack.c.h.b16 %v779
      %v1415 = vunpack.c.l.b16 %v780
      %v1416 = vunpack.c.h.b16 %v780
      %v1417 = vunpack.c.l.b16 %v781
      %v1418 = vunpack.c.h.b16 %v781
      %v1419 = vunpack.c.l.b16 %v782
      %v1420 = vunpack.c.h.b16 %v782
      %v1421 = vunpack.c.l.b16 %v783
      %v1422 = vunpack.c.h.b16 %v783
      %v1423 = vunpack.c.l.b16 %v784
      %v1424 = vunpack.c.h.b16 %v784
      %v1425 = vunpack.c.l.b16 %v785
      %v1426 = vunpack.c.h.b16 %v785
      %v1427 = vunpack.c.l.b16 %v786
      %v1428 = vunpack.c.h.b16 %v786
      %v1429 = vunpack.c.l.b16 %v787
      %v1430 = vunpack.c.h.b16 %v787
      %v1431 = vunpack.c.l.b16 %v788
      %v1432 = vunpack.c.h.b16 %v788
      %v1433 = vunpack.c.l.b16 %v789
      %v1434 = vunpack.c.h.b16 %v789
      %v1435 = vunpack.c.l.b16 %v790
      %v1436 = vunpack.c.h.b16 %v790
      %v1437 = vunpack.c.l.b16 %v791
      %v1438 = vunpack.c.h.b16 %v791
      %v1439 = vunpack.c.l.b16 %v792
      %v1440 = vunpack.c.h.b16 %v792
      %v1441 = vunpack.c.l.b16 %v793
      %v1442 = vunpack.c.h.b16 %v793
      %v1443 = vunpack.c.l.b16 %v794
      %v1444 = vunpack.c.h.b16 %v794
      %v1445 = vunpack.c.l.b16 %v795
      %v1446 = vunpack.c.h.b16 %v795
      %v1447 = vunpack.c.l.b16 %v796
      %v1448 = vunpack.c.h.b16 %v796
      %v1449 = vunpack.c.l.b16 %v797
      %v1450 = vunpack.c.h.b16 %v797
      %v1451 = vunpack.c.l.b16 %v798
      %v1452 = vunpack.c.h.b16 %v798
      %v1453 = vunpack.c.l.b16 %v799
      %v1454 = vunpack.c.h.b16 %v799
      %v1455 = vunpack.c.l.b16 %v800
      %v1456 = vunpack.c.h.b16 %v800
      %v1457 = vunpack.c.l.b16 %v801
      %v1458 = vunpack.c.h.b16 %v801
      %v1459 = vunpack.c.l.b16 %v802
      %v1460 = vunpack.c.h.b16 %v802
      %v1461 = vunpack.c.l.b16 %v803
      %v1462 = vunpack.c.h.b16 %v803
      %v1463 = vunpack.c.l.b16 %v804
      %v1464 = vunpack.c.h.b16 %v804
      %v1465 = vunpack.c.l.b16 %v805
      %v1466 = vunpack.c.h.b16 %v805
      %v1467 = vunpack.c.l.b16 %v806
      %v1468 = vunpack.c.h.b16 %v806
      %v1469 = vunpack.c.l.b16 %v807
      %v1470 = vunpack.c.h.b16 %v807
      %v1471 = vunpack.c.l.b16 %v808
      %v1472 = vunpack.c.h.b16 %v808
      %v1473 = vunpack.c.l.b16 %v809
      %v1474 = vunpack.c.h.b16 %v809
      %v1475 = vunpack.c.l.b16 %v810
      %v1476 = vunpack.c.h.b16 %v810
      %v1477 = vunpack.c.l.b16 %v811
      %v1478 = vunpack.c.h.b16 %v811
      %v1479 = vunpack.c.l.b16 %v812
      %v1480 = vunpack.c.h.b16 %v812
      %v1481 = vunpack.c.l.b16 %v813
      %v1482 = vunpack.c.h.b16 %v813
      %v1483 = vunpack.c.l.b16 %v814
      %v1484 = vunpack.c.h.b16 %v814
      %v1485 = vunpack.c.l.b16 %v815
      %v1486 = vunpack.c.h.b16 %v815
      %v1487 = vunpack.c.l.b16 %v816
      %v1488 = vunpack.c.h.b16 %v816
      %v1489 = vunpack.c.l.b16 %v817
      %v1490 = vunpack.c.h.b16 %v817
      %v1491 = vunpack.c.l.b16 %v818
      %v1492 = vunpack.c.h.b16 %v818
      %v1493 = vunpack.c.l.b16 %v819
      %v1494 = vunpack.c.h.b16 %v819
      %v1495 = vunpack.c.l.b16 %v820
      %v1496 = vunpack.c.h.b16 %v820
      %v1497 = vunpack.c.l.b16 %v821
      %v1498 = vunpack.c.h.b16 %v821
      %v1499 = vunpack.c.l.b16 %v822
      %v1500 = vunpack.c.h.b16 %v822
      %v1501 = vunpack.c.l.b16 %v823
      %v1502 = vunpack.c.h.b16 %v823
      %v1503 = vunpack.c.l.b16 %v824
      %v1504 = vunpack.c.h.b16 %v824
      %v1505 = vunpack.c.l.b16 %v825
      %v1506 = vunpack.c.h.b16 %v825
      %v1507 = vunpack.c.l.b16 %v826
      %v1508 = vunpack.c.h.b16 %v826
      %v1509 = vunpack.c.l.b16 %v827
      %v1510 = vunpack.c.h.b16 %v827
      %v1511 = vunpack.c.l.b16 %v828
      %v1512 = vunpack.c.h.b16 %v828
      %v1513 = vunpack.c.l.b16 %v829
      %v1514 = vunpack.c.h.b16 %v829
      %v1515 = vunpack.c.l.b16 %v830
      %v1516 = vunpack.c.h.b16 %v830
      %v1517 = vunpack.c.l.b16 %v831
      %v1518 = vunpack.c.h.b16 %v831
      %v1519 = vunpack.c.l.b16 %v832
      %v1520 = vunpack.c.h.b16 %v832
      %v1521 = vunpack.c.l.b16 %v833
      %v1522 = vunpack.c.h.b16 %v833
      %v1523 = vunpack.c.l.b16 %v834
      %v1524 = vunpack.c.h.b16 %v834
      %v1525 = vunpack.c.l.b16 %v835
      %v1526 = vunpack.c.h.b16 %v835
      %v1527 = vunpack.c.l.b16 %v836
      %v1528 = vunpack.c.h.b16 %v836
      %v1529 = vunpack.c.l.b16 %v837
      %v1530 = vunpack.c.h.b16 %v837
      %v1531 = vunpack.c.l.b16 %v838
      %v1532 = vunpack.c.h.b16 %v838
      %v1533 = vunpack.c.l.b16 %v839
      %v1534 = vunpack.c.h.b16 %v839
      %v1535 = vunpack.c.l.b16 %v840
      %v1536 = vunpack.c.h.b16 %v840
      %v1537 = vunpack.c.l.b16 %v841
      %v1538 = vunpack.c.h.b16 %v841
      %v1539 = vunpack.c.l.b16 %v842
      %v1540 = vunpack.c.h.b16 %v842
      %v1541 = vunpack.c.l.b16 %v843
      %v1542 = vunpack.c.h.b16 %v843
      %v1543 = vunpack.c.l.b16 %v844
      %v1544 = vunpack.c.h.b16 %v844
      %v1545 = vunpack.c.l.b16 %v845
      %v1546 = vunpack.c.h.b16 %v845
      %v1547 = vunpack.c.l.b16 %v846
      %v1548 = vunpack.c.h.b16 %v846
      %v1549 = vunpack.c.l.b16 %v847
      %v1550 = vunpack.c.h.b16 %v847
      %v1551 = vunpack.c.l.b16 %v848
      %v1552 = vunpack.c.h.b16 %v848
      %v1553 = vunpack.c.l.b16 %v849
      %v1554 = vunpack.c.h.b16 %v849
      %v1555 = vunpack.c.l.b16 %v850
      %v1556 = vunpack.c.h.b16 %v850
      %v1557 = vunpack.c.l.b16 %v851
      %v1558 = vunpack.c.h.b16 %v851
      %v1559 = vunpack.c.l.b16 %v852
      %v1560 = vunpack.c.h.b16 %v852
      %v1561 = vunpack.c.l.b16 %v853
      %v1562 = vunpack.c.h.b16 %v853
      %v1563 = vunpack.c.l.b16 %v854
      %v1564 = vunpack.c.h.b16 %v854
      %v1565 = vunpack.c.l.b16 %v855
      %v1566 = vunpack.c.h.b16 %v855
      %v1567 = vunpack.c.l.b16 %v856
      %v1568 = vunpack.c.h.b16 %v856
      %v1569 = vunpack.c.l.b16 %v857
      %v1570 = vunpack.c.h.b16 %v857
      %v1571 = vunpack.c.l.b16 %v858
      %v1572 = vunpack.c.h.b16 %v858
      %v1573 = vunpack.c.l.b16 %v859
      %v1574 = vunpack.c.h.b16 %v859
      %v1575 = vunpack.c.l.b16 %v860
      %v1576 = vunpack.c.h.b16 %v860
      %v1577 = vunpack.c.l.b16 %v861
      %v1578 = vunpack.c.h.b16 %v861
      %v1579 = vunpack.c.l.b16 %v862
      %v1580 = vunpack.c.h.b16 %v862
      %v1581 = vunpack.c.l.b16 %v863
      %v1582 = vunpack.c.h.b16 %v863
      %v1583 = vunpack.c.l.b16 %v864
      %v1584 = vunpack.c.h.b16 %v864
      %v1585 = vunpack.c.l.b16 %v865
      %v1586 = vunpack.c.h.b16 %v865
      %v1587 = vunpack.c.l.b16 %v866
      %v1588 = vunpack.c.h.b16 %v866
      %v1589 = vunpack.c.l.b16 %v867
      %v1590 = vunpack.c.h.b16 %v867
      %v1591 = vunpack.c.l.b16 %v868
      %v1592 = vunpack.c.h.b16 %v868
      %v1593 = vunpack.c.l.b16 %v869
      %v1594 = vunpack.c.h.b16 %v869
      %v1595 = vunpack.c.l.b16 %v870
      %v1596 = vunpack.c.h.b16 %v870
      %v1597 = vunpack.c.l.b16 %v871
      %v1598 = vunpack.c.h.b16 %v871
      %v1599 = vunpack.c.l.b16 %v872
      %v1600 = vunpack.c.h.b16 %v872
      %v1601 = vunpack.c.l.b16 %v873
      %v1602 = vunpack.c.h.b16 %v873
      %v1603 = vunpack.c.l.b16 %v874
      %v1604 = vunpack.c.h.b16 %v874
      %v1605 = vunpack.c.l.b16 %v875
      %v1606 = vunpack.c.h.b16 %v875
      %v1607 = vunpack.c.l.b16 %v876
      %v1608 = vunpack.c.h.b16 %v876
      %v1609 = vunpack.c.l.b16 %v877
      %v1610 = vunpack.c.h.b16 %v877
      %v1611 = vunpack.c.l.b16 %v878
      %v1612 = vunpack.c.h.b16 %v878
      %v1613 = vunpack.c.l.b16 %v879
      %v1614 = vunpack.c.h.b16 %v879
      %v1615 = vunpack.c.l.b16 %v880
      %v1616 = vunpack.c.h.b16 %v880
      %v1617 = vunpack.c.l.b16 %v881
      %v1618 = vunpack.c.h.b16 %v881
      %v1619 = vunpack.c.l.b16 %v882
      %v1620 = vunpack.c.h.b16 %v882
      %v1621 = vunpack.c.l.b16 %v883
      %v1622 = vunpack.c.h.b16 %v883
      %v1623 = vunpack.c.l.b16 %v884
      %v1624 = vunpack.c.h.b16 %v884
      %v1625 = vunpack.c.l.b16 %v885
      %v1626 = vunpack.c.h.b16 %v885
      %v1627 = vunpack.c.l.b16 %v886
      %v1628 = vunpack.c.h.b16 %v886
      %v1629 = vunpack.c.l.b16 %v887
      %v1630 = vunpack.c.h.b16 %v887
      %v1631 = vunpack.c.l.b16 %v888
      %v1632 = vunpack.c.h.b16 %v888
      %v1633 = vunpack.c.l.b16 %v889
      %v1634 = vunpack.c.h.b16 %v889
      %v1635 = vunpack.c.l.b16 %v890
      %v1636 = vunpack.c.h.b16 %v890
      %v1637 = vunpack.c.l.b16 %v891
      %v1638 = vunpack.c.h.b16 %v891
      %v1639 = vunpack.c.l.b16 %v892
      %v1640 = vunpack.c.h.b16 %v892
      %v1641 = vunpack.c.l.b16 %v893
      %v1642 = vunpack.c.h.b16 %v893
      %v1643 = vunpack.c.l.b16 %v894
      %v1644 = vunpack.c.h.b16 %v894
      %v1645 = vunpack.c.l.b16 %v895
      %v1646 = vunpack.c.h.b16 %v895
      %v1647 = vunpack.c.l.b16 %v896
      %v1648 = vunpack.c.h.b16 %v896
      %v1649 = vunpack.c.l.b16 %v897
      %v1650 = vunpack.c.h.b16 %v897
      %v1651 = vunpack.c.l.b16 %v898
      %v1652 = vunpack.c.h.b16 %v898
      %v1653 = vunpack.c.l.b16 %v899
      %v1654 = vunpack.c.h.b16 %v899
      %v1655 = vunpack.c.l.b16 %v900
      %v1656 = vunpack.c.h.b16 %v900
      %v1657 = vunpack.c.l.b16 %v901
      %v1658 = vunpack.c.h.b16 %v901
      %v1659 = vunpack.c.l.b16 %v902
      %v1660 = vunpack.c.h.b16 %v902
      %v1661 = vunpack.c.l.b16 %v903
      %v1662 = vunpack.c.h.b16 %v903
      %v1663 = vunpack.c.l.b16 %v904
      %v1664 = vunpack.c.h.b16 %v904
      %v1665 = vunpack.c.l.b16 %v905
      %v1666 = vunpack.c.h.b16 %v905
      %v1667 = vunpack.c.l.b16 %v906
      %v1668 = vunpack.c.h.b16 %v906
      %v1669 = vunpack.c.l.b16 %v907
      %v1670 = vunpack.c.h.b16 %v907
      %v1671 = vunpack.c.l.b16 %v908
      %v1672 = vunpack.c.h.b16 %v908
      %v1673 = vunpack.c.l.b16 %v909
      %v1674 = vunpack.c.h.b16 %v909
      %v1675 = vunpack.c.l.b16 %v910
      %v1676 = vunpack.c.h.b16 %v910
      %v1677 = vunpack.c.l.b16 %v911
      %v1678 = vunpack.c.h.b16 %v911
      %v1679 = vunpack.c.l.b16 %v912
      %v1680 = vunpack.c.h.b16 %v912
      %v1681 = vunpack.c.l.b16 %v913
      %v1682 = vunpack.c.h.b16 %v913
      %v1683 = vunpack.c.l.b16 %v914
      %v1684 = vunpack.c.h.b16 %v914
      %v1685 = vunpack.c.l.b16 %v915
      %v1686 = vunpack.c.h.b16 %v915
      %v1687 = vunpack.c.l.b16 %v916
      %v1688 = vunpack.c.h.b16 %v916
      %v1689 = vunpack.c.l.b16 %v917
      %v1690 = vunpack.c.h.b16 %v917
      %v1691 = vunpack.c.l.b16 %v918
      %v1692 = vunpack.c.h.b16 %v918
      %v1693 = vunpack.c.l.b16 %v919
      %v1694 = vunpack.c.h.b16 %v919
      %v1695 = vunpack.c.l.b16 %v920
      %v1696 = vunpack.c.h.b16 %v920
      %v1697 = vunpack.c.l.b16 %v921
      %v1698 = vunpack.c.h.b16 %v921
      %v1699 = vunpack.c.l.b16 %v922
      %v1700 = vunpack.c.h.b16 %v922
      %v1701 = vunpack.c.l.b16 %v923
      %v1702 = vunpack.c.h.b16 %v923
      %v1703 = vunpack.c.l.b16 %v924
      %v1704 = vunpack.c.h.b16 %v924
      %v1705 = vunpack.c.l.b16 %v925
      %v1706 = vunpack.c.h.b16 %v925
      %v1707 = vunpack.c.l.b16 %v926
      %v1708 = vunpack.c.h.b16 %v926
      %v1709 = vunpack.c.l.b16 %v927
      %v1710 = vunpack.c.h.b16 %v927
      %v1711 = vunpack.c.l.b16 %v928
      %v1712 = vunpack.c.h.b16 %v928
      %v1713 = vunpack.c.l.b16 %v929
      %v1714 = vunpack.c.h.b16 %v929
      %v1715 = vunpack.c.l.b16 %v930
      %v1716 = vunpack.c.h.b16 %v930
      %v1717 = vunpack.c.l.b16 %v931
      %v1718 = vunpack.c.h.b16 %v931
      %v1719 = vunpack.c.l.b16 %v932
      %v1720 = vunpack.c.h.b16 %v932
      %v1721 = vunpack.c.l.b16 %v933
      %v1722 = vunpack.c.h.b16 %v933
      %v1723 = vunpack.c.l.b16 %v934
      %v1724 = vunpack.c.h.b16 %v934
      %v1725 = vunpack.c.l.b16 %v935
      %v1726 = vunpack.c.h.b16 %v935
      %v1727 = vunpack.c.l.b16 %v936
      %v1728 = vunpack.c.h.b16 %v936
      %v1729 = vunpack.c.l.b16 %v937
      %v1730 = vunpack.c.h.b16 %v937
      %v1731 = vunpack.c.l.b16 %v938
      %v1732 = vunpack.c.h.b16 %v938
      %v1733 = vunpack.c.l.b16 %v939
      %v1734 = vunpack.c.h.b16 %v939
      %v1735 = vunpack.c.l.b16 %v940
      %v1736 = vunpack.c.h.b16 %v940
      %v1737 = vunpack.c.l.b16 %v941
      %v1738 = vunpack.c.h.b16 %v941
      %v1739 = vunpack.c.l.b16 %v942
      %v1740 = vunpack.c.h.b16 %v942
      %v1741 = vunpack.c.l.b16 %v943
      %v1742 = vunpack.c.h.b16 %v943
      %v1743 = vunpack.c.l.b16 %v944
      %v1744 = vunpack.c.h.b16 %v944
      %v1745 = vunpack.c.l.b16 %v945
      %v1746 = vunpack.c.h.b16 %v945
      %v1747 = vunpack.c.l.b16 %v946
      %v1748 = vunpack.c.h.b16 %v946
      %v1749 = vunpack.c.l.b16 %v947
      %v1750 = vunpack.c.h.b16 %v947
      %v1751 = vunpack.c.l.b16 %v948
      %v1752 = vunpack.c.h.b16 %v948
      %v1753 = vunpack.c.l.b16 %v949
      %v1754 = vunpack.c.h.b16 %v949
      %v1755 = vunpack.c.l.b16 %v950
      %v1756 = vunpack.c.h.b16 %v950
      %v1757 = vunpack.c.l.b16 %v951
      %v1758 = vunpack.c.h.b16 %v951
      %v1759 = vunpack.c.l.b16 %v952
      %v1760 = vunpack.c.h.b16 %v952
      %v1761 = vunpack.c.l.b16 %v953
      %v1762 = vunpack.c.h.b16 %v953
      %v1763 = vunpack.c.l.b16 %v954
      %v1764 = vunpack.c.h.b16 %v954
      %v1765 = vpack.c.b16 %v1261, %v1253
      %v1766 = vpack.c.b16 %v1262, %v1254
      %v1767 = vpack.c.b16 %v1263, %v1255
      %v1768 = vpack.c.b16 %v1264, %v1256
      %v1769 = vpack.c.b16 %v1265, %v1257
      %v1770 = vpack.c.b16 %v1266, %v1258
      %v1771 = vpack.c.b16 %v1267, %v1259
      %v1772 = vpack.c.b16 %v1268, %v1260
      %v1773 = vpack.c.b16 %v1277, %v1269
      %v1774 = vpack.c.b16 %v1278, %v1270
      %v1775 = vpack.c.b16 %v1279, %v1271
      %v1776 = vpack.c.b16 %v1280, %v1272
      %v1777 = vpack.c.b16 %v1281, %v1273
      %v1778 = vpack.c.b16 %v1282, %v1274
      %v1779 = vpack.c.b16 %v1283, %v1275
      %v1780 = vpack.c.b16 %v1284, %v1276
      %v1781 = vpack.c.b16 %v1293, %v1285
      %v1782 = vpack.c.b16 %v1294, %v1286
      %v1783 = vpack.c.b16 %v1295, %v1287
      %v1784 = vpack.c.b16 %v1296, %v1288
      %v1785 = vpack.c.b16 %v1297, %v1289
      %v1786 = vpack.c.b16 %v1298, %v1290
      %v1787 = vpack.c.b16 %v1299, %v1291
      %v1788 = vpack.c.b16 %v1300, %v1292
      %v1789 = vpack.c.b16 %v1309, %v1301
      %v1790 = vpack.c.b16 %v1310, %v1302
      %v1791 = vpack.c.b16 %v1311, %v1303
      %v1792 = vpack.c.b16 %v1312, %v1304
      %v1793 = vpack.c.b16 %v1313, %v1305
      %v1794 = vpack.c.b16 %v1314, %v1306
      %v1795 = vpack.c.b16 %v1315, %v1307
      %v1796 = vpack.c.b16 %v1316, %v1308
      %v1797 = vpack.c.b16 %v1325, %v1317
      %v1798 = vpack.c.b16 %v1326, %v1318
      %v1799 = vpack.c.b16 %v1327, %v1319
      %v1800 = vpack.c.b16 %v1328, %v1320
      %v1801 = vpack.c.b16 %v1329, %v1321
      %v1802 = vpack.c.b16 %v1330, %v1322
      %v1803 = vpack.c.b16 %v1331, %v1323
      %v1804 = vpack.c.b16 %v1332, %v1324
      %v1805 = vpack.c.b16 %v1341, %v1333
      %v1806 = vpack.c.b16 %v1342, %v1334
      %v1807 = vpack.c.b16 %v1343, %v1335
      %v1808 = vpack.c.b16 %v1344, %v1336
      %v1809 = vpack.c.b16 %v1345, %v1337
      %v1810 = vpack.c.b16 %v1346, %v1338
      %v1811 = vpack.c.b16 %v1347, %v1339
      %v1812 = vpack.c.b16 %v1348, %v1340
      %v1813 = vpack.c.b16 %v1357, %v1349
      %v1814 = vpack.c.b16 %v1358, %v1350
      %v1815 = vpack.c.b16 %v1359, %v1351
      %v1816 = vpack.c.b16 %v1360, %v1352
      %v1817 = vpack.c.b16 %v1361, %v1353
      %v1818 = vpack.c.b16 %v1362, %v1354
      %v1819 = vpack.c.b16 %v1363, %v1355
      %v1820 = vpack.c.b16 %v1364, %v1356
      %v1821 = vpack.c.b16 %v1373, %v1365
      %v1822 = vpack.c.b16 %v1374, %v1366
      %v1823 = vpack.c.b16 %v1375, %v1367
      %v1824 = vpack.c.b16 %v1376, %v1368
      %v1825 = vpack.c.b16 %v1377, %v1369
      %v1826 = vpack.c.b16 %v1378, %v1370
      %v1827 = vpack.c.b16 %v1379, %v1371
      %v1828 = vpack.c.b16 %v1380, %v1372
      %v1829 = vpack.c.b16 %v1389, %v1381
      %v1830 = vpack.c.b16 %v1390, %v1382
      %v1831 = vpack.c.b16 %v1391, %v1383
      %v1832 = vpack.c.b16 %v1392, %v1384
      %v1833 = vpack.c.b16 %v1393, %v1385
      %v1834 = vpack.c.b16 %v1394, %v1386
      %v1835 = vpack.c.b16 %v1395, %v1387
      %v1836 = vpack.c.b16 %v1396, %v1388
      %v1837 = vpack.c.b16 %v1405, %v1397
      %v1838 = vpack.c.b16 %v1406, %v1398
      %v1839 = vpack.c.b16 %v1407, %v1399
      %v1840 = vpack.c.b16 %v1408, %v1400
      %v1841 = vpack.c.b16 %v1409, %v1401
      %v1842 = vpack.c.b16 %v1410, %v1402
      %v1843 = vpack.c.b16 %v1411, %v1403
      %v1844 = vpack.c.b16 %v1412, %v1404
      %v1845 = vpack.c.b16 %v1421, %v1413
      %v1846 = vpack.c.b16 %v1422, %v1414
      %v1847 = vpack.c.b16 %v1423, %v1415
      %v1848 = vpack.c.b16 %v1424, %v1416
      %v1849 = vpack.c.b16 %v1425, %v1417
      %v1850 = vpack.c.b16 %v1426, %v1418
      %v1851 = vpack.c.b16 %v1427, %v1419
      %v1852 = vpack.c.b16 %v1428, %v1420
      %v1853 = vpack.c.b16 %v1437, %v1429
      %v1854 = vpack.c.b16 %v1438, %v1430
      %v1855 = vpack.c.b16 %v1439, %v1431
      %v1856 = vpack.c.b16 %v1440, %v1432
      %v1857 = vpack.c.b16 %v1441, %v1433
      %v1858 = vpack.c.b16 %v1442, %v1434
      %v1859 = vpack.c.b16 %v1443, %v1435
      %v1860 = vpack.c.b16 %v1444, %v1436
      %v1861 = vpack.c.b16 %v1453, %v1445
      %v1862 = vpack.c.b16 %v1454, %v1446
      %v1863 = vpack.c.b16 %v1455, %v1447
      %v1864 = vpack.c.b16 %v1456, %v1448
      %v1865 = vpack.c.b16 %v1457, %v1449
      %v1866 = vpack.c.b16 %v1458, %v1450
      %v1867 = vpack.c.b16 %v1459, %v1451
      %v1868 = vpack.c.b16 %v1460, %v1452
      %v1869 = vpack.c.b16 %v1469, %v1461
      %v1870 = vpack.c.b16 %v1470, %v1462
      %v1871 = vpack.c.b16 %v1471, %v1463
      %v1872 = vpack.c.b16 %v1472, %v1464
      %v1873 = vpack.c.b16 %v1473, %v1465
      %v1874 = vpack.c.b16 %v1474, %v1466
      %v1875 = vpack.c.b16 %v1475, %v1467
      %v1876 = vpack.c.b16 %v1476, %v1468
      %v1877 = vpack.c.b16 %v1485, %v1477
      %v1878 = vpack.c.b16 %v1486, %v1478
      %v1879 = vpack.c.b16 %v1487, %v1479
      %v1880 = vpack.c.b16 %v1488, %v1480
      %v1881 = vpack.c.b16 %v1489, %v1481
      %v1882 = vpack.c.b16 %v1490, %v1482
      %v1883 = vpack.c.b16 %v1491, %v1483
      %v1884 = vpack.c.b16 %v1492, %v1484
      %v1885 = vpack.c.b16 %v1501, %v1493
      %v1886 = vpack.c.b16 %v1502, %v1494
      %v1887 = vpack.c.b16 %v1503, %v1495
      %v1888 = vpack.c.b16 %v1504, %v1496
      %v1889 = vpack.c.b16 %v1505, %v1497
      %v1890 = vpack.c.b16 %v1506, %v1498
      %v1891 = vpack.c.b16 %v1507, %v1499
      %v1892 = vpack.c.b16 %v1508, %v1500
      %v1893 = vpack.c.b16 %v1517, %v1509
      %v1894 = vpack.c.b16 %v1518, %v1510
      %v1895 = vpack.c.b16 %v1519, %v1511
      %v1896 = vpack.c.b16 %v1520, %v1512
      %v1897 = vpack.c.b16 %v1521, %v1513
      %v1898 = vpack.c.b16 %v1522, %v1514
      %v1899 = vpack.c.b16 %v1523, %v1515
      %v1900 = vpack.c.b16 %v1524, %v1516
      %v1901 = vpack.c.b16 %v1533, %v1525
      %v1902 = vpack.c.b16 %v1534, %v1526
      %v1903 = vpack.c.b16 %v1535, %v1527
      %v1904 = vpack.c.b16 %v1536, %v1528
      %v1905 = vpack.c.b16 %v1537, %v1529
      %v1906 = vpack.c.b16 %v1538, %v1530
      %v1907 = vpack.c.b16 %v1539, %v1531
      %v1908 = vpack.c.b16 %v1540, %v1532
      %v1909 = vpack.c.b16 %v1549, %v1541
      %v1910 = vpack.c.b16 %v1550, %v1542
      %v1911 = vpack.c.b16 %v1551, %v1543
      %v1912 = vpack.c.b16 %v1552, %v1544
      %v1913 = vpack.c.b16 %v1553, %v1545
      %v1914 = vpack.c.b16 %v1554, %v1546
      %v1915 = vpack.c.b16 %v1555, %v1547
      %v1916 = vpack.c.b16 %v1556, %v1548
      %v1917 = vpack.c.b16 %v1565, %v1557
      %v1918 = vpack.c.b16 %v1566, %v1558
      %v1919 = vpack.c.b16 %v1567, %v1559
      %v1920 = vpack.c.b16 %v1568, %v1560
      %v1921 = vpack.c.b16 %v1569, %v1561
      %v1922 = vpack.c.b16 %v1570, %v1562
      %v1923 = vpack.c.b16 %v1571, %v1563
      %v1924 = vpack.c.b16 %v1572, %v1564
      %v1925 = vpack.c.b16 %v1581, %v1573
      %v1926 = vpack.c.b16 %v1582, %v1574
      %v1927 = vpack.c.b16 %v1583, %v1575
      %v1928 = vpack.c.b16 %v1584, %v1576
      %v1929 = vpack.c.b16 %v1585, %v1577
      %v1930 = vpack.c.b16 %v1586, %v1578
      %v1931 = vpack.c.b16 %v1587, %v1579
      %v1932 = vpack.c.b16 %v1588, %v1580
      %v1933 = vpack.c.b16 %v1597, %v1589
      %v1934 = vpack.c.b16 %v1598, %v1590
      %v1935 = vpack.c.b16 %v1599, %v1591
      %v1936 = vpack.c.b16 %v1600, %v1592
      %v1937 = vpack.c.b16 %v1601, %v1593
      %v1938 = vpack.c.b16 %v1602, %v1594
      %v1939 = vpack.c.b16 %v1603, %v1595
      %v1940 = vpack.c.b16 %v1604, %v1596
      %v1941 = vpack.c.b16 %v1613, %v1605
      %v1942 = vpack.c.b16 %v1614, %v1606
      %v1943 = vpack.c.b16 %v1615, %v1607
      %v1944 = vpack.c.b16 %v1616, %v1608
      %v1945 = vpack.c.b16 %v1617, %v1609
      %v1946 = vpack.c.b16 %v1618, %v1610
      %v1947 = vpack.c.b16 %v1619, %v1611
      %v1948 = vpack.c.b16 %v1620, %v1612
      %v1949 = vpack.c.b16 %v1629, %v1621
      %v1950 = vpack.c.b16 %v1630, %v1622
      %v1951 = vpack.c.b16 %v1631, %v1623
      %v1952 = vpack.c.b16 %v1632, %v1624
      %v1953 = vpack.c.b16 %v1633, %v1625
      %v1954 = vpack.c.b16 %v1634, %v1626
      %v1955 = vpack.c.b16 %v1635, %v1627
      %v1956 = vpack.c.b16 %v1636, %v1628
      %v1957 = vpack.c.b16 %v1645, %v1637
      %v1958 = vpack.c.b16 %v1646, %v1638
      %v1959 = vpack.c.b16 %v1647, %v1639
      %v1960 = vpack.c.b16 %v1648, %v1640
      %v1961 = vpack.c.b16 %v1649, %v1641
      %v1962 = vpack.c.b16 %v1650, %v1642
      %v1963 = vpack.c.b16 %v1651, %v1643
      %v1964 = vpack.c.b16 %v1652, %v1644
      %v1965 = vpack.c.b16 %v1661, %v1653
      %v1966 = vpack.c.b16 %v1662, %v1654
      %v1967 = vpack.c.b16 %v1663, %v1655
      %v1968 = vpack.c.b16 %v1664, %v1656
      %v1969 = vpack.c.b16 %v1665, %v1657
      %v1970 = vpack.c.b16 %v1666, %v1658
      %v1971 = vpack.c.b16 %v1667, %v1659
      %v1972 = vpack.c.b16 %v1668, %v1660
      %v1973 = vpack.c.b16 %v1677, %v1669
      %v1974 = vpack.c.b16 %v1678, %v1670
      %v1975 = vpack.c.b16 %v1679, %v1671
      %v1976 = vpack.c.b16 %v1680, %v1672
      %v1977 = vpack.c.b16 %v1681, %v1673
      %v1978 = vpack.c.b16 %v1682, %v1674
      %v1979 = vpack.c.b16 %v1683, %v1675
      %v1980 = vpack.c.b16 %v1684, %v1676
      %v1981 = vpack.c.b16 %v1693, %v1685
      %v1982 = vpack.c.b16 %v1694, %v1686
      %v1983 = vpack.c.b16 %v1695, %v1687
      %v1984 = vpack.c.b16 %v1696, %v1688
      %v1985 = vpack.c.b16 %v1697, %v1689
      %v1986 = vpack.c.b16 %v1698, %v1690
      %v1987 = vpack.c.b16 %v1699, %v1691
      %v1988 = vpack.c.b16 %v1700, %v1692
      %v1989 = vpack.c.b16 %v1709, %v1701
      %v1990 = vpack.c.b16 %v1710, %v1702
      %v1991 = vpack.c.b16 %v1711, %v1703
      %v1992 = vpack.c.b16 %v1712, %v1704
      %v1993 = vpack.c.b16 %v1713, %v1705
      %v1994 = vpack.c.b16 %v1714, %v1706
      %v1995 = vpack.c.b16 %v1715, %v1707
      %v1996 = vpack.c.b16 %v1716, %v1708
      %v1997 = vpack.c.b16 %v1725, %v1717
      %v1998 = vpack.c.b16 %v1726, %v1718
      %v1999 = vpack.c.b16 %v1727, %v1719
      %v2000 = vpack.c.b16 %v1728, %v1720
      %v2001 = vpack.c.b16 %v1729, %v1721
      %v2002 = vpack.c.b16 %v1730, %v1722
      %v2003 = vpack.c.b16 %v1731, %v1723
      %v2004 = vpack.c.b16 %v1732, %v1724
      %v2005 = vpack.c.b16 %v1741, %v1733
      %v2006 = vpack.c.b16 %v1742, %v1734
      %v2007 = vpack.c.b16 %v1743, %v1735
      %v2008 = vpack.c.b16 %v1744, %v1736
      %v2009 = vpack.c.b16 %v1745, %v1737
      %v2010 = vpack.c.b16 %v1746, %v1738
      %v2011 = vpack.c.b16 %v1747, %v1739
      %v2012 = vpack.c.b16 %v1748, %v1740
      %v2013 = vpack.c.b16 %v1757, %v1749
      %v2014 = vpack.c.b16 %v1758, %v1750
      %v2015 = vpack.c.b16 %v1759, %v1751
      %v2016 = vpack.c.b16 %v1760, %v1752
      %v2017 = vpack.c.b16 %v1761, %v1753
      %v2018 = vpack.c.b16 %v1762, %v1754
      %v2019 = vpack.c.b16 %v1763, %v1755
      %v2020 = vpack.c.b16 %v1764, %v1756
      %2277 = vmatprep.subr.bf16.mxu0 %v1766
      %2278 = vmatpush1.bf16.msra.mxu0 %v1765
      %2279 = vmatprep.subr.bf16.mxu0 %v1774
      %2280 = vmatpush1.bf16.msra.mxu0 %v1773
      %2281 = vmatprep.subr.bf16.mxu0 %v1782
      %2282 = vmatpush1.bf16.msra.mxu0 %v1781
      %2283 = vmatprep.subr.bf16.mxu0 %v1790
      %2284 = vmatpush1.bf16.msra.mxu0 %v1789
      %2285 = vmatprep.subr.bf16.mxu0 %v1798
      %2286 = vmatpush1.bf16.msra.mxu0 %v1797
      %2287 = vmatprep.subr.bf16.mxu0 %v1806
      %2288 = vmatpush1.bf16.msra.mxu0 %v1805
      %2289 = vmatprep.subr.bf16.mxu0 %v1814
      %2290 = vmatpush1.bf16.msra.mxu0 %v1813
      %2291 = vmatprep.subr.bf16.mxu0 %v1822
      %2292 = vmatpush1.bf16.msra.mxu0 %v1821
      %2293 = vmatprep.subr.bf16.mxu0 %v1830
      %2294 = vmatpush1.bf16.msra.mxu0 %v1829
      %2295 = vmatprep.subr.bf16.mxu0 %v1838
      %2296 = vmatpush1.bf16.msra.mxu0 %v1837
      %2297 = vmatprep.subr.bf16.mxu0 %v1846
      %2298 = vmatpush1.bf16.msra.mxu0 %v1845
      %2299 = vmatprep.subr.bf16.mxu0 %v1854
      %2300 = vmatpush1.bf16.msra.mxu0 %v1853
      %2301 = vmatprep.subr.bf16.mxu0 %v1862
      %2302 = vmatpush1.bf16.msra.mxu0 %v1861
      %2303 = vmatprep.subr.bf16.mxu0 %v1870
      %2304 = vmatpush1.bf16.msra.mxu0 %v1869
      %2305 = vmatprep.subr.bf16.mxu0 %v1878
      %2306 = vmatpush1.bf16.msra.mxu0 %v1877
      %2307 = vmatprep.subr.bf16.mxu0 %v1886
      %2308 = vmatpush1.bf16.msra.mxu0 %v1885
      %2309 = vmatprep.mubr.bf16.mxu0 %v696
      %2310 = vmatmul.mubr.bf16.gmra.mrb[0].mxu0 %v695
      %v2311 = vpop.f32.mrb[0].mxu0
      %v2312 = vadd.f32 %v960, %v2311
      %v2313 = vpop.f32.mrb[0].mxu0
      %v2314 = vadd.f32 %v964, %v2313
      %v2315 = vpop.f32.mrb[0].mxu0
      %v2316 = vpop.f32.mrb[0].mxu0
      %2317 = vdwg.mxu0
      %2318 = vmatprep.subr.bf16.mxu0 %v1894
      %2319 = vmatpush1.bf16.msra.mxu0 %v1893
      %2320 = vmatprep.subr.bf16.mxu0 %v1902
      %2321 = vmatpush1.bf16.msra.mxu0 %v1901
      %2322 = vmatprep.subr.bf16.mxu0 %v1910
      %2323 = vmatpush1.bf16.msra.mxu0 %v1909
      %2324 = vmatprep.subr.bf16.mxu0 %v1918
      %2325 = vmatpush1.bf16.msra.mxu0 %v1917
      %2326 = vmatprep.subr.bf16.mxu0 %v1926
      %2327 = vmatpush1.bf16.msra.mxu0 %v1925
      %2328 = vmatprep.subr.bf16.mxu0 %v1934
      %2329 = vmatpush1.bf16.msra.mxu0 %v1933
      %2330 = vmatprep.subr.bf16.mxu0 %v1942
      %2331 = vmatpush1.bf16.msra.mxu0 %v1941
      %2332 = vmatprep.subr.bf16.mxu0 %v1950
      %2333 = vmatpush1.bf16.msra.mxu0 %v1949
      %2334 = vmatprep.subr.bf16.mxu0 %v1958
      %2335 = vmatpush1.bf16.msra.mxu0 %v1957
      %2336 = vmatprep.subr.bf16.mxu0 %v1966
      %2337 = vmatpush1.bf16.msra.mxu0 %v1965
      %2338 = vmatprep.subr.bf16.mxu0 %v1974
      %2339 = vmatpush1.bf16.msra.mxu0 %v1973
      %2340 = vmatprep.subr.bf16.mxu0 %v1982
      %2341 = vmatpush1.bf16.msra.mxu0 %v1981
      %2342 = vmatprep.subr.bf16.mxu0 %v1990
      %2343 = vmatpush1.bf16.msra.mxu0 %v1989
      %2344 = vmatprep.subr.bf16.mxu0 %v1998
      %2345 = vmatpush1.bf16.msra.mxu0 %v1997
      %2346 = vmatprep.subr.bf16.mxu0 %v2006
      %2347 = vmatpush1.bf16.msra.mxu0 %v2005
      %2348 = vmatprep.subr.bf16.mxu0 %v2014
      %2349 = vmatpush1.bf16.msra.mxu0 %v2013
      %2350 = vmatprep.mubr.bf16.mxu0 %v698
      %2351 = vmatmul.mubr.bf16.gmra.mrb[0].mxu0 %v697
      %v2352 = vpop.f32.mrb[0].mxu0
      %v2353 = vadd.f32 %v2312, %v2352
      %v2354 = vpop.f32.mrb[0].mxu0
      %v2355 = vadd.f32 %v2314, %v2354
      %v2356 = vpop.f32.mrb[0].mxu0
      %v2357 = vpop.f32.mrb[0].mxu0
      %2358 = vdwg.mxu0
      %2359 = vmatprep.subr.bf16.mxu0 %v1768
      %2360 = vmatpush1.bf16.msra.mxu0 %v1767
      %2361 = vmatprep.subr.bf16.mxu0 %v1776
      %2362 = vmatpush1.bf16.msra.mxu0 %v1775
      %2363 = vmatprep.subr.bf16.mxu0 %v1784
      %2364 = vmatpush1.bf16.msra.mxu0 %v1783
      %2365 = vmatprep.subr.bf16.mxu0 %v1792
      %2366 = vmatpush1.bf16.msra.mxu0 %v1791
      %2367 = vmatprep.subr.bf16.mxu0 %v1800
      %2368 = vmatpush1.bf16.msra.mxu0 %v1799
      %2369 = vmatprep.subr.bf16.mxu0 %v1808
      %2370 = vmatpush1.bf16.msra.mxu0 %v1807
      %2371 = vmatprep.subr.bf16.mxu0 %v1816
      %2372 = vmatpush1.bf16.msra.mxu0 %v1815
      %2373 = vmatprep.subr.bf16.mxu0 %v1824
      %2374 = vmatpush1.bf16.msra.mxu0 %v1823
      %2375 = vmatprep.subr.bf16.mxu0 %v1832
      %2376 = vmatpush1.bf16.msra.mxu0 %v1831
      %2377 = vmatprep.subr.bf16.mxu0 %v1840
      %2378 = vmatpush1.bf16.msra.mxu0 %v1839
      %2379 = vmatprep.subr.bf16.mxu0 %v1848
      %2380 = vmatpush1.bf16.msra.mxu0 %v1847
      %2381 = vmatprep.subr.bf16.mxu0 %v1856
      %2382 = vmatpush1.bf16.msra.mxu0 %v1855
      %2383 = vmatprep.subr.bf16.mxu0 %v1864
      %2384 = vmatpush1.bf16.msra.mxu0 %v1863
      %2385 = vmatprep.subr.bf16.mxu0 %v1872
      %2386 = vmatpush1.bf16.msra.mxu0 %v1871
      %2387 = vmatprep.subr.bf16.mxu0 %v1880
      %2388 = vmatpush1.bf16.msra.mxu0 %v1879
      %2389 = vmatprep.subr.bf16.mxu0 %v1888
      %2390 = vmatpush1.bf16.msra.mxu0 %v1887
      %2391 = vmatprep.mubr.bf16.mxu0 %v696
      %2392 = vmatmul.mubr.bf16.gmra.mrb[0].mxu0 %v695
      %v2393 = vpop.f32.mrb[0].mxu0
      %v2394 = vadd.f32 %v968, %v2393
      %v2395 = vpop.f32.mrb[0].mxu0
      %v2396 = vadd.f32 %v972, %v2395
      %v2397 = vpop.f32.mrb[0].mxu0
      %v2398 = vpop.f32.mrb[0].mxu0
      %2399 = vdwg.mxu0
      %2400 = vmatprep.subr.bf16.mxu0 %v1896
      %2401 = vmatpush1.bf16.msra.mxu0 %v1895
      %2402 = vmatprep.subr.bf16.mxu0 %v1904
      %2403 = vmatpush1.bf16.msra.mxu0 %v1903
      %2404 = vmatprep.subr.bf16.mxu0 %v1912
      %2405 = vmatpush1.bf16.msra.mxu0 %v1911
      %2406 = vmatprep.subr.bf16.mxu0 %v1920
      %2407 = vmatpush1.bf16.msra.mxu0 %v1919
      %2408 = vmatprep.subr.bf16.mxu0 %v1928
      %2409 = vmatpush1.bf16.msra.mxu0 %v1927
      %2410 = vmatprep.subr.bf16.mxu0 %v1936
      %2411 = vmatpush1.bf16.msra.mxu0 %v1935
      %2412 = vmatprep.subr.bf16.mxu0 %v1944
      %2413 = vmatpush1.bf16.msra.mxu0 %v1943
      %2414 = vmatprep.subr.bf16.mxu0 %v1952
      %2415 = vmatpush1.bf16.msra.mxu0 %v1951
      %2416 = vmatprep.subr.bf16.mxu0 %v1960
      %2417 = vmatpush1.bf16.msra.mxu0 %v1959
      %2418 = vmatprep.subr.bf16.mxu0 %v1968
      %2419 = vmatpush1.bf16.msra.mxu0 %v1967
      %2420 = vmatprep.subr.bf16.mxu0 %v1976
      %2421 = vmatpush1.bf16.msra.mxu0 %v1975
      %2422 = vmatprep.subr.bf16.mxu0 %v1984
      %2423 = vmatpush1.bf16.msra.mxu0 %v1983
      %2424 = vmatprep.subr.bf16.mxu0 %v1992
      %2425 = vmatpush1.bf16.msra.mxu0 %v1991
      %2426 = vmatprep.subr.bf16.mxu0 %v2000
      %2427 = vmatpush1.bf16.msra.mxu0 %v1999
      %2428 = vmatprep.subr.bf16.mxu0 %v2008
      %2429 = vmatpush1.bf16.msra.mxu0 %v2007
      %2430 = vmatprep.subr.bf16.mxu0 %v2016
      %2431 = vmatpush1.bf16.msra.mxu0 %v2015
      %2432 = vmatprep.mubr.bf16.mxu0 %v698
      %2433 = vmatmul.mubr.bf16.gmra.mrb[0].mxu0 %v697
      %v2434 = vpop.f32.mrb[0].mxu0
      %v2435 = vadd.f32 %v2394, %v2434
      %v2436 = vpop.f32.mrb[0].mxu0
      %v2437 = vadd.f32 %v2396, %v2436
      %v2438 = vpop.f32.mrb[0].mxu0
      %v2439 = vpop.f32.mrb[0].mxu0
      %2440 = vdwg.mxu0
      %2441 = vmatprep.subr.bf16.mxu0 %v1770
      %2442 = vmatpush1.bf16.msra.mxu0 %v1769
      %2443 = vmatprep.subr.bf16.mxu0 %v1778
      %2444 = vmatpush1.bf16.msra.mxu0 %v1777
      %2445 = vmatprep.subr.bf16.mxu0 %v1786
      %2446 = vmatpush1.bf16.msra.mxu0 %v1785
      %2447 = vmatprep.subr.bf16.mxu0 %v1794
      %2448 = vmatpush1.bf16.msra.mxu0 %v1793
      %2449 = vmatprep.subr.bf16.mxu0 %v1802
      %2450 = vmatpush1.bf16.msra.mxu0 %v1801
      %2451 = vmatprep.subr.bf16.mxu0 %v1810
      %2452 = vmatpush1.bf16.msra.mxu0 %v1809
      %2453 = vmatprep.subr.bf16.mxu0 %v1818
      %2454 = vmatpush1.bf16.msra.mxu0 %v1817
      %2455 = vmatprep.subr.bf16.mxu0 %v1826
      %2456 = vmatpush1.bf16.msra.mxu0 %v1825
      %2457 = vmatprep.subr.bf16.mxu0 %v1834
      %2458 = vmatpush1.bf16.msra.mxu0 %v1833
      %2459 = vmatprep.subr.bf16.mxu0 %v1842
      %2460 = vmatpush1.bf16.msra.mxu0 %v1841
      %2461 = vmatprep.subr.bf16.mxu0 %v1850
      %2462 = vmatpush1.bf16.msra.mxu0 %v1849
      %2463 = vmatprep.subr.bf16.mxu0 %v1858
      %2464 = vmatpush1.bf16.msra.mxu0 %v1857
      %2465 = vmatprep.subr.bf16.mxu0 %v1866
      %2466 = vmatpush1.bf16.msra.mxu0 %v1865
      %2467 = vmatprep.subr.bf16.mxu0 %v1874
      %2468 = vmatpush1.bf16.msra.mxu0 %v1873
      %2469 = vmatprep.subr.bf16.mxu0 %v1882
      %2470 = vmatpush1.bf16.msra.mxu0 %v1881
      %2471 = vmatprep.subr.bf16.mxu0 %v1890
      %2472 = vmatpush1.bf16.msra.mxu0 %v1889
      %2473 = vmatprep.mubr.bf16.mxu0 %v696
      %2474 = vmatmul.mubr.bf16.gmra.mrb[0].mxu0 %v695
      %v2475 = vpop.f32.mrb[0].mxu0
      %v2476 = vadd.f32 %v976, %v2475
      %v2477 = vpop.f32.mrb[0].mxu0
      %v2478 = vadd.f32 %v980, %v2477
      %v2479 = vpop.f32.mrb[0].mxu0
      %v2480 = vpop.f32.mrb[0].mxu0
      %2481 = vdwg.mxu0
      %2482 = vmatprep.subr.bf16.mxu0 %v1898
      %2483 = vmatpush1.bf16.msra.mxu0 %v1897
      %2484 = vmatprep.subr.bf16.mxu0 %v1906
      %2485 = vmatpush1.bf16.msra.mxu0 %v1905
      %2486 = vmatprep.subr.bf16.mxu0 %v1914
      %2487 = vmatpush1.bf16.msra.mxu0 %v1913
      %2488 = vmatprep.subr.bf16.mxu0 %v1922
      %2489 = vmatpush1.bf16.msra.mxu0 %v1921
      %2490 = vmatprep.subr.bf16.mxu0 %v1930
      %2491 = vmatpush1.bf16.msra.mxu0 %v1929
      %2492 = vmatprep.subr.bf16.mxu0 %v1938
      %2493 = vmatpush1.bf16.msra.mxu0 %v1937
      %2494 = vmatprep.subr.bf16.mxu0 %v1946
      %2495 = vmatpush1.bf16.msra.mxu0 %v1945
      %2496 = vmatprep.subr.bf16.mxu0 %v1954
      %2497 = vmatpush1.bf16.msra.mxu0 %v1953
      %2498 = vmatprep.subr.bf16.mxu0 %v1962
      %2499 = vmatpush1.bf16.msra.mxu0 %v1961
      %2500 = vmatprep.subr.bf16.mxu0 %v1970
      %2501 = vmatpush1.bf16.msra.mxu0 %v1969
      %2502 = vmatprep.subr.bf16.mxu0 %v1978
      %2503 = vmatpush1.bf16.msra.mxu0 %v1977
      %2504 = vmatprep.subr.bf16.mxu0 %v1986
      %2505 = vmatpush1.bf16.msra.mxu0 %v1985
      %2506 = vmatprep.subr.bf16.mxu0 %v1994
      %2507 = vmatpush1.bf16.msra.mxu0 %v1993
      %2508 = vmatprep.subr.bf16.mxu0 %v2002
      %2509 = vmatpush1.bf16.msra.mxu0 %v2001
      %2510 = vmatprep.subr.bf16.mxu0 %v2010
      %2511 = vmatpush1.bf16.msra.mxu0 %v2009
      %2512 = vmatprep.subr.bf16.mxu0 %v2018
      %2513 = vmatpush1.bf16.msra.mxu0 %v2017
      %2514 = vmatprep.mubr.bf16.mxu0 %v698
      %2515 = vmatmul.mubr.bf16.gmra.mrb[0].mxu0 %v697
      %v2516 = vpop.f32.mrb[0].mxu0
      %v2517 = vadd.f32 %v2476, %v2516
      %v2518 = vpop.f32.mrb[0].mxu0
      %v2519 = vadd.f32 %v2478, %v2518
      %v2520 = vpop.f32.mrb[0].mxu0
      %v2521 = vpop.f32.mrb[0].mxu0
      %2522 = vdwg.mxu0
      %2523 = vmatprep.subr.bf16.mxu0 %v1772
      %2524 = vmatpush1.bf16.msra.mxu0 %v1771
      %2525 = vmatprep.subr.bf16.mxu0 %v1780
      %2526 = vmatpush1.bf16.msra.mxu0 %v1779
      %2527 = vmatprep.subr.bf16.mxu0 %v1788
      %2528 = vmatpush1.bf16.msra.mxu0 %v1787
      %2529 = vmatprep.subr.bf16.mxu0 %v1796
      %2530 = vmatpush1.bf16.msra.mxu0 %v1795
      %2531 = vmatprep.subr.bf16.mxu0 %v1804
      %2532 = vmatpush1.bf16.msra.mxu0 %v1803
      %2533 = vmatprep.subr.bf16.mxu0 %v1812
      %2534 = vmatpush1.bf16.msra.mxu0 %v1811
      %2535 = vmatprep.subr.bf16.mxu0 %v1820
      %2536 = vmatpush1.bf16.msra.mxu0 %v1819
      %2537 = vmatprep.subr.bf16.mxu0 %v1828
      %2538 = vmatpush1.bf16.msra.mxu0 %v1827
      %2539 = vmatprep.subr.bf16.mxu0 %v1836
      %2540 = vmatpush1.bf16.msra.mxu0 %v1835
      %2541 = vmatprep.subr.bf16.mxu0 %v1844
      %2542 = vmatpush1.bf16.msra.mxu0 %v1843
      %2543 = vmatprep.subr.bf16.mxu0 %v1852
      %2544 = vmatpush1.bf16.msra.mxu0 %v1851
      %2545 = vmatprep.subr.bf16.mxu0 %v1860
      %2546 = vmatpush1.bf16.msra.mxu0 %v1859
      %2547 = vmatprep.subr.bf16.mxu0 %v1868
      %2548 = vmatpush1.bf16.msra.mxu0 %v1867
      %2549 = vmatprep.subr.bf16.mxu0 %v1876
      %2550 = vmatpush1.bf16.msra.mxu0 %v1875
      %2551 = vmatprep.subr.bf16.mxu0 %v1884
      %2552 = vmatpush1.bf16.msra.mxu0 %v1883
      %2553 = vmatprep.subr.bf16.mxu0 %v1892
      %2554 = vmatpush1.bf16.msra.mxu0 %v1891
      %2555 = vmatprep.mubr.bf16.mxu0 %v696
      %2556 = vmatmul.mubr.bf16.gmra.mrb[0].mxu0 %v695
      %v2557 = vpop.f32.mrb[0].mxu0
      %v2558 = vadd.f32 %v984, %v2557
      %v2559 = vpop.f32.mrb[0].mxu0
      %v2560 = vadd.f32 %v988, %v2559
      %v2561 = vpop.f32.mrb[0].mxu0
      %v2562 = vpop.f32.mrb[0].mxu0
      %2563 = vdwg.mxu0
      %2564 = vmatprep.subr.bf16.mxu0 %v1900
      %2565 = vmatpush1.bf16.msra.mxu0 %v1899
      %2566 = vmatprep.subr.bf16.mxu0 %v1908
      %2567 = vmatpush1.bf16.msra.mxu0 %v1907
      %2568 = vmatprep.subr.bf16.mxu0 %v1916
      %2569 = vmatpush1.bf16.msra.mxu0 %v1915
      %2570 = vmatprep.subr.bf16.mxu0 %v1924
      %2571 = vmatpush1.bf16.msra.mxu0 %v1923
      %2572 = vmatprep.subr.bf16.mxu0 %v1932
      %2573 = vmatpush1.bf16.msra.mxu0 %v1931
      %2574 = vmatprep.subr.bf16.mxu0 %v1940
      %2575 = vmatpush1.bf16.msra.mxu0 %v1939
      %2576 = vmatprep.subr.bf16.mxu0 %v1948
      %2577 = vmatpush1.bf16.msra.mxu0 %v1947
      %2578 = vmatprep.subr.bf16.mxu0 %v1956
      %2579 = vmatpush1.bf16.msra.mxu0 %v1955
      %2580 = vmatprep.subr.bf16.mxu0 %v1964
      %2581 = vmatpush1.bf16.msra.mxu0 %v1963
      %2582 = vmatprep.subr.bf16.mxu0 %v1972
      %2583 = vmatpush1.bf16.msra.mxu0 %v1971
      %2584 = vmatprep.subr.bf16.mxu0 %v1980
      %2585 = vmatpush1.bf16.msra.mxu0 %v1979
      %2586 = vmatprep.subr.bf16.mxu0 %v1988
      %2587 = vmatpush1.bf16.msra.mxu0 %v1987
      %2588 = vmatprep.subr.bf16.mxu0 %v1996
      %2589 = vmatpush1.bf16.msra.mxu0 %v1995
      %2590 = vmatprep.subr.bf16.mxu0 %v2004
      %2591 = vmatpush1.bf16.msra.mxu0 %v2003
      %2592 = vmatprep.subr.bf16.mxu0 %v2012
      %2593 = vmatpush1.bf16.msra.mxu0 %v2011
      %2594 = vmatprep.subr.bf16.mxu0 %v2020
      %2595 = vmatpush1.bf16.msra.mxu0 %v2019
      %2596 = vmatprep.mubr.bf16.mxu0 %v698
      %2597 = vmatmul.mubr.bf16.gmra.mrb[0].mxu0 %v697
      %v2598 = vpop.f32.mrb[0].mxu0
      %v2599 = vadd.f32 %v2558, %v2598
      %v2600 = vpop.f32.mrb[0].mxu0
      %v2601 = vadd.f32 %v2560, %v2600
      %v2602 = vpop.f32.mrb[0].mxu0
      %v2603 = vpop.f32.mrb[0].mxu0
      %2604 = vdwg.mxu0
      %v2605 = vmax.f32 %v2353, 0.0
      %v2606 = vmax.f32 %v2355, 0.0
      %v2607 = vmax.f32 %v2435, 0.0
      %v2608 = vmax.f32 %v2437, 0.0
      %v2609 = vmax.f32 %v2517, 0.0
      %v2610 = vmax.f32 %v2519, 0.0
      %v2611 = vmax.f32 %v2599, 0.0
      %v2612 = vmax.f32 %v2601, 0.0
      %v2613 = vpack.c.bf16 %v2605, %v2605
      %v2614 = vpack.c.bf16 %v2606, %v2606
      %v2615 = vpack.c.bf16 %v2607, %v2607
      %v2616 = vpack.c.bf16 %v2608, %v2608
      %v2617 = vpack.c.bf16 %v2609, %v2609
      %v2618 = vpack.c.bf16 %v2610, %v2610
      %v2619 = vpack.c.bf16 %v2611, %v2611
      %v2620 = vpack.c.bf16 %v2612, %v2612
      %v2629 = vunpack.c.l.b16 %v2613
      %v2630 = vunpack.c.l.b16 %v2614
      %v2631 = vunpack.c.l.b16 %v2615
      %v2632 = vunpack.c.l.b16 %v2616
      %v2633 = vunpack.c.l.b16 %v2617
      %v2634 = vunpack.c.l.b16 %v2618
      %v2635 = vunpack.c.l.b16 %v2619
      %v2636 = vunpack.c.l.b16 %v2620
      %v2637 = vpack.c.b16 %v2630, %v2629
      %v2638 = vpack.c.b16 %v2632, %v2631
      %v2639 = vpack.c.b16 %v2634, %v2633
      %v2640 = vpack.c.b16 %v2636, %v2635
      %2645 = vst [vmem:[#allocation2] sm:$0xff] %v2637
      %2646 = vst [vmem:[#allocation2 + $0x8] sm:$0xff] %v2638
      %2647 = vst [vmem:[#allocation2 + $0x10] sm:$0xff] %v2639
      %2648 = vst [vmem:[#allocation2 + $0x18] sm:$0xff] %v2640
    $region65: #{tpu_custom_call.1} parent=1 // pred_fallthru
      _
    %v2649 = vld [vmem:[#allocation2] sm:$0xff]
    %v2650 = vld [vmem:[#allocation2 + $0x8] sm:$0xff]
    %v2651 = vld [vmem:[#allocation2 + $0x10] sm:$0xff]
    %v2652 = vld [vmem:[#allocation2 + $0x18] sm:$0xff]
    %v2653 = vld [vmem:[#allocation12] sm:$0xff]
    %v2654 = vld [vmem:[#allocation12 + $0x8] sm:$0xf]
    %v2655 = vld [vmem:[#allocation12 + $0xc] sm:$0xff]
    %v2656 = vld [vmem:[#allocation12 + $0x14] sm:$0xf]
    %v2657 = vld [vmem:[#allocation12 + $0x18] sm:$0xff]
    %v2658 = vld [vmem:[#allocation12 + $0x20] sm:$0xf]
    %v2659 = vld [vmem:[#allocation12 + $0x24] sm:$0xff]
    %v2660 = vld [vmem:[#allocation12 + $0x2c] sm:$0xf]
    %v2661 = vld [vmem:[#allocation12 + $0x30] sm:$0xff]
    %v2662 = vld [vmem:[#allocation12 + $0x38] sm:$0xf]
    %v2663 = vld [vmem:[#allocation12 + $0x3c] sm:$0xff]
    %v2664 = vld [vmem:[#allocation12 + $0x44] sm:$0xf]
    %v2665 = vld [vmem:[#allocation12 + $0x48] sm:$0xff]
    %v2666 = vld [vmem:[#allocation12 + $0x50] sm:$0xf]
    %v2667 = vld [vmem:[#allocation12 + $0x54] sm:$0xff]
    %v2668 = vld [vmem:[#allocation12 + $0x5c] sm:$0xf]
    %v2669 = vld [vmem:[#allocation12 + $0x60] sm:$0xff]
    %v2670 = vld [vmem:[#allocation12 + $0x68] sm:$0xf]
    %v2671 = vld [vmem:[#allocation12 + $0x6c] sm:$0xff]
    %v2672 = vld [vmem:[#allocation12 + $0x74] sm:$0xf]
    %v2673 = vld [vmem:[#allocation12 + $0x78] sm:$0xff]
    %v2674 = vld [vmem:[#allocation12 + $0x80] sm:$0xf]
    %v2675 = vld [vmem:[#allocation12 + $0x84] sm:$0xff]
    %v2676 = vld [vmem:[#allocation12 + $0x8c] sm:$0xf]
    %v2677 = vld [vmem:[#allocation12 + $0x90] sm:$0xff]
    %v2678 = vld [vmem:[#allocation12 + $0x98] sm:$0xf]
    %v2679 = vld [vmem:[#allocation12 + $0x9c] sm:$0xff]
    %v2680 = vld [vmem:[#allocation12 + $0xa4] sm:$0xf]
    %v2681 = vld [vmem:[#allocation12 + $0xa8] sm:$0xff]
    %v2682 = vld [vmem:[#allocation12 + $0xb0] sm:$0xf]
    %v2683 = vld [vmem:[#allocation12 + $0xb4] sm:$0xff]
    %v2684 = vld [vmem:[#allocation12 + $0xbc] sm:$0xf]
    %v2685 = vld [vmem:[#allocation12 + $0xc0] sm:$0xff]
    %v2686 = vld [vmem:[#allocation12 + $0xc8] sm:$0xf]
    %v2687 = vld [vmem:[#allocation12 + $0xcc] sm:$0xff]
    %v2688 = vld [vmem:[#allocation12 + $0xd4] sm:$0xf]
    %v2689 = vld [vmem:[#allocation12 + $0xd8] sm:$0xff]
    %v2690 = vld [vmem:[#allocation12 + $0xe0] sm:$0xf]
    %v2691 = vld [vmem:[#allocation12 + $0xe4] sm:$0xff]
    %v2692 = vld [vmem:[#allocation12 + $0xec] sm:$0xf]
    %v2693 = vld [vmem:[#allocation12 + $0xf0] sm:$0xff]
    %v2694 = vld [vmem:[#allocation12 + $0xf8] sm:$0xf]
    %v2695 = vld [vmem:[#allocation12 + $0xfc] sm:$0xff]
    %v2696 = vld [vmem:[#allocation12 + $0x104] sm:$0xf]
    %v2697 = vld [vmem:[#allocation12 + $0x108] sm:$0xff]
    %v2698 = vld [vmem:[#allocation12 + $0x110] sm:$0xf]
    %v2699 = vld [vmem:[#allocation12 + $0x114] sm:$0xff]
    %v2700 = vld [vmem:[#allocation12 + $0x11c] sm:$0xf]
    %v2701 = vld [vmem:[#allocation12 + $0x120] sm:$0xff]
    %v2702 = vld [vmem:[#allocation12 + $0x128] sm:$0xf]
    %v2703 = vld [vmem:[#allocation12 + $0x12c] sm:$0xff]
    %v2704 = vld [vmem:[#allocation12 + $0x134] sm:$0xf]
    %v2705 = vld [vmem:[#allocation12 + $0x138] sm:$0xff]
    %v2706 = vld [vmem:[#allocation12 + $0x140] sm:$0xf]
    %v2707 = vld [vmem:[#allocation12 + $0x144] sm:$0xff]
    %v2708 = vld [vmem:[#allocation12 + $0x14c] sm:$0xf]
    %v2709 = vld [vmem:[#allocation12 + $0x150] sm:$0xff]
    %v2710 = vld [vmem:[#allocation12 + $0x158] sm:$0xf]
    %v2711 = vld [vmem:[#allocation12 + $0x15c] sm:$0xff]
    %v2712 = vld [vmem:[#allocation12 + $0x164] sm:$0xf]
    %v2713 = vld [vmem:[#allocation12 + $0x168] sm:$0xff]
    %v2714 = vld [vmem:[#allocation12 + $0x170] sm:$0xf]
    %v2715 = vld [vmem:[#allocation12 + $0x174] sm:$0xff]
    %v2716 = vld [vmem:[#allocation12 + $0x17c] sm:$0xf]
    %v2717 = vld [vmem:[#allocation12 + $0x180] sm:$0xff]
    %v2718 = vld [vmem:[#allocation12 + $0x188] sm:$0xf]
    %v2719 = vld [vmem:[#allocation12 + $0x18c] sm:$0xff]
    %v2720 = vld [vmem:[#allocation12 + $0x194] sm:$0xf]
    %v2721 = vld [vmem:[#allocation12 + $0x198] sm:$0xff]
    %v2722 = vld [vmem:[#allocation12 + $0x1a0] sm:$0xf]
    %v2723 = vld [vmem:[#allocation12 + $0x1a4] sm:$0xff]
    %v2724 = vld [vmem:[#allocation12 + $0x1ac] sm:$0xf]
    %v2725 = vld [vmem:[#allocation12 + $0x1b0] sm:$0xff]
    %v2726 = vld [vmem:[#allocation12 + $0x1b8] sm:$0xf]
    %v2727 = vld [vmem:[#allocation12 + $0x1bc] sm:$0xff]
    %v2728 = vld [vmem:[#allocation12 + $0x1c4] sm:$0xf]
    %v2729 = vld [vmem:[#allocation12 + $0x1c8] sm:$0xff]
    %v2730 = vld [vmem:[#allocation12 + $0x1d0] sm:$0xf]
    %v2731 = vld [vmem:[#allocation12 + $0x1d4] sm:$0xff]
    %v2732 = vld [vmem:[#allocation12 + $0x1dc] sm:$0xf]
    %v2733 = vld [vmem:[#allocation12 + $0x1e0] sm:$0xff]
    %v2734 = vld [vmem:[#allocation12 + $0x1e8] sm:$0xf]
    %v2735 = vld [vmem:[#allocation12 + $0x1ec] sm:$0xff]
    %v2736 = vld [vmem:[#allocation12 + $0x1f4] sm:$0xf]
    %v2737 = vld [vmem:[#allocation12 + $0x1f8] sm:$0xff]
    %v2738 = vld [vmem:[#allocation12 + $0x200] sm:$0xf]
    %v2739 = vld [vmem:[#allocation12 + $0x204] sm:$0xff]
    %v2740 = vld [vmem:[#allocation12 + $0x20c] sm:$0xf]
    %v2741 = vld [vmem:[#allocation12 + $0x210] sm:$0xff]
    %v2742 = vld [vmem:[#allocation12 + $0x218] sm:$0xf]
    %v2743 = vld [vmem:[#allocation12 + $0x21c] sm:$0xff]
    %v2744 = vld [vmem:[#allocation12 + $0x224] sm:$0xf]
    %v2745 = vld [vmem:[#allocation12 + $0x228] sm:$0xff]
    %v2746 = vld [vmem:[#allocation12 + $0x230] sm:$0xf]
    %v2747 = vld [vmem:[#allocation12 + $0x234] sm:$0xff]
    %v2748 = vld [vmem:[#allocation12 + $0x23c] sm:$0xf]
    %v2749 = vld [vmem:[#allocation12 + $0x240] sm:$0xff]
    %v2750 = vld [vmem:[#allocation12 + $0x248] sm:$0xf]
    %v2751 = vld [vmem:[#allocation12 + $0x24c] sm:$0xff]
    %v2752 = vld [vmem:[#allocation12 + $0x254] sm:$0xf]
    %v2753 = vld [vmem:[#allocation12 + $0x258] sm:$0xff]
    %v2754 = vld [vmem:[#allocation12 + $0x260] sm:$0xf]
    %v2755 = vld [vmem:[#allocation12 + $0x264] sm:$0xff]
    %v2756 = vld [vmem:[#allocation12 + $0x26c] sm:$0xf]
    %v2757 = vld [vmem:[#allocation12 + $0x270] sm:$0xff]
    %v2758 = vld [vmem:[#allocation12 + $0x278] sm:$0xf]
    %v2759 = vld [vmem:[#allocation12 + $0x27c] sm:$0xff]
    %v2760 = vld [vmem:[#allocation12 + $0x284] sm:$0xf]
    %v2761 = vld [vmem:[#allocation12 + $0x288] sm:$0xff]
    %v2762 = vld [vmem:[#allocation12 + $0x290] sm:$0xf]
    %v2763 = vld [vmem:[#allocation12 + $0x294] sm:$0xff]
    %v2764 = vld [vmem:[#allocation12 + $0x29c] sm:$0xf]
    %v2765 = vld [vmem:[#allocation12 + $0x2a0] sm:$0xff]
    %v2766 = vld [vmem:[#allocation12 + $0x2a8] sm:$0xf]
    %v2767 = vld [vmem:[#allocation12 + $0x2ac] sm:$0xff]
    %v2768 = vld [vmem:[#allocation12 + $0x2b4] sm:$0xf]
    %v2769 = vld [vmem:[#allocation12 + $0x2b8] sm:$0xff]
    %v2770 = vld [vmem:[#allocation12 + $0x2c0] sm:$0xf]
    %v2771 = vld [vmem:[#allocation12 + $0x2c4] sm:$0xff]
    %v2772 = vld [vmem:[#allocation12 + $0x2cc] sm:$0xf]
    %v2773 = vld [vmem:[#allocation12 + $0x2d0] sm:$0xff]
    %v2774 = vld [vmem:[#allocation12 + $0x2d8] sm:$0xf]
    %v2775 = vld [vmem:[#allocation12 + $0x2dc] sm:$0xff]
    %v2776 = vld [vmem:[#allocation12 + $0x2e4] sm:$0xf]
    %v2777 = vld [vmem:[#allocation12 + $0x2e8] sm:$0xff]
    %v2778 = vld [vmem:[#allocation12 + $0x2f0] sm:$0xf]
    %v2779 = vld [vmem:[#allocation12 + $0x2f4] sm:$0xff]
    %v2780 = vld [vmem:[#allocation12 + $0x2fc] sm:$0xf]
    %v2781 = vld [vmem:[#allocation12 + $0x300] sm:$0xff]
    %v2782 = vld [vmem:[#allocation12 + $0x308] sm:$0xf]
    %v2783 = vld [vmem:[#allocation12 + $0x30c] sm:$0xff]
    %v2784 = vld [vmem:[#allocation12 + $0x314] sm:$0xf]
    %v2785 = vld [vmem:[#allocation12 + $0x318] sm:$0xff]
    %v2786 = vld [vmem:[#allocation12 + $0x320] sm:$0xf]
    %v2787 = vld [vmem:[#allocation12 + $0x324] sm:$0xff]
    %v2788 = vld [vmem:[#allocation12 + $0x32c] sm:$0xf]
    %v2789 = vld [vmem:[#allocation12 + $0x330] sm:$0xff]
    %v2790 = vld [vmem:[#allocation12 + $0x338] sm:$0xf]
    %v2791 = vld [vmem:[#allocation12 + $0x33c] sm:$0xff]
    %v2792 = vld [vmem:[#allocation12 + $0x344] sm:$0xf]
    %v2793 = vld [vmem:[#allocation12 + $0x348] sm:$0xff]
    %v2794 = vld [vmem:[#allocation12 + $0x350] sm:$0xf]
    %v2795 = vld [vmem:[#allocation12 + $0x354] sm:$0xff]
    %v2796 = vld [vmem:[#allocation12 + $0x35c] sm:$0xf]
    %v2797 = vld [vmem:[#allocation12 + $0x360] sm:$0xff]
    %v2798 = vld [vmem:[#allocation12 + $0x368] sm:$0xf]
    %v2799 = vld [vmem:[#allocation12 + $0x36c] sm:$0xff]
    %v2800 = vld [vmem:[#allocation12 + $0x374] sm:$0xf]
    %v2801 = vld [vmem:[#allocation12 + $0x378] sm:$0xff]
    %v2802 = vld [vmem:[#allocation12 + $0x380] sm:$0xf]
    %v2803 = vld [vmem:[#allocation12 + $0x384] sm:$0xff]
    %v2804 = vld [vmem:[#allocation12 + $0x38c] sm:$0xf]
    %v2805 = vld [vmem:[#allocation12 + $0x390] sm:$0xff]
    %v2806 = vld [vmem:[#allocation12 + $0x398] sm:$0xf]
    %v2807 = vld [vmem:[#allocation12 + $0x39c] sm:$0xff]
    %v2808 = vld [vmem:[#allocation12 + $0x3a4] sm:$0xf]
    %v2809 = vld [vmem:[#allocation12 + $0x3a8] sm:$0xff]
    %v2810 = vld [vmem:[#allocation12 + $0x3b0] sm:$0xf]
    %v2811 = vld [vmem:[#allocation12 + $0x3b4] sm:$0xff]
    %v2812 = vld [vmem:[#allocation12 + $0x3bc] sm:$0xf]
    %v2813 = vld [vmem:[#allocation12 + $0x3c0] sm:$0xff]
    %v2814 = vld [vmem:[#allocation12 + $0x3c8] sm:$0xf]
    %v2815 = vld [vmem:[#allocation12 + $0x3cc] sm:$0xff]
    %v2816 = vld [vmem:[#allocation12 + $0x3d4] sm:$0xf]
    %v2817 = vld [vmem:[#allocation12 + $0x3d8] sm:$0xff]
    %v2818 = vld [vmem:[#allocation12 + $0x3e0] sm:$0xf]
    %v2819 = vld [vmem:[#allocation12 + $0x3e4] sm:$0xff]
    %v2820 = vld [vmem:[#allocation12 + $0x3ec] sm:$0xf]
    %v2821 = vld [vmem:[#allocation12 + $0x3f0] sm:$0xff]
    %v2822 = vld [vmem:[#allocation12 + $0x3f8] sm:$0xf]
    %v2823 = vld [vmem:[#allocation12 + $0x3fc] sm:$0xff]
    %v2824 = vld [vmem:[#allocation12 + $0x404] sm:$0xf]
    %v2825 = vld [vmem:[#allocation12 + $0x408] sm:$0xff]
    %v2826 = vld [vmem:[#allocation12 + $0x410] sm:$0xf]
    %v2827 = vld [vmem:[#allocation12 + $0x414] sm:$0xff]
    %v2828 = vld [vmem:[#allocation12 + $0x41c] sm:$0xf]
    %v2829 = vld [vmem:[#allocation12 + $0x420] sm:$0xff]
    %v2830 = vld [vmem:[#allocation12 + $0x428] sm:$0xf]
    %v2831 = vld [vmem:[#allocation12 + $0x42c] sm:$0xff]
    %v2832 = vld [vmem:[#allocation12 + $0x434] sm:$0xf]
    %v2833 = vld [vmem:[#allocation12 + $0x438] sm:$0xff]
    %v2834 = vld [vmem:[#allocation12 + $0x440] sm:$0xf]
    %v2835 = vld [vmem:[#allocation12 + $0x444] sm:$0xff]
    %v2836 = vld [vmem:[#allocation12 + $0x44c] sm:$0xf]
    %v2837 = vld [vmem:[#allocation12 + $0x450] sm:$0xff]
    %v2838 = vld [vmem:[#allocation12 + $0x458] sm:$0xf]
    %v2839 = vld [vmem:[#allocation12 + $0x45c] sm:$0xff]
    %v2840 = vld [vmem:[#allocation12 + $0x464] sm:$0xf]
    %v2841 = vld [vmem:[#allocation12 + $0x468] sm:$0xff]
    %v2842 = vld [vmem:[#allocation12 + $0x470] sm:$0xf]
    %v2843 = vld [vmem:[#allocation12 + $0x474] sm:$0xff]
    %v2844 = vld [vmem:[#allocation12 + $0x47c] sm:$0xf]
    %v2845 = vld [vmem:[#allocation12 + $0x480] sm:$0xff]
    %v2846 = vld [vmem:[#allocation12 + $0x488] sm:$0xf]
    %v2847 = vld [vmem:[#allocation12 + $0x48c] sm:$0xff]
    %v2848 = vld [vmem:[#allocation12 + $0x494] sm:$0xf]
    %v2849 = vld [vmem:[#allocation12 + $0x498] sm:$0xff]
    %v2850 = vld [vmem:[#allocation12 + $0x4a0] sm:$0xf]
    %v2851 = vld [vmem:[#allocation12 + $0x4a4] sm:$0xff]
    %v2852 = vld [vmem:[#allocation12 + $0x4ac] sm:$0xf]
    %v2853 = vld [vmem:[#allocation12 + $0x4b0] sm:$0xff]
    %v2854 = vld [vmem:[#allocation12 + $0x4b8] sm:$0xf]
    %v2855 = vld [vmem:[#allocation12 + $0x4bc] sm:$0xff]
    %v2856 = vld [vmem:[#allocation12 + $0x4c4] sm:$0xf]
    %v2857 = vld [vmem:[#allocation12 + $0x4c8] sm:$0xff]
    %v2858 = vld [vmem:[#allocation12 + $0x4d0] sm:$0xf]
    %v2859 = vld [vmem:[#allocation12 + $0x4d4] sm:$0xff]
    %v2860 = vld [vmem:[#allocation12 + $0x4dc] sm:$0xf]
    %v2861 = vld [vmem:[#allocation12 + $0x4e0] sm:$0xff]
    %v2862 = vld [vmem:[#allocation12 + $0x4e8] sm:$0xf]
    %v2863 = vld [vmem:[#allocation12 + $0x4ec] sm:$0xff]
    %v2864 = vld [vmem:[#allocation12 + $0x4f4] sm:$0xf]
    %v2865 = vld [vmem:[#allocation12 + $0x4f8] sm:$0xff]
    %v2866 = vld [vmem:[#allocation12 + $0x500] sm:$0xf]
    %v2867 = vld [vmem:[#allocation12 + $0x504] sm:$0xff]
    %v2868 = vld [vmem:[#allocation12 + $0x50c] sm:$0xf]
    %v2869 = vld [vmem:[#allocation12 + $0x510] sm:$0xff]
    %v2870 = vld [vmem:[#allocation12 + $0x518] sm:$0xf]
    %v2871 = vld [vmem:[#allocation12 + $0x51c] sm:$0xff]
    %v2872 = vld [vmem:[#allocation12 + $0x524] sm:$0xf]
    %v2873 = vld [vmem:[#allocation12 + $0x528] sm:$0xff]
    %v2874 = vld [vmem:[#allocation12 + $0x530] sm:$0xf]
    %v2875 = vld [vmem:[#allocation12 + $0x534] sm:$0xff]
    %v2876 = vld [vmem:[#allocation12 + $0x53c] sm:$0xf]
    %v2877 = vld [vmem:[#allocation12 + $0x540] sm:$0xff]
    %v2878 = vld [vmem:[#allocation12 + $0x548] sm:$0xf]
    %v2879 = vld [vmem:[#allocation12 + $0x54c] sm:$0xff]
    %v2880 = vld [vmem:[#allocation12 + $0x554] sm:$0xf]
    %v2881 = vld [vmem:[#allocation12 + $0x558] sm:$0xff]
    %v2882 = vld [vmem:[#allocation12 + $0x560] sm:$0xf]
    %v2883 = vld [vmem:[#allocation12 + $0x564] sm:$0xff]
    %v2884 = vld [vmem:[#allocation12 + $0x56c] sm:$0xf]
    %v2885 = vld [vmem:[#allocation12 + $0x570] sm:$0xff]
    %v2886 = vld [vmem:[#allocation12 + $0x578] sm:$0xf]
    %v2887 = vld [vmem:[#allocation12 + $0x57c] sm:$0xff]
    %v2888 = vld [vmem:[#allocation12 + $0x584] sm:$0xf]
    %v2889 = vld [vmem:[#allocation12 + $0x588] sm:$0xff]
    %v2890 = vld [vmem:[#allocation12 + $0x590] sm:$0xf]
    %v2891 = vld [vmem:[#allocation12 + $0x594] sm:$0xff]
    %v2892 = vld [vmem:[#allocation12 + $0x59c] sm:$0xf]
    %v2893 = vld [vmem:[#allocation12 + $0x5a0] sm:$0xff]
    %v2894 = vld [vmem:[#allocation12 + $0x5a8] sm:$0xf]
    %v2895 = vld [vmem:[#allocation12 + $0x5ac] sm:$0xff]
    %v2896 = vld [vmem:[#allocation12 + $0x5b4] sm:$0xf]
    %v2897 = vld [vmem:[#allocation12 + $0x5b8] sm:$0xff]
    %v2898 = vld [vmem:[#allocation12 + $0x5c0] sm:$0xf]
    %v2899 = vld [vmem:[#allocation12 + $0x5c4] sm:$0xff]
    %v2900 = vld [vmem:[#allocation12 + $0x5cc] sm:$0xf]
    %v2901 = vld [vmem:[#allocation12 + $0x5d0] sm:$0xff]
    %v2902 = vld [vmem:[#allocation12 + $0x5d8] sm:$0xf]
    %v2903 = vld [vmem:[#allocation12 + $0x5dc] sm:$0xff]
    %v2904 = vld [vmem:[#allocation12 + $0x5e4] sm:$0xf]
    %v2905 = vld [vmem:[#allocation12 + $0x5e8] sm:$0xff]
    %v2906 = vld [vmem:[#allocation12 + $0x5f0] sm:$0xf]
    %v2907 = vld [vmem:[#allocation12 + $0x5f4] sm:$0xff]
    %v2908 = vld [vmem:[#allocation12 + $0x5fc] sm:$0xf]
    %v2909 = vld [vmem:[%s8] sm:$0x7]
    %v2911 = vlaneseq
    %v2912 = vshrl.u32 %v2911, 7
    %v2913 = vsub.s32 0, %v2912
    %v2914 = vrot.slane %v2909, %v2913
    %v2915 = vlaneseq
    %v2916 = vshrl.u32 %v2915, 7
    %v2917 = vsub.s32 1, %v2916
    %v2918 = vrot.slane %v2909, %v2917
    %v2919 = vlaneseq
    %v2920 = vshrl.u32 %v2919, 7
    %v2921 = vsub.s32 2, %v2920
    %v2922 = vrot.slane %v2909, %v2921
    %v2930 = vunpack.c.l.b16 %v2649
    %v2931 = vunpack.c.h.b16 %v2649
    %v2932 = vunpack.c.l.b16 %v2650
    %v2933 = vunpack.c.h.b16 %v2650
    %v2934 = vunpack.c.l.b16 %v2651
    %v2935 = vunpack.c.h.b16 %v2651
    %v2936 = vunpack.c.l.b16 %v2652
    %v2937 = vunpack.c.h.b16 %v2652
    %v2938 = vpack.c.b16 %v2930, %v2930
    %v2939 = vpack.c.b16 %v2931, %v2931
    %v2940 = vpack.c.b16 %v2932, %v2932
    %v2941 = vpack.c.b16 %v2933, %v2933
    %v2942 = vpack.c.b16 %v2934, %v2934
    %v2943 = vpack.c.b16 %v2935, %v2935
    %v2944 = vpack.c.b16 %v2936, %v2936
    %v2945 = vpack.c.b16 %v2937, %v2937
    %v3210 = vunpack.c.l.b16 %v2653
    %v3211 = vunpack.c.h.b16 %v2653
    %v3212 = vunpack.c.l.b16 %v2654
    %v3213 = vunpack.c.l.b16 %v2655
    %v3214 = vunpack.c.h.b16 %v2655
    %v3215 = vunpack.c.l.b16 %v2656
    %v3216 = vunpack.c.l.b16 %v2657
    %v3217 = vunpack.c.h.b16 %v2657
    %v3218 = vunpack.c.l.b16 %v2658
    %v3219 = vunpack.c.l.b16 %v2659
    %v3220 = vunpack.c.h.b16 %v2659
    %v3221 = vunpack.c.l.b16 %v2660
    %v3222 = vunpack.c.l.b16 %v2661
    %v3223 = vunpack.c.h.b16 %v2661
    %v3224 = vunpack.c.l.b16 %v2662
    %v3225 = vunpack.c.l.b16 %v2663
    %v3226 = vunpack.c.h.b16 %v2663
    %v3227 = vunpack.c.l.b16 %v2664
    %v3228 = vunpack.c.l.b16 %v2665
    %v3229 = vunpack.c.h.b16 %v2665
    %v3230 = vunpack.c.l.b16 %v2666
    %v3231 = vunpack.c.l.b16 %v2667
    %v3232 = vunpack.c.h.b16 %v2667
    %v3233 = vunpack.c.l.b16 %v2668
    %v3234 = vunpack.c.l.b16 %v2669
    %v3235 = vunpack.c.h.b16 %v2669
    %v3236 = vunpack.c.l.b16 %v2670
    %v3237 = vunpack.c.l.b16 %v2671
    %v3238 = vunpack.c.h.b16 %v2671
    %v3239 = vunpack.c.l.b16 %v2672
    %v3240 = vunpack.c.l.b16 %v2673
    %v3241 = vunpack.c.h.b16 %v2673
    %v3242 = vunpack.c.l.b16 %v2674
    %v3243 = vunpack.c.l.b16 %v2675
    %v3244 = vunpack.c.h.b16 %v2675
    %v3245 = vunpack.c.l.b16 %v2676
    %v3246 = vunpack.c.l.b16 %v2677
    %v3247 = vunpack.c.h.b16 %v2677
    %v3248 = vunpack.c.l.b16 %v2678
    %v3249 = vunpack.c.l.b16 %v2679
    %v3250 = vunpack.c.h.b16 %v2679
    %v3251 = vunpack.c.l.b16 %v2680
    %v3252 = vunpack.c.l.b16 %v2681
    %v3253 = vunpack.c.h.b16 %v2681
    %v3254 = vunpack.c.l.b16 %v2682
    %v3255 = vunpack.c.l.b16 %v2683
    %v3256 = vunpack.c.h.b16 %v2683
    %v3257 = vunpack.c.l.b16 %v2684
    %v3258 = vunpack.c.l.b16 %v2685
    %v3259 = vunpack.c.h.b16 %v2685
    %v3260 = vunpack.c.l.b16 %v2686
    %v3261 = vunpack.c.l.b16 %v2687
    %v3262 = vunpack.c.h.b16 %v2687
    %v3263 = vunpack.c.l.b16 %v2688
    %v3264 = vunpack.c.l.b16 %v2689
    %v3265 = vunpack.c.h.b16 %v2689
    %v3266 = vunpack.c.l.b16 %v2690
    %v3267 = vunpack.c.l.b16 %v2691
    %v3268 = vunpack.c.h.b16 %v2691
    %v3269 = vunpack.c.l.b16 %v2692
    %v3270 = vunpack.c.l.b16 %v2693
    %v3271 = vunpack.c.h.b16 %v2693
    %v3272 = vunpack.c.l.b16 %v2694
    %v3273 = vunpack.c.l.b16 %v2695
    %v3274 = vunpack.c.h.b16 %v2695
    %v3275 = vunpack.c.l.b16 %v2696
    %v3276 = vunpack.c.l.b16 %v2697
    %v3277 = vunpack.c.h.b16 %v2697
    %v3278 = vunpack.c.l.b16 %v2698
    %v3279 = vunpack.c.l.b16 %v2699
    %v3280 = vunpack.c.h.b16 %v2699
    %v3281 = vunpack.c.l.b16 %v2700
    %v3282 = vunpack.c.l.b16 %v2701
    %v3283 = vunpack.c.h.b16 %v2701
    %v3284 = vunpack.c.l.b16 %v2702
    %v3285 = vunpack.c.l.b16 %v2703
    %v3286 = vunpack.c.h.b16 %v2703
    %v3287 = vunpack.c.l.b16 %v2704
    %v3288 = vunpack.c.l.b16 %v2705
    %v3289 = vunpack.c.h.b16 %v2705
    %v3290 = vunpack.c.l.b16 %v2706
    %v3291 = vunpack.c.l.b16 %v2707
    %v3292 = vunpack.c.h.b16 %v2707
    %v3293 = vunpack.c.l.b16 %v2708
    %v3294 = vunpack.c.l.b16 %v2709
    %v3295 = vunpack.c.h.b16 %v2709
    %v3296 = vunpack.c.l.b16 %v2710
    %v3297 = vunpack.c.l.b16 %v2711
    %v3298 = vunpack.c.h.b16 %v2711
    %v3299 = vunpack.c.l.b16 %v2712
    %v3300 = vunpack.c.l.b16 %v2713
    %v3301 = vunpack.c.h.b16 %v2713
    %v3302 = vunpack.c.l.b16 %v2714
    %v3303 = vunpack.c.l.b16 %v2715
    %v3304 = vunpack.c.h.b16 %v2715
    %v3305 = vunpack.c.l.b16 %v2716
    %v3306 = vunpack.c.l.b16 %v2717
    %v3307 = vunpack.c.h.b16 %v2717
    %v3308 = vunpack.c.l.b16 %v2718
    %v3309 = vunpack.c.l.b16 %v2719
    %v3310 = vunpack.c.h.b16 %v2719
    %v3311 = vunpack.c.l.b16 %v2720
    %v3312 = vunpack.c.l.b16 %v2721
    %v3313 = vunpack.c.h.b16 %v2721
    %v3314 = vunpack.c.l.b16 %v2722
    %v3315 = vunpack.c.l.b16 %v2723
    %v3316 = vunpack.c.h.b16 %v2723
    %v3317 = vunpack.c.l.b16 %v2724
    %v3318 = vunpack.c.l.b16 %v2725
    %v3319 = vunpack.c.h.b16 %v2725
    %v3320 = vunpack.c.l.b16 %v2726
    %v3321 = vunpack.c.l.b16 %v2727
    %v3322 = vunpack.c.h.b16 %v2727
    %v3323 = vunpack.c.l.b16 %v2728
    %v3324 = vunpack.c.l.b16 %v2729
    %v3325 = vunpack.c.h.b16 %v2729
    %v3326 = vunpack.c.l.b16 %v2730
    %v3327 = vunpack.c.l.b16 %v2731
    %v3328 = vunpack.c.h.b16 %v2731
    %v3329 = vunpack.c.l.b16 %v2732
    %v3330 = vunpack.c.l.b16 %v2733
    %v3331 = vunpack.c.h.b16 %v2733
    %v3332 = vunpack.c.l.b16 %v2734
    %v3333 = vunpack.c.l.b16 %v2735
    %v3334 = vunpack.c.h.b16 %v2735
    %v3335 = vunpack.c.l.b16 %v2736
    %v3336 = vunpack.c.l.b16 %v2737
    %v3337 = vunpack.c.h.b16 %v2737
    %v3338 = vunpack.c.l.b16 %v2738
    %v3339 = vunpack.c.l.b16 %v2739
    %v3340 = vunpack.c.h.b16 %v2739
    %v3341 = vunpack.c.l.b16 %v2740
    %v3342 = vunpack.c.l.b16 %v2741
    %v3343 = vunpack.c.h.b16 %v2741
    %v3344 = vunpack.c.l.b16 %v2742
    %v3345 = vunpack.c.l.b16 %v2743
    %v3346 = vunpack.c.h.b16 %v2743
    %v3347 = vunpack.c.l.b16 %v2744
    %v3348 = vunpack.c.l.b16 %v2745
    %v3349 = vunpack.c.h.b16 %v2745
    %v3350 = vunpack.c.l.b16 %v2746
    %v3351 = vunpack.c.l.b16 %v2747
    %v3352 = vunpack.c.h.b16 %v2747
    %v3353 = vunpack.c.l.b16 %v2748
    %v3354 = vunpack.c.l.b16 %v2749
    %v3355 = vunpack.c.h.b16 %v2749
    %v3356 = vunpack.c.l.b16 %v2750
    %v3357 = vunpack.c.l.b16 %v2751
    %v3358 = vunpack.c.h.b16 %v2751
    %v3359 = vunpack.c.l.b16 %v2752
    %v3360 = vunpack.c.l.b16 %v2753
    %v3361 = vunpack.c.h.b16 %v2753
    %v3362 = vunpack.c.l.b16 %v2754
    %v3363 = vunpack.c.l.b16 %v2755
    %v3364 = vunpack.c.h.b16 %v2755
    %v3365 = vunpack.c.l.b16 %v2756
    %v3366 = vunpack.c.l.b16 %v2757
    %v3367 = vunpack.c.h.b16 %v2757
    %v3368 = vunpack.c.l.b16 %v2758
    %v3369 = vunpack.c.l.b16 %v2759
    %v3370 = vunpack.c.h.b16 %v2759
    %v3371 = vunpack.c.l.b16 %v2760
    %v3372 = vunpack.c.l.b16 %v2761
    %v3373 = vunpack.c.h.b16 %v2761
    %v3374 = vunpack.c.l.b16 %v2762
    %v3375 = vunpack.c.l.b16 %v2763
    %v3376 = vunpack.c.h.b16 %v2763
    %v3377 = vunpack.c.l.b16 %v2764
    %v3378 = vunpack.c.l.b16 %v2765
    %v3379 = vunpack.c.h.b16 %v2765
    %v3380 = vunpack.c.l.b16 %v2766
    %v3381 = vunpack.c.l.b16 %v2767
    %v3382 = vunpack.c.h.b16 %v2767
    %v3383 = vunpack.c.l.b16 %v2768
    %v3384 = vunpack.c.l.b16 %v2769
    %v3385 = vunpack.c.h.b16 %v2769
    %v3386 = vunpack.c.l.b16 %v2770
    %v3387 = vunpack.c.l.b16 %v2771
    %v3388 = vunpack.c.h.b16 %v2771
    %v3389 = vunpack.c.l.b16 %v2772
    %v3390 = vunpack.c.l.b16 %v2773
    %v3391 = vunpack.c.h.b16 %v2773
    %v3392 = vunpack.c.l.b16 %v2774
    %v3393 = vunpack.c.l.b16 %v2775
    %v3394 = vunpack.c.h.b16 %v2775
    %v3395 = vunpack.c.l.b16 %v2776
    %v3396 = vunpack.c.l.b16 %v2777
    %v3397 = vunpack.c.h.b16 %v2777
    %v3398 = vunpack.c.l.b16 %v2778
    %v3399 = vunpack.c.l.b16 %v2779
    %v3400 = vunpack.c.h.b16 %v2779
    %v3401 = vunpack.c.l.b16 %v2780
    %v3402 = vunpack.c.l.b16 %v2781
    %v3403 = vunpack.c.h.b16 %v2781
    %v3404 = vunpack.c.l.b16 %v2782
    %v3405 = vunpack.c.l.b16 %v2783
    %v3406 = vunpack.c.h.b16 %v2783
    %v3407 = vunpack.c.l.b16 %v2784
    %v3408 = vunpack.c.l.b16 %v2785
    %v3409 = vunpack.c.h.b16 %v2785
    %v3410 = vunpack.c.l.b16 %v2786
    %v3411 = vunpack.c.l.b16 %v2787
    %v3412 = vunpack.c.h.b16 %v2787
    %v3413 = vunpack.c.l.b16 %v2788
    %v3414 = vunpack.c.l.b16 %v2789
    %v3415 = vunpack.c.h.b16 %v2789
    %v3416 = vunpack.c.l.b16 %v2790
    %v3417 = vunpack.c.l.b16 %v2791
    %v3418 = vunpack.c.h.b16 %v2791
    %v3419 = vunpack.c.l.b16 %v2792
    %v3420 = vunpack.c.l.b16 %v2793
    %v3421 = vunpack.c.h.b16 %v2793
    %v3422 = vunpack.c.l.b16 %v2794
    %v3423 = vunpack.c.l.b16 %v2795
    %v3424 = vunpack.c.h.b16 %v2795
    %v3425 = vunpack.c.l.b16 %v2796
    %v3426 = vunpack.c.l.b16 %v2797
    %v3427 = vunpack.c.h.b16 %v2797
    %v3428 = vunpack.c.l.b16 %v2798
    %v3429 = vunpack.c.l.b16 %v2799
    %v3430 = vunpack.c.h.b16 %v2799
    %v3431 = vunpack.c.l.b16 %v2800
    %v3432 = vunpack.c.l.b16 %v2801
    %v3433 = vunpack.c.h.b16 %v2801
    %v3434 = vunpack.c.l.b16 %v2802
    %v3435 = vunpack.c.l.b16 %v2803
    %v3436 = vunpack.c.h.b16 %v2803
    %v3437 = vunpack.c.l.b16 %v2804
    %v3438 = vunpack.c.l.b16 %v2805
    %v3439 = vunpack.c.h.b16 %v2805
    %v3440 = vunpack.c.l.b16 %v2806
    %v3441 = vunpack.c.l.b16 %v2807
    %v3442 = vunpack.c.h.b16 %v2807
    %v3443 = vunpack.c.l.b16 %v2808
    %v3444 = vunpack.c.l.b16 %v2809
    %v3445 = vunpack.c.h.b16 %v2809
    %v3446 = vunpack.c.l.b16 %v2810
    %v3447 = vunpack.c.l.b16 %v2811
    %v3448 = vunpack.c.h.b16 %v2811
    %v3449 = vunpack.c.l.b16 %v2812
    %v3450 = vunpack.c.l.b16 %v2813
    %v3451 = vunpack.c.h.b16 %v2813
    %v3452 = vunpack.c.l.b16 %v2814
    %v3453 = vunpack.c.l.b16 %v2815
    %v3454 = vunpack.c.h.b16 %v2815
    %v3455 = vunpack.c.l.b16 %v2816
    %v3456 = vunpack.c.l.b16 %v2817
    %v3457 = vunpack.c.h.b16 %v2817
    %v3458 = vunpack.c.l.b16 %v2818
    %v3459 = vunpack.c.l.b16 %v2819
    %v3460 = vunpack.c.h.b16 %v2819
    %v3461 = vunpack.c.l.b16 %v2820
    %v3462 = vunpack.c.l.b16 %v2821
    %v3463 = vunpack.c.h.b16 %v2821
    %v3464 = vunpack.c.l.b16 %v2822
    %v3465 = vunpack.c.l.b16 %v2823
    %v3466 = vunpack.c.h.b16 %v2823
    %v3467 = vunpack.c.l.b16 %v2824
    %v3468 = vunpack.c.l.b16 %v2825
    %v3469 = vunpack.c.h.b16 %v2825
    %v3470 = vunpack.c.l.b16 %v2826
    %v3471 = vunpack.c.l.b16 %v2827
    %v3472 = vunpack.c.h.b16 %v2827
    %v3473 = vunpack.c.l.b16 %v2828
    %v3474 = vunpack.c.l.b16 %v2829
    %v3475 = vunpack.c.h.b16 %v2829
    %v3476 = vunpack.c.l.b16 %v2830
    %v3477 = vunpack.c.l.b16 %v2831
    %v3478 = vunpack.c.h.b16 %v2831
    %v3479 = vunpack.c.l.b16 %v2832
    %v3480 = vunpack.c.l.b16 %v2833
    %v3481 = vunpack.c.h.b16 %v2833
    %v3482 = vunpack.c.l.b16 %v2834
    %v3483 = vunpack.c.l.b16 %v2835
    %v3484 = vunpack.c.h.b16 %v2835
    %v3485 = vunpack.c.l.b16 %v2836
    %v3486 = vunpack.c.l.b16 %v2837
    %v3487 = vunpack.c.h.b16 %v2837
    %v3488 = vunpack.c.l.b16 %v2838
    %v3489 = vunpack.c.l.b16 %v2839
    %v3490 = vunpack.c.h.b16 %v2839
    %v3491 = vunpack.c.l.b16 %v2840
    %v3492 = vunpack.c.l.b16 %v2841
    %v3493 = vunpack.c.h.b16 %v2841
    %v3494 = vunpack.c.l.b16 %v2842
    %v3495 = vunpack.c.l.b16 %v2843
    %v3496 = vunpack.c.h.b16 %v2843
    %v3497 = vunpack.c.l.b16 %v2844
    %v3498 = vunpack.c.l.b16 %v2845
    %v3499 = vunpack.c.h.b16 %v2845
    %v3500 = vunpack.c.l.b16 %v2846
    %v3501 = vunpack.c.l.b16 %v2847
    %v3502 = vunpack.c.h.b16 %v2847
    %v3503 = vunpack.c.l.b16 %v2848
    %v3504 = vunpack.c.l.b16 %v2849
    %v3505 = vunpack.c.h.b16 %v2849
    %v3506 = vunpack.c.l.b16 %v2850
    %v3507 = vunpack.c.l.b16 %v2851
    %v3508 = vunpack.c.h.b16 %v2851
    %v3509 = vunpack.c.l.b16 %v2852
    %v3510 = vunpack.c.l.b16 %v2853
    %v3511 = vunpack.c.h.b16 %v2853
    %v3512 = vunpack.c.l.b16 %v2854
    %v3513 = vunpack.c.l.b16 %v2855
    %v3514 = vunpack.c.h.b16 %v2855
    %v3515 = vunpack.c.l.b16 %v2856
    %v3516 = vunpack.c.l.b16 %v2857
    %v3517 = vunpack.c.h.b16 %v2857
    %v3518 = vunpack.c.l.b16 %v2858
    %v3519 = vunpack.c.l.b16 %v2859
    %v3520 = vunpack.c.h.b16 %v2859
    %v3521 = vunpack.c.l.b16 %v2860
    %v3522 = vunpack.c.l.b16 %v2861
    %v3523 = vunpack.c.h.b16 %v2861
    %v3524 = vunpack.c.l.b16 %v2862
    %v3525 = vunpack.c.l.b16 %v2863
    %v3526 = vunpack.c.h.b16 %v2863
    %v3527 = vunpack.c.l.b16 %v2864
    %v3528 = vunpack.c.l.b16 %v2865
    %v3529 = vunpack.c.h.b16 %v2865
    %v3530 = vunpack.c.l.b16 %v2866
    %v3531 = vunpack.c.l.b16 %v2867
    %v3532 = vunpack.c.h.b16 %v2867
    %v3533 = vunpack.c.l.b16 %v2868
    %v3534 = vunpack.c.l.b16 %v2869
    %v3535 = vunpack.c.h.b16 %v2869
    %v3536 = vunpack.c.l.b16 %v2870
    %v3537 = vunpack.c.l.b16 %v2871
    %v3538 = vunpack.c.h.b16 %v2871
    %v3539 = vunpack.c.l.b16 %v2872
    %v3540 = vunpack.c.l.b16 %v2873
    %v3541 = vunpack.c.h.b16 %v2873
    %v3542 = vunpack.c.l.b16 %v2874
    %v3543 = vunpack.c.l.b16 %v2875
    %v3544 = vunpack.c.h.b16 %v2875
    %v3545 = vunpack.c.l.b16 %v2876
    %v3546 = vunpack.c.l.b16 %v2877
    %v3547 = vunpack.c.h.b16 %v2877
    %v3548 = vunpack.c.l.b16 %v2878
    %v3549 = vunpack.c.l.b16 %v2879
    %v3550 = vunpack.c.h.b16 %v2879
    %v3551 = vunpack.c.l.b16 %v2880
    %v3552 = vunpack.c.l.b16 %v2881
    %v3553 = vunpack.c.h.b16 %v2881
    %v3554 = vunpack.c.l.b16 %v2882
    %v3555 = vunpack.c.l.b16 %v2883
    %v3556 = vunpack.c.h.b16 %v2883
    %v3557 = vunpack.c.l.b16 %v2884
    %v3558 = vunpack.c.l.b16 %v2885
    %v3559 = vunpack.c.h.b16 %v2885
    %v3560 = vunpack.c.l.b16 %v2886
    %v3561 = vunpack.c.l.b16 %v2887
    %v3562 = vunpack.c.h.b16 %v2887
    %v3563 = vunpack.c.l.b16 %v2888
    %v3564 = vunpack.c.l.b16 %v2889
    %v3565 = vunpack.c.h.b16 %v2889
    %v3566 = vunpack.c.l.b16 %v2890
    %v3567 = vunpack.c.l.b16 %v2891
    %v3568 = vunpack.c.h.b16 %v2891
    %v3569 = vunpack.c.l.b16 %v2892
    %v3570 = vunpack.c.l.b16 %v2893
    %v3571 = vunpack.c.h.b16 %v2893
    %v3572 = vunpack.c.l.b16 %v2894
    %v3573 = vunpack.c.l.b16 %v2895
    %v3574 = vunpack.c.h.b16 %v2895
    %v3575 = vunpack.c.l.b16 %v2896
    %v3576 = vunpack.c.l.b16 %v2897
    %v3577 = vunpack.c.h.b16 %v2897
    %v3578 = vunpack.c.l.b16 %v2898
    %v3579 = vunpack.c.l.b16 %v2899
    %v3580 = vunpack.c.h.b16 %v2899
    %v3581 = vunpack.c.l.b16 %v2900
    %v3582 = vunpack.c.l.b16 %v2901
    %v3583 = vunpack.c.h.b16 %v2901
    %v3584 = vunpack.c.l.b16 %v2902
    %v3585 = vunpack.c.l.b16 %v2903
    %v3586 = vunpack.c.h.b16 %v2903
    %v3587 = vunpack.c.l.b16 %v2904
    %v3588 = vunpack.c.l.b16 %v2905
    %v3589 = vunpack.c.h.b16 %v2905
    %v3590 = vunpack.c.l.b16 %v2906
    %v3591 = vunpack.c.l.b16 %v2907
    %v3592 = vunpack.c.h.b16 %v2907
    %v3593 = vunpack.c.l.b16 %v2908
    %v3594 = vpack.c.b16 %v3213, %v3210
    %v3595 = vpack.c.b16 %v3214, %v3211
    %v3596 = vpack.c.b16 %v3215, %v3212
    %v3597 = vpack.c.b16 %v3219, %v3216
    %v3598 = vpack.c.b16 %v3220, %v3217
    %v3599 = vpack.c.b16 %v3221, %v3218
    %v3600 = vpack.c.b16 %v3225, %v3222
    %v3601 = vpack.c.b16 %v3226, %v3223
    %v3602 = vpack.c.b16 %v3227, %v3224
    %v3603 = vpack.c.b16 %v3231, %v3228
    %v3604 = vpack.c.b16 %v3232, %v3229
    %v3605 = vpack.c.b16 %v3233, %v3230
    %v3606 = vpack.c.b16 %v3237, %v3234
    %v3607 = vpack.c.b16 %v3238, %v3235
    %v3608 = vpack.c.b16 %v3239, %v3236
    %v3609 = vpack.c.b16 %v3243, %v3240
    %v3610 = vpack.c.b16 %v3244, %v3241
    %v3611 = vpack.c.b16 %v3245, %v3242
    %v3612 = vpack.c.b16 %v3249, %v3246
    %v3613 = vpack.c.b16 %v3250, %v3247
    %v3614 = vpack.c.b16 %v3251, %v3248
    %v3615 = vpack.c.b16 %v3255, %v3252
    %v3616 = vpack.c.b16 %v3256, %v3253
    %v3617 = vpack.c.b16 %v3257, %v3254
    %v3618 = vpack.c.b16 %v3261, %v3258
    %v3619 = vpack.c.b16 %v3262, %v3259
    %v3620 = vpack.c.b16 %v3263, %v3260
    %v3621 = vpack.c.b16 %v3267, %v3264
    %v3622 = vpack.c.b16 %v3268, %v3265
    %v3623 = vpack.c.b16 %v3269, %v3266
    %v3624 = vpack.c.b16 %v3273, %v3270
    %v3625 = vpack.c.b16 %v3274, %v3271
    %v3626 = vpack.c.b16 %v3275, %v3272
    %v3627 = vpack.c.b16 %v3279, %v3276
    %v3628 = vpack.c.b16 %v3280, %v3277
    %v3629 = vpack.c.b16 %v3281, %v3278
    %v3630 = vpack.c.b16 %v3285, %v3282
    %v3631 = vpack.c.b16 %v3286, %v3283
    %v3632 = vpack.c.b16 %v3287, %v3284
    %v3633 = vpack.c.b16 %v3291, %v3288
    %v3634 = vpack.c.b16 %v3292, %v3289
    %v3635 = vpack.c.b16 %v3293, %v3290
    %v3636 = vpack.c.b16 %v3297, %v3294
    %v3637 = vpack.c.b16 %v3298, %v3295
    %v3638 = vpack.c.b16 %v3299, %v3296
    %v3639 = vpack.c.b16 %v3303, %v3300
    %v3640 = vpack.c.b16 %v3304, %v3301
    %v3641 = vpack.c.b16 %v3305, %v3302
    %v3642 = vpack.c.b16 %v3309, %v3306
    %v3643 = vpack.c.b16 %v3310, %v3307
    %v3644 = vpack.c.b16 %v3311, %v3308
    %v3645 = vpack.c.b16 %v3315, %v3312
    %v3646 = vpack.c.b16 %v3316, %v3313
    %v3647 = vpack.c.b16 %v3317, %v3314
    %v3648 = vpack.c.b16 %v3321, %v3318
    %v3649 = vpack.c.b16 %v3322, %v3319
    %v3650 = vpack.c.b16 %v3323, %v3320
    %v3651 = vpack.c.b16 %v3327, %v3324
    %v3652 = vpack.c.b16 %v3328, %v3325
    %v3653 = vpack.c.b16 %v3329, %v3326
    %v3654 = vpack.c.b16 %v3333, %v3330
    %v3655 = vpack.c.b16 %v3334, %v3331
    %v3656 = vpack.c.b16 %v3335, %v3332
    %v3657 = vpack.c.b16 %v3339, %v3336
    %v3658 = vpack.c.b16 %v3340, %v3337
    %v3659 = vpack.c.b16 %v3341, %v3338
    %v3660 = vpack.c.b16 %v3345, %v3342
    %v3661 = vpack.c.b16 %v3346, %v3343
    %v3662 = vpack.c.b16 %v3347, %v3344
    %v3663 = vpack.c.b16 %v3351, %v3348
    %v3664 = vpack.c.b16 %v3352, %v3349
    %v3665 = vpack.c.b16 %v3353, %v3350
    %v3666 = vpack.c.b16 %v3357, %v3354
    %v3667 = vpack.c.b16 %v3358, %v3355
    %v3668 = vpack.c.b16 %v3359, %v3356
    %v3669 = vpack.c.b16 %v3363, %v3360
    %v3670 = vpack.c.b16 %v3364, %v3361
    %v3671 = vpack.c.b16 %v3365, %v3362
    %v3672 = vpack.c.b16 %v3369, %v3366
    %v3673 = vpack.c.b16 %v3370, %v3367
    %v3674 = vpack.c.b16 %v3371, %v3368
    %v3675 = vpack.c.b16 %v3375, %v3372
    %v3676 = vpack.c.b16 %v3376, %v3373
    %v3677 = vpack.c.b16 %v3377, %v3374
    %v3678 = vpack.c.b16 %v3381, %v3378
    %v3679 = vpack.c.b16 %v3382, %v3379
    %v3680 = vpack.c.b16 %v3383, %v3380
    %v3681 = vpack.c.b16 %v3387, %v3384
    %v3682 = vpack.c.b16 %v3388, %v3385
    %v3683 = vpack.c.b16 %v3389, %v3386
    %v3684 = vpack.c.b16 %v3393, %v3390
    %v3685 = vpack.c.b16 %v3394, %v3391
    %v3686 = vpack.c.b16 %v3395, %v3392
    %v3687 = vpack.c.b16 %v3399, %v3396
    %v3688 = vpack.c.b16 %v3400, %v3397
    %v3689 = vpack.c.b16 %v3401, %v3398
    %v3690 = vpack.c.b16 %v3405, %v3402
    %v3691 = vpack.c.b16 %v3406, %v3403
    %v3692 = vpack.c.b16 %v3407, %v3404
    %v3693 = vpack.c.b16 %v3411, %v3408
    %v3694 = vpack.c.b16 %v3412, %v3409
    %v3695 = vpack.c.b16 %v3413, %v3410
    %v3696 = vpack.c.b16 %v3417, %v3414
    %v3697 = vpack.c.b16 %v3418, %v3415
    %v3698 = vpack.c.b16 %v3419, %v3416
    %v3699 = vpack.c.b16 %v3423, %v3420
    %v3700 = vpack.c.b16 %v3424, %v3421
    %v3701 = vpack.c.b16 %v3425, %v3422
    %v3702 = vpack.c.b16 %v3429, %v3426
    %v3703 = vpack.c.b16 %v3430, %v3427
    %v3704 = vpack.c.b16 %v3431, %v3428
    %v3705 = vpack.c.b16 %v3435, %v3432
    %v3706 = vpack.c.b16 %v3436, %v3433
    %v3707 = vpack.c.b16 %v3437, %v3434
    %v3708 = vpack.c.b16 %v3441, %v3438
    %v3709 = vpack.c.b16 %v3442, %v3439
    %v3710 = vpack.c.b16 %v3443, %v3440
    %v3711 = vpack.c.b16 %v3447, %v3444
    %v3712 = vpack.c.b16 %v3448, %v3445
    %v3713 = vpack.c.b16 %v3449, %v3446
    %v3714 = vpack.c.b16 %v3453, %v3450
    %v3715 = vpack.c.b16 %v3454, %v3451
    %v3716 = vpack.c.b16 %v3455, %v3452
    %v3717 = vpack.c.b16 %v3459, %v3456
    %v3718 = vpack.c.b16 %v3460, %v3457
    %v3719 = vpack.c.b16 %v3461, %v3458
    %v3720 = vpack.c.b16 %v3465, %v3462
    %v3721 = vpack.c.b16 %v3466, %v3463
    %v3722 = vpack.c.b16 %v3467, %v3464
    %v3723 = vpack.c.b16 %v3471, %v3468
    %v3724 = vpack.c.b16 %v3472, %v3469
    %v3725 = vpack.c.b16 %v3473, %v3470
    %v3726 = vpack.c.b16 %v3477, %v3474
    %v3727 = vpack.c.b16 %v3478, %v3475
    %v3728 = vpack.c.b16 %v3479, %v3476
    %v3729 = vpack.c.b16 %v3483, %v3480
    %v3730 = vpack.c.b16 %v3484, %v3481
    %v3731 = vpack.c.b16 %v3485, %v3482
    %v3732 = vpack.c.b16 %v3489, %v3486
    %v3733 = vpack.c.b16 %v3490, %v3487
    %v3734 = vpack.c.b16 %v3491, %v3488
    %v3735 = vpack.c.b16 %v3495, %v3492
    %v3736 = vpack.c.b16 %v3496, %v3493
    %v3737 = vpack.c.b16 %v3497, %v3494
    %v3738 = vpack.c.b16 %v3501, %v3498
    %v3739 = vpack.c.b16 %v3502, %v3499
    %v3740 = vpack.c.b16 %v3503, %v3500
    %v3741 = vpack.c.b16 %v3507, %v3504
    %v3742 = vpack.c.b16 %v3508, %v3505
    %v3743 = vpack.c.b16 %v3509, %v3506
    %v3744 = vpack.c.b16 %v3513, %v3510
    %v3745 = vpack.c.b16 %v3514, %v3511
    %v3746 = vpack.c.b16 %v3515, %v3512
    %v3747 = vpack.c.b16 %v3519, %v3516
    %v3748 = vpack.c.b16 %v3520, %v3517
    %v3749 = vpack.c.b16 %v3521, %v3518
    %v3750 = vpack.c.b16 %v3525, %v3522
    %v3751 = vpack.c.b16 %v3526, %v3523
    %v3752 = vpack.c.b16 %v3527, %v3524
    %v3753 = vpack.c.b16 %v3531, %v3528
    %v3754 = vpack.c.b16 %v3532, %v3529
    %v3755 = vpack.c.b16 %v3533, %v3530
    %v3756 = vpack.c.b16 %v3537, %v3534
    %v3757 = vpack.c.b16 %v3538, %v3535
    %v3758 = vpack.c.b16 %v3539, %v3536
    %v3759 = vpack.c.b16 %v3543, %v3540
    %v3760 = vpack.c.b16 %v3544, %v3541
    %v3761 = vpack.c.b16 %v3545, %v3542
    %v3762 = vpack.c.b16 %v3549, %v3546
    %v3763 = vpack.c.b16 %v3550, %v3547
    %v3764 = vpack.c.b16 %v3551, %v3548
    %v3765 = vpack.c.b16 %v3555, %v3552
    %v3766 = vpack.c.b16 %v3556, %v3553
    %v3767 = vpack.c.b16 %v3557, %v3554
    %v3768 = vpack.c.b16 %v3561, %v3558
    %v3769 = vpack.c.b16 %v3562, %v3559
    %v3770 = vpack.c.b16 %v3563, %v3560
    %v3771 = vpack.c.b16 %v3567, %v3564
    %v3772 = vpack.c.b16 %v3568, %v3565
    %v3773 = vpack.c.b16 %v3569, %v3566
    %v3774 = vpack.c.b16 %v3573, %v3570
    %v3775 = vpack.c.b16 %v3574, %v3571
    %v3776 = vpack.c.b16 %v3575, %v3572
    %v3777 = vpack.c.b16 %v3579, %v3576
    %v3778 = vpack.c.b16 %v3580, %v3577
    %v3779 = vpack.c.b16 %v3581, %v3578
    %v3780 = vpack.c.b16 %v3585, %v3582
    %v3781 = vpack.c.b16 %v3586, %v3583
    %v3782 = vpack.c.b16 %v3587, %v3584
    %v3783 = vpack.c.b16 %v3591, %v3588
    %v3784 = vpack.c.b16 %v3592, %v3589
    %v3785 = vpack.c.b16 %v3593, %v3590
    %3978 = vmatprep.subr.bf16.mxu0 %v3595
    %3979 = vmatpush1.bf16.msra.mxu0 %v3594
    %3980 = vmatprep.subr.bf16.mxu0 %v3598
    %3981 = vmatpush1.bf16.msra.mxu0 %v3597
    %3982 = vmatprep.subr.bf16.mxu0 %v3601
    %3983 = vmatpush1.bf16.msra.mxu0 %v3600
    %3984 = vmatprep.subr.bf16.mxu0 %v3604
    %3985 = vmatpush1.bf16.msra.mxu0 %v3603
    %3986 = vmatprep.subr.bf16.mxu0 %v3607
    %3987 = vmatpush1.bf16.msra.mxu0 %v3606
    %3988 = vmatprep.subr.bf16.mxu0 %v3610
    %3989 = vmatpush1.bf16.msra.mxu0 %v3609
    %3990 = vmatprep.subr.bf16.mxu0 %v3613
    %3991 = vmatpush1.bf16.msra.mxu0 %v3612
    %3992 = vmatprep.subr.bf16.mxu0 %v3616
    %3993 = vmatpush1.bf16.msra.mxu0 %v3615
    %3994 = vmatprep.subr.bf16.mxu0 %v3619
    %3995 = vmatpush1.bf16.msra.mxu0 %v3618
    %3996 = vmatprep.subr.bf16.mxu0 %v3622
    %3997 = vmatpush1.bf16.msra.mxu0 %v3621
    %3998 = vmatprep.subr.bf16.mxu0 %v3625
    %3999 = vmatpush1.bf16.msra.mxu0 %v3624
    %4000 = vmatprep.subr.bf16.mxu0 %v3628
    %4001 = vmatpush1.bf16.msra.mxu0 %v3627
    %4002 = vmatprep.subr.bf16.mxu0 %v3631
    %4003 = vmatpush1.bf16.msra.mxu0 %v3630
    %4004 = vmatprep.subr.bf16.mxu0 %v3634
    %4005 = vmatpush1.bf16.msra.mxu0 %v3633
    %4006 = vmatprep.subr.bf16.mxu0 %v3637
    %4007 = vmatpush1.bf16.msra.mxu0 %v3636
    %4008 = vmatprep.subr.bf16.mxu0 %v3640
    %4009 = vmatpush1.bf16.msra.mxu0 %v3639
    %4010 = vmatprep.mubr.bf16.mxu0 %v2939
    %4011 = vmatmul.mubr.bf16.gmra.mrb[0].mxu0 %v2938
    %v4012 = vpop.f32.mrb[0].mxu0
    %v4013 = vadd.f32 %v2914, %v4012
    %v4014 = vpop.f32.mrb[0].mxu0
    %v4015 = vadd.f32 %v2918, %v4014
    %v4016 = vpop.f32.mrb[0].mxu0
    %v4017 = vpop.f32.mrb[0].mxu0
    %4018 = vdwg.mxu0
    %4019 = vmatprep.subr.bf16.mxu0 %v3643
    %4020 = vmatpush1.bf16.msra.mxu0 %v3642
    %4021 = vmatprep.subr.bf16.mxu0 %v3646
    %4022 = vmatpush1.bf16.msra.mxu0 %v3645
    %4023 = vmatprep.subr.bf16.mxu0 %v3649
    %4024 = vmatpush1.bf16.msra.mxu0 %v3648
    %4025 = vmatprep.subr.bf16.mxu0 %v3652
    %4026 = vmatpush1.bf16.msra.mxu0 %v3651
    %4027 = vmatprep.subr.bf16.mxu0 %v3655
    %4028 = vmatpush1.bf16.msra.mxu0 %v3654
    %4029 = vmatprep.subr.bf16.mxu0 %v3658
    %4030 = vmatpush1.bf16.msra.mxu0 %v3657
    %4031 = vmatprep.subr.bf16.mxu0 %v3661
    %4032 = vmatpush1.bf16.msra.mxu0 %v3660
    %4033 = vmatprep.subr.bf16.mxu0 %v3664
    %4034 = vmatpush1.bf16.msra.mxu0 %v3663
    %4035 = vmatprep.subr.bf16.mxu0 %v3667
    %4036 = vmatpush1.bf16.msra.mxu0 %v3666
    %4037 = vmatprep.subr.bf16.mxu0 %v3670
    %4038 = vmatpush1.bf16.msra.mxu0 %v3669
    %4039 = vmatprep.subr.bf16.mxu0 %v3673
    %4040 = vmatpush1.bf16.msra.mxu0 %v3672
    %4041 = vmatprep.subr.bf16.mxu0 %v3676
    %4042 = vmatpush1.bf16.msra.mxu0 %v3675
    %4043 = vmatprep.subr.bf16.mxu0 %v3679
    %4044 = vmatpush1.bf16.msra.mxu0 %v3678
    %4045 = vmatprep.subr.bf16.mxu0 %v3682
    %4046 = vmatpush1.bf16.msra.mxu0 %v3681
    %4047 = vmatprep.subr.bf16.mxu0 %v3685
    %4048 = vmatpush1.bf16.msra.mxu0 %v3684
    %4049 = vmatprep.subr.bf16.mxu0 %v3688
    %4050 = vmatpush1.bf16.msra.mxu0 %v3687
    %4051 = vmatprep.mubr.bf16.mxu0 %v2941
    %4052 = vmatmul.mubr.bf16.gmra.mrb[0].mxu0 %v2940
    %v4053 = vpop.f32.mrb[0].mxu0
    %v4054 = vadd.f32 %v4013, %v4053
    %v4055 = vpop.f32.mrb[0].mxu0
    %v4056 = vadd.f32 %v4015, %v4055
    %v4057 = vpop.f32.mrb[0].mxu0
    %v4058 = vpop.f32.mrb[0].mxu0
    %4059 = vdwg.mxu0
    %4060 = vmatprep.subr.bf16.mxu0 %v3691
    %4061 = vmatpush1.bf16.msra.mxu0 %v3690
    %4062 = vmatprep.subr.bf16.mxu0 %v3694
    %4063 = vmatpush1.bf16.msra.mxu0 %v3693
    %4064 = vmatprep.subr.bf16.mxu0 %v3697
    %4065 = vmatpush1.bf16.msra.mxu0 %v3696
    %4066 = vmatprep.subr.bf16.mxu0 %v3700
    %4067 = vmatpush1.bf16.msra.mxu0 %v3699
    %4068 = vmatprep.subr.bf16.mxu0 %v3703
    %4069 = vmatpush1.bf16.msra.mxu0 %v3702
    %4070 = vmatprep.subr.bf16.mxu0 %v3706
    %4071 = vmatpush1.bf16.msra.mxu0 %v3705
    %4072 = vmatprep.subr.bf16.mxu0 %v3709
    %4073 = vmatpush1.bf16.msra.mxu0 %v3708
    %4074 = vmatprep.subr.bf16.mxu0 %v3712
    %4075 = vmatpush1.bf16.msra.mxu0 %v3711
    %4076 = vmatprep.subr.bf16.mxu0 %v3715
    %4077 = vmatpush1.bf16.msra.mxu0 %v3714
    %4078 = vmatprep.subr.bf16.mxu0 %v3718
    %4079 = vmatpush1.bf16.msra.mxu0 %v3717
    %4080 = vmatprep.subr.bf16.mxu0 %v3721
    %4081 = vmatpush1.bf16.msra.mxu0 %v3720
    %4082 = vmatprep.subr.bf16.mxu0 %v3724
    %4083 = vmatpush1.bf16.msra.mxu0 %v3723
    %4084 = vmatprep.subr.bf16.mxu0 %v3727
    %4085 = vmatpush1.bf16.msra.mxu0 %v3726
    %4086 = vmatprep.subr.bf16.mxu0 %v3730
    %4087 = vmatpush1.bf16.msra.mxu0 %v3729
    %4088 = vmatprep.subr.bf16.mxu0 %v3733
    %4089 = vmatpush1.bf16.msra.mxu0 %v3732
    %4090 = vmatprep.subr.bf16.mxu0 %v3736
    %4091 = vmatpush1.bf16.msra.mxu0 %v3735
    %4092 = vmatprep.mubr.bf16.mxu0 %v2943
    %4093 = vmatmul.mubr.bf16.gmra.mrb[0].mxu0 %v2942
    %v4094 = vpop.f32.mrb[0].mxu0
    %v4095 = vadd.f32 %v4054, %v4094
    %v4096 = vpop.f32.mrb[0].mxu0
    %v4097 = vadd.f32 %v4056, %v4096
    %v4098 = vpop.f32.mrb[0].mxu0
    %v4099 = vpop.f32.mrb[0].mxu0
    %4100 = vdwg.mxu0
    %4101 = vmatprep.subr.bf16.mxu0 %v3739
    %4102 = vmatpush1.bf16.msra.mxu0 %v3738
    %4103 = vmatprep.subr.bf16.mxu0 %v3742
    %4104 = vmatpush1.bf16.msra.mxu0 %v3741
    %4105 = vmatprep.subr.bf16.mxu0 %v3745
    %4106 = vmatpush1.bf16.msra.mxu0 %v3744
    %4107 = vmatprep.subr.bf16.mxu0 %v3748
    %4108 = vmatpush1.bf16.msra.mxu0 %v3747
    %4109 = vmatprep.subr.bf16.mxu0 %v3751
    %4110 = vmatpush1.bf16.msra.mxu0 %v3750
    %4111 = vmatprep.subr.bf16.mxu0 %v3754
    %4112 = vmatpush1.bf16.msra.mxu0 %v3753
    %4113 = vmatprep.subr.bf16.mxu0 %v3757
    %4114 = vmatpush1.bf16.msra.mxu0 %v3756
    %4115 = vmatprep.subr.bf16.mxu0 %v3760
    %4116 = vmatpush1.bf16.msra.mxu0 %v3759
    %4117 = vmatprep.subr.bf16.mxu0 %v3763
    %4118 = vmatpush1.bf16.msra.mxu0 %v3762
    %4119 = vmatprep.subr.bf16.mxu0 %v3766
    %4120 = vmatpush1.bf16.msra.mxu0 %v3765
    %4121 = vmatprep.subr.bf16.mxu0 %v3769
    %4122 = vmatpush1.bf16.msra.mxu0 %v3768
    %4123 = vmatprep.subr.bf16.mxu0 %v3772
    %4124 = vmatpush1.bf16.msra.mxu0 %v3771
    %4125 = vmatprep.subr.bf16.mxu0 %v3775
    %4126 = vmatpush1.bf16.msra.mxu0 %v3774
    %4127 = vmatprep.subr.bf16.mxu0 %v3778
    %4128 = vmatpush1.bf16.msra.mxu0 %v3777
    %4129 = vmatprep.subr.bf16.mxu0 %v3781
    %4130 = vmatpush1.bf16.msra.mxu0 %v3780
    %4131 = vmatprep.subr.bf16.mxu0 %v3784
    %4132 = vmatpush1.bf16.msra.mxu0 %v3783
    %4133 = vmatprep.mubr.bf16.mxu0 %v2945
    %4134 = vmatmul.mubr.bf16.gmra.mrb[0].mxu0 %v2944
    %v4135 = vpop.f32.mrb[0].mxu0
    %v4136 = vadd.f32 %v4095, %v4135
    %v4137 = vpop.f32.mrb[0].mxu0
    %v4138 = vadd.f32 %v4097, %v4137
    %v4139 = vpop.f32.mrb[0].mxu0
    %v4140 = vpop.f32.mrb[0].mxu0
    %4141 = vdwg.mxu0
    %4142 = vmatprep.subr.bf16.mxu0 0
    %4143 = vmatpush1.bf16.msra.mxu0 %v3596
    %4144 = vmatprep.subr.bf16.mxu0 0
    %4145 = vmatpush1.bf16.msra.mxu0 %v3599
    %4146 = vmatprep.subr.bf16.mxu0 0
    %4147 = vmatpush1.bf16.msra.mxu0 %v3602
    %4148 = vmatprep.subr.bf16.mxu0 0
    %4149 = vmatpush1.bf16.msra.mxu0 %v3605
    %4150 = vmatprep.subr.bf16.mxu0 0
    %4151 = vmatpush1.bf16.msra.mxu0 %v3608
    %4152 = vmatprep.subr.bf16.mxu0 0
    %4153 = vmatpush1.bf16.msra.mxu0 %v3611
    %4154 = vmatprep.subr.bf16.mxu0 0
    %4155 = vmatpush1.bf16.msra.mxu0 %v3614
    %4156 = vmatprep.subr.bf16.mxu0 0
    %4157 = vmatpush1.bf16.msra.mxu0 %v3617
    %4158 = vmatprep.subr.bf16.mxu0 0
    %4159 = vmatpush1.bf16.msra.mxu0 %v3620
    %4160 = vmatprep.subr.bf16.mxu0 0
    %4161 = vmatpush1.bf16.msra.mxu0 %v3623
    %4162 = vmatprep.subr.bf16.mxu0 0
    %4163 = vmatpush1.bf16.msra.mxu0 %v3626
    %4164 = vmatprep.subr.bf16.mxu0 0
    %4165 = vmatpush1.bf16.msra.mxu0 %v3629
    %4166 = vmatprep.subr.bf16.mxu0 0
    %4167 = vmatpush1.bf16.msra.mxu0 %v3632
    %4168 = vmatprep.subr.bf16.mxu0 0
    %4169 = vmatpush1.bf16.msra.mxu0 %v3635
    %4170 = vmatprep.subr.bf16.mxu0 0
    %4171 = vmatpush1.bf16.msra.mxu0 %v3638
    %4172 = vmatprep.subr.bf16.mxu0 0
    %4173 = vmatpush1.bf16.msra.mxu0 %v3641
    %4174 = vmatprep.mubr.bf16.mxu0 %v2939
    %4175 = vmatmul.mubr.bf16.gmra.mrb[0].mxu0 %v2938
    %v4176 = vpop.f32.mrb[0].mxu0
    %v4177 = vadd.f32 %v2922, %v4176
    %v4178 = vpop.f32.mrb[0].mxu0
    %v4179 = vpop.f32.mrb[0].mxu0
    %v4180 = vpop.f32.mrb[0].mxu0
    %4181 = vdwg.mxu0
    %4182 = vmatprep.subr.bf16.mxu0 0
    %4183 = vmatpush1.bf16.msra.mxu0 %v3644
    %4184 = vmatprep.subr.bf16.mxu0 0
    %4185 = vmatpush1.bf16.msra.mxu0 %v3647
    %4186 = vmatprep.subr.bf16.mxu0 0
    %4187 = vmatpush1.bf16.msra.mxu0 %v3650
    %4188 = vmatprep.subr.bf16.mxu0 0
    %4189 = vmatpush1.bf16.msra.mxu0 %v3653
    %4190 = vmatprep.subr.bf16.mxu0 0
    %4191 = vmatpush1.bf16.msra.mxu0 %v3656
    %4192 = vmatprep.subr.bf16.mxu0 0
    %4193 = vmatpush1.bf16.msra.mxu0 %v3659
    %4194 = vmatprep.subr.bf16.mxu0 0
    %4195 = vmatpush1.bf16.msra.mxu0 %v3662
    %4196 = vmatprep.subr.bf16.mxu0 0
    %4197 = vmatpush1.bf16.msra.mxu0 %v3665
    %4198 = vmatprep.subr.bf16.mxu0 0
    %4199 = vmatpush1.bf16.msra.mxu0 %v3668
    %4200 = vmatprep.subr.bf16.mxu0 0
    %4201 = vmatpush1.bf16.msra.mxu0 %v3671
    %4202 = vmatprep.subr.bf16.mxu0 0
    %4203 = vmatpush1.bf16.msra.mxu0 %v3674
    %4204 = vmatprep.subr.bf16.mxu0 0
    %4205 = vmatpush1.bf16.msra.mxu0 %v3677
    %4206 = vmatprep.subr.bf16.mxu0 0
    %4207 = vmatpush1.bf16.msra.mxu0 %v3680
    %4208 = vmatprep.subr.bf16.mxu0 0
    %4209 = vmatpush1.bf16.msra.mxu0 %v3683
    %4210 = vmatprep.subr.bf16.mxu0 0
    %4211 = vmatpush1.bf16.msra.mxu0 %v3686
    %4212 = vmatprep.subr.bf16.mxu0 0
    %4213 = vmatpush1.bf16.msra.mxu0 %v3689
    %4214 = vmatprep.mubr.bf16.mxu0 %v2941
    %4215 = vmatmul.mubr.bf16.gmra.mrb[0].mxu0 %v2940
    %v4216 = vpop.f32.mrb[0].mxu0
    %v4217 = vadd.f32 %v4177, %v4216
    %v4218 = vpop.f32.mrb[0].mxu0
    %v4219 = vpop.f32.mrb[0].mxu0
    %v4220 = vpop.f32.mrb[0].mxu0
    %4221 = vdwg.mxu0
    %4222 = vmatprep.subr.bf16.mxu0 0
    %4223 = vmatpush1.bf16.msra.mxu0 %v3692
    %4224 = vmatprep.subr.bf16.mxu0 0
    %4225 = vmatpush1.bf16.msra.mxu0 %v3695
    %4226 = vmatprep.subr.bf16.mxu0 0
    %4227 = vmatpush1.bf16.msra.mxu0 %v3698
    %4228 = vmatprep.subr.bf16.mxu0 0
    %4229 = vmatpush1.bf16.msra.mxu0 %v3701
    %4230 = vmatprep.subr.bf16.mxu0 0
    %4231 = vmatpush1.bf16.msra.mxu0 %v3704
    %4232 = vmatprep.subr.bf16.mxu0 0
    %4233 = vmatpush1.bf16.msra.mxu0 %v3707
    %4234 = vmatprep.subr.bf16.mxu0 0
    %4235 = vmatpush1.bf16.msra.mxu0 %v3710
    %4236 = vmatprep.subr.bf16.mxu0 0
    %4237 = vmatpush1.bf16.msra.mxu0 %v3713
    %4238 = vmatprep.subr.bf16.mxu0 0
    %4239 = vmatpush1.bf16.msra.mxu0 %v3716
    %4240 = vmatprep.subr.bf16.mxu0 0
    %4241 = vmatpush1.bf16.msra.mxu0 %v3719
    %4242 = vmatprep.subr.bf16.mxu0 0
    %4243 = vmatpush1.bf16.msra.mxu0 %v3722
    %4244 = vmatprep.subr.bf16.mxu0 0
    %4245 = vmatpush1.bf16.msra.mxu0 %v3725
    %4246 = vmatprep.subr.bf16.mxu0 0
    %4247 = vmatpush1.bf16.msra.mxu0 %v3728
    %4248 = vmatprep.subr.bf16.mxu0 0
    %4249 = vmatpush1.bf16.msra.mxu0 %v3731
    %4250 = vmatprep.subr.bf16.mxu0 0
    %4251 = vmatpush1.bf16.msra.mxu0 %v3734
    %4252 = vmatprep.subr.bf16.mxu0 0
    %4253 = vmatpush1.bf16.msra.mxu0 %v3737
    %4254 = vmatprep.mubr.bf16.mxu0 %v2943
    %4255 = vmatmul.mubr.bf16.gmra.mrb[0].mxu0 %v2942
    %v4256 = vpop.f32.mrb[0].mxu0
    %v4257 = vadd.f32 %v4217, %v4256
    %v4258 = vpop.f32.mrb[0].mxu0
    %v4259 = vpop.f32.mrb[0].mxu0
    %v4260 = vpop.f32.mrb[0].mxu0
    %4261 = vdwg.mxu0
    %4262 = vmatprep.subr.bf16.mxu0 0
    %4263 = vmatpush1.bf16.msra.mxu0 %v3740
    %4264 = vmatprep.subr.bf16.mxu0 0
    %4265 = vmatpush1.bf16.msra.mxu0 %v3743
    %4266 = vmatprep.subr.bf16.mxu0 0
    %4267 = vmatpush1.bf16.msra.mxu0 %v3746
    %4268 = vmatprep.subr.bf16.mxu0 0
    %4269 = vmatpush1.bf16.msra.mxu0 %v3749
    %4270 = vmatprep.subr.bf16.mxu0 0
    %4271 = vmatpush1.bf16.msra.mxu0 %v3752
    %4272 = vmatprep.subr.bf16.mxu0 0
    %4273 = vmatpush1.bf16.msra.mxu0 %v3755
    %4274 = vmatprep.subr.bf16.mxu0 0
    %4275 = vmatpush1.bf16.msra.mxu0 %v3758
    %4276 = vmatprep.subr.bf16.mxu0 0
    %4277 = vmatpush1.bf16.msra.mxu0 %v3761
    %4278 = vmatprep.subr.bf16.mxu0 0
    %4279 = vmatpush1.bf16.msra.mxu0 %v3764
    %4280 = vmatprep.subr.bf16.mxu0 0
    %4281 = vmatpush1.bf16.msra.mxu0 %v3767
    %4282 = vmatprep.subr.bf16.mxu0 0
    %4283 = vmatpush1.bf16.msra.mxu0 %v3770
    %4284 = vmatprep.subr.bf16.mxu0 0
    %4285 = vmatpush1.bf16.msra.mxu0 %v3773
    %4286 = vmatprep.subr.bf16.mxu0 0
    %4287 = vmatpush1.bf16.msra.mxu0 %v3776
    %4288 = vmatprep.subr.bf16.mxu0 0
    %4289 = vmatpush1.bf16.msra.mxu0 %v3779
    %4290 = vmatprep.subr.bf16.mxu0 0
    %4291 = vmatpush1.bf16.msra.mxu0 %v3782
    %4292 = vmatprep.subr.bf16.mxu0 0
    %4293 = vmatpush1.bf16.msra.mxu0 %v3785
    %4294 = vmatprep.mubr.bf16.mxu0 %v2945
    %4295 = vmatmul.mubr.bf16.gmra.mrb[0].mxu0 %v2944
    %v4296 = vpop.f32.mrb[0].mxu0
    %v4297 = vadd.f32 %v4257, %v4296
    %v4298 = vpop.f32.mrb[0].mxu0
    %v4299 = vpop.f32.mrb[0].mxu0
    %v4300 = vpop.f32.mrb[0].mxu0
    %4301 = vdwg.mxu0
    %v4302 = vtanh.pop %v4136
    %v4303 = vtanh.pop %v4138
    %v4304 = vtanh.pop %v4297
    %4305 = vst [vmem:[#allocation14] sm:$0xff] %v4302
    %4306 = vst [vmem:[#allocation14 + $0x8] sm:$0xff] %v4303
    %4307 = vst [vmem:[#allocation14 + $0x10] sm:$0xff] %v4304
    // Predicated region
    $region66: #{tpu_custom_call.1} parent=1 // pred_check
      _
    $region67: #{tpu_custom_call.1} parent=1 // pred_check_branch
      %4309 = sbr.rel (0) target = $region69
    $region68: #{tpu_custom_call.1} parent=1 // pred_region
      %s4311 = ssub.s32 384, 384
      %4312 = vsyncadd [#allocation5], %s4311
      %s4314 = sshll.u32 [#allocation14], 4
      %s4315 = int_to_ptr.vmem [resolvable:$true] %s4314
      %4317 = dma.vmem_to_hbm [thread:$0]  %s4315, 384, %s9, [#allocation5]
    $region69: #{tpu_custom_call.1} parent=1 // pred_fallthru
      _
    // Predicated region
    $region70: #{tpu_custom_call.1} parent=1 // pred_check
      _
    $region71: #{tpu_custom_call.1} parent=1 // pred_check_branch
      %4319 = sbr.rel (0) target = $region73
    $region72: #{tpu_custom_call.1} parent=1 // pred_region
      %4320 = dma.done [#allocation5], 384
    $region73: #{tpu_custom_call.1} parent=1 // pred_fallthru
      _
    %4321 = vsyncpa [#allocation4], 1
    %4322 = vsyncpa [#allocation7], 1
    %4323 = vsyncpa [#allocation10], 1
    %4324 = vsyncpa [#allocation13], 1
    %4325 = vsyncpa [#allocation5], 1

</llo_original>
